<compile_context>
chip_gen: v5e
topology: v5e:2x2
jax: 0.10.0
libtpu: 0.0.40
codegen_flags: <defaults>
</compile_context>

<pallas_src>
import functools

import jax
import jax.numpy as jnp
from jax import lax
from jax.experimental import pallas as pl
from jax.experimental.pallas import tpu as pltpu

COMPUTE_DTYPE = jnp.bfloat16
_VMEM_LIMIT = 32 * 1024 * 1024   # safe on v5e/v6e (128 MiB) and v7x (64 MiB physical)


def _round_up(a, b):
    return (a + b - 1) // b * b


# ------------------------------------------------------------------ kernels --

def _mlp_kernel(x_ref, *refs, relus):
    """Fused chain of (x @ W + b [+ ReLU]) layers on one row-tile.

    refs = (w0, b0, w1, b1, ..., o_ref). Weights in compute dtype, biases f32,
    accumulation always f32; intermediates are re-cast to compute dtype right after
    the ReLU (halves live vreg/VMEM footprint, numerically identical to the
    pre-dot cast it replaces)."""
    o_ref = refs[-1]
    n = len(relus)
    h = x_ref[...]
    for i, relu in enumerate(relus):
        w = refs[2 * i][...]
        b = refs[2 * i + 1][...]
        y = jnp.dot(h.astype(w.dtype), w, preferred_element_type=jnp.float32)
        y = y + b.astype(jnp.float32)
        if relu:
            y = jnp.maximum(y, 0.0)
        h = y if i == n - 1 else y.astype(w.dtype)
    o_ref[...] = h.astype(o_ref.dtype)


def _conv3x3_block_kernel(cur_ref, nxt_ref, w_ref, b_ref, o_ref, *, relu, R, W):
    """R output rows of a 3x3 conv (pad=1, stride=1) per grid step.

    cur_ref: [1, R, W+2, Cin]   rows rb*R .. rb*R+R-1 of the padded image
    nxt_ref: [1, 2, W+2, Cin]   2-row bottom halo
    w_ref:   [9, Cin, Coutp], b_ref: [1, Coutp]   (Coutp lane-padded to 128)
    o_ref:   [R*W, Coutp]       flattened rows -> one unmasked lane-dense store
    """
    Coutp = o_ref.shape[-1]
    rows = [cur_ref[0, i] for i in range(R)] + [nxt_ref[0, j] for j in range(2)]
    acc = jnp.zeros((R * W, Coutp), jnp.float32) + b_ref[...]
    # TODO(synk): fuse the 3 dx taps per dy into a single K=3*Cin dot once minor-dim
    # concatenation of narrow bf16 channel blocks is guaranteed to lower on all targets.
    for dy in range(3):
        for dx in range(3):
            xmat = jnp.concatenate(
                [rows[r + dy][dx:dx + W, :] for r in range(R)], axis=0)   # [R*W, Cin]
            acc = acc + jnp.dot(xmat, w_ref[3 * dy + dx],
                                preferred_element_type=jnp.float32)
    if relu:
        acc = jnp.maximum(acc, 0.0)
    o_ref[...] = acc.astype(o_ref.dtype)


# ----------------------------------------------------------------- wrappers --

def mlp_pallas(x2d, weights, biases, relus, out_dtype=None,
               compute_dtype=COMPUTE_DTYPE, tm=1024):
    """Row-tiled fused MLP chain: x2d [M, Cin] -> [M, Cout_last].

    TM defaults to 1024 but is capped at ceil(M/2) so the parallel grid axis always
    has >=2 steps (dual-TensorCore sharding on v7x + DMA/compute overlap)."""
    M, Cin = x2d.shape
    Cout = weights[-1].shape[1]
    if out_dtype is None:
        out_dtype = compute_dtype
    x2d = x2d.astype(compute_dtype)
    TM = max(8, min(tm, _round_up(-(-M // 2), 8)))
    Mp = _round_up(M, TM)
    if Mp != M:
        x2d = jnp.pad(x2d, ((0, Mp - M), (0, 0)))
    in_specs = [pl.BlockSpec((TM, Cin), lambda i: (i, 0))]
    args = [x2d]
    for w, b in zip(weights, biases):
        w = w.astype(compute_dtype)
        b = b.reshape(1, -1).astype(jnp.float32)
        in_specs.append(pl.BlockSpec(w.shape, lambda i: (0, 0)))
        in_specs.append(pl.BlockSpec(b.shape, lambda i: (0, 0)))
        args += [w, b]
    out = pl.pallas_call(
        functools.partial(_mlp_kernel, relus=tuple(relus)),
        out_shape=jax.ShapeDtypeStruct((Mp, Cout), out_dtype),
        grid=(Mp // TM,),
        in_specs=in_specs,
        out_specs=pl.BlockSpec((TM, Cout), lambda i: (i, 0)),
        compiler_params=pltpu.CompilerParams(
            dimension_semantics=("parallel",),
            vmem_limit_bytes=_VMEM_LIMIT),
    )(*args)
    return out[:M] if Mp != M else out


def conv1x1(x_nhwc, w, b, relu=False, out_dtype=None, compute_dtype=COMPUTE_DTYPE):
    N, H, W, Cin = x_nhwc.shape
    Cout = w.shape[1]
    y = mlp_pallas(x_nhwc.reshape(N * H * W, Cin), [w], [b], [relu],
                   out_dtype=out_dtype, compute_dtype=compute_dtype)
    return y.reshape(N, H, W, Cout)


def conv3x3(x_nhwc, w9, b, relu=False, out_dtype=None, compute_dtype=COMPUTE_DTYPE,
            row_block=8, keep_pad=False):
    """3x3 conv (pad=1, stride=1) fully inside Pallas, row-block tiled.

    Each grid step reads an (R, W+2, Cin) block plus a 2-row halo block and writes
    R*W output rows as one lane-dense tile (Cout padded to a multiple of 128).
    Padded channels are exact zeros; they are sliced off unless keep_pad=True."""
    N, H, W, Cin = x_nhwc.shape
    Cout = w9.shape[-1]
    if out_dtype is None:
        out_dtype = compute_dtype
    Coutp = _round_up(Cout, 128)

    R = min(row_block, _round_up(H, 2))
    R = max(2, R + (R % 2))                   # R must be even (halo block index)
    while (R * W) % 8 != 0:                   # flattened output block sublane-aligned
        R *= 2
    Hp = _round_up(H, R)
    nb = Hp // R

    xp = jnp.pad(x_nhwc.astype(compute_dtype),
                 ((0, 0), (1, Hp - H + 1), (1, 1), (0, 0)))       # (N, Hp+2, W+2, Cin)
    w = jnp.pad(w9.astype(compute_dtype), ((0, 0), (0, 0), (0, Coutp - Cout)))
    b2 = jnp.pad(b.astype(jnp.float32), (0, Coutp - Cout)).reshape(1, Coutp)

    out = pl.pallas_call(
        functools.partial(_conv3x3_block_kernel, relu=relu, R=R, W=W),
        out_shape=jax.ShapeDtypeStruct((N * Hp * W, Coutp), out_dtype),
        grid=(N, nb),
        in_specs=[
            pl.BlockSpec((1, R, W + 2, Cin), lambda n, rb: (n, rb, 0, 0)),
            pl.BlockSpec((1, 2, W + 2, Cin),
                         lambda n, rb: (n, rb * (R // 2) + R // 2, 0, 0)),
            pl.BlockSpec((9, Cin, Coutp), lambda n, rb: (0, 0, 0)),
            pl.BlockSpec((1, Coutp), lambda n, rb: (0, 0)),
        ],
        out_specs=pl.BlockSpec((R * W, Coutp), lambda n, rb: (n * nb + rb, 0)),
        compiler_params=pltpu.CompilerParams(
            dimension_semantics=("parallel", "parallel"),
            vmem_limit_bytes=_VMEM_LIMIT),
    )(xp, xp, w, b2)
    out = out.reshape(N, Hp, W, Coutp)[:, :H]
    if not keep_pad:
        out = out[..., :Cout]
    return out


# ------------------------------------------------------- deformable conv v1 --

def deform_sample_im2col(x_nhwc, offset_nhwc, dg, compute_dtype=COMPUTE_DTYPE):
    """Bilinear deformable sampling (DCNv1 3x3, pad=1, stride=1) -> col [N, HW, 9*C].

    mmcv offset layout per deformable group: channel 2k = dy, 2k+1 = dx for tap k.
    Out-of-range corners are zeroed (zero padding). Gathered values stay in
    compute_dtype, bilinear weights are f32, and the col buffer is emitted in
    compute_dtype (bf16) to halve its HBM footprint.
    # TODO(synk): gather runs via XLA (jnp.take_along_axis) rather than inside a Pallas
    # kernel; in-kernel vectorized gather support is too restrictive to rely on here.
    """
    N, H, W, C = x_nhwc.shape
    cg = C // dg
    HW = H * W
    xg = x_nhwc.astype(compute_dtype).reshape(N, HW, dg, cg)
    xg = xg.transpose(0, 2, 1, 3).reshape(N, dg * HW, cg)
    off = offset_nhwc.astype(jnp.float32).reshape(N, HW, dg, 9, 2)
    dy_off, dx_off = off[..., 0], off[..., 1]

    base_y = jnp.repeat(jnp.arange(H, dtype=jnp.float32), W)       # [HW]
    base_x = jnp.tile(jnp.arange(W, dtype=jnp.float32), H)
    ky = (jnp.repeat(jnp.arange(3), 3) - 1).astype(jnp.float32)    # [9]
    kx = (jnp.tile(jnp.arange(3), 3) - 1).astype(jnp.float32)

    py = base_y[None, :, None, None] + ky[None, None, None, :] + dy_off   # [N,HW,dg,9]
    px = base_x[None, :, None, None] + kx[None, None, None, :] + dx_off
    y0 = jnp.floor(py)
    x0 = jnp.floor(px)
    ly = py - y0
    lx = px - x0
    y0i = y0.astype(jnp.int32)
    x0i = x0.astype(jnp.int32)
    g_idx = jnp.arange(dg, dtype=jnp.int32)[None, None, :, None]

    sampled = jnp.zeros((N, HW, dg, 9, cg), jnp.float32)
    corners = ((y0i, x0i, (1.0 - ly) * (1.0 - lx)),
               (y0i, x0i + 1, (1.0 - ly) * lx),
               (y0i + 1, x0i, ly * (1.0 - lx)),
               (y0i + 1, x0i + 1, ly * lx))
    for yy, xx, wgt in corners:
        valid = (yy >= 0) & (yy < H) & (xx >= 0) & (xx < W)
        wv = jnp.where(valid, wgt, 0.0)                                   # [N,HW,dg,9]
        flat = jnp.clip(yy, 0, H - 1) * W + jnp.clip(xx, 0, W - 1)
        gidx = (g_idx * HW + flat).reshape(N, HW * dg * 9, 1)
        vals = jnp.take_along_axis(xg, gidx, axis=1)                      # bf16 gather
        sampled = sampled + vals.astype(jnp.float32).reshape(N, HW, dg, 9, cg) * wv[..., None]
    # col[n, p, k*C + g*cg + c] matches weight flattening [9*Cin, Cout] (k*Cin + cin).
    return sampled.transpose(0, 1, 3, 2, 4).reshape(N, HW, 9 * C).astype(compute_dtype)


def fused_offset_conv(x_nhwc, p_cls, p_reg, compute_dtype=COMPUTE_DTYPE):
    """Both FeatureAdaption 1x1 offset convs fused into ONE lane-padded Pallas matmul
    (Cout 72+72 -> padded 256), split back in the wrapper."""
    N, H, W, C = x_nhwc.shape
    w = jnp.concatenate([p_cls["off_w"], p_reg["off_w"]], axis=1)
    b = jnp.concatenate([p_cls["off_b"], p_reg["off_b"]], axis=0)
    Co = w.shape[1]
    Cop = _round_up(Co, 128)
    w = jnp.pad(w, ((0, 0), (0, Cop - Co)))
    b = jnp.pad(b, (0, Cop - Co))
    off = mlp_pallas(x_nhwc.reshape(N * H * W, C), [w], [b], [False],
                     out_dtype=jnp.float32, compute_dtype=compute_dtype)
    half = Co // 2
    off_cls = off[:, :half].reshape(N, H, W, half)
    off_reg = off[:, half:Co].reshape(N, H, W, half)
    return off_cls, off_reg


def feature_adaption(x_nhwc, offset_nhwc, dcn_w, dg=4, compute_dtype=COMPUTE_DTYPE):
    """DCNv1 3x3 sampling (XLA gather -> bf16 im2col) followed by a single fat Pallas
    matmul [M, 9*Cin] @ [9*Cin, Cout] with fused ReLU (DeformConv has no bias)."""
    N, H, W, C = x_nhwc.shape
    col = deform_sample_im2col(x_nhwc, offset_nhwc, dg, compute_dtype=compute_dtype)
    Cout = dcn_w.shape[-1]
    zero_b = jnp.zeros((Cout,), jnp.float32)
    y = mlp_pallas(col.reshape(N * H * W, 9 * C),
                   [dcn_w.reshape(9 * C, Cout)], [zero_b], [True],
                   out_dtype=compute_dtype, compute_dtype=compute_dtype)
    return y.reshape(N, H, W, Cout)


# ------------------------------------------------------------ fused SepHead --

def _block_diag(blocks):
    rtot = sum(b.shape[0] for b in blocks)
    ctot = sum(b.shape[1] for b in blocks)
    out = jnp.zeros((rtot, ctot), blocks[0].dtype)
    r = c = 0
    for b in blocks:
        out = out.at[r:r + b.shape[0], c:c + b.shape[1]].set(b)
        r += b.shape[0]
        c += b.shape[1]
    return out


def fused_task_heads(reg_feat, task_params, compute_dtype=COMPUTE_DTYPE):
    """All SepHead branches in ONE pallas_call: concatenated hidden layers +
    block-diagonal final layer, output lane-padded to a multiple of 128."""
    N, H, W, Cin = reg_feat.shape
    names = list(task_params.keys())
    num_convs = {len(task_params[n]["hidden"]) + 1 for n in names}
    if len(num_convs) != 1:
        # TODO(synk): heterogeneous num_conv across heads -> per-head fallback (unfused).
        ret = {}
        for n in names:
            p = task_params[n]
            f = reg_feat
            for lyr in p["hidden"]:
                f = conv1x1(f, lyr["w"], lyr["b"], relu=True, compute_dtype=compute_dtype)
            ret[n] = conv1x1(f, p["final"]["w"], p["final"]["b"], relu=False,
                             out_dtype=jnp.float32, compute_dtype=compute_dtype)
        return ret

    L = num_convs.pop()
    classes = [task_params[n]["final"]["w"].shape[1] for n in names]
    weights, biases, relus = [], [], []
    if L >= 2:
        w0 = jnp.concatenate([task_params[n]["hidden"][0]["w"] for n in names], axis=1)
        b0 = jnp.concatenate([task_params[n]["hidden"][0]["b"] for n in names], axis=0)
        weights.append(w0); biases.append(b0); relus.append(True)
        for li in range(1, L - 1):
            weights.append(_block_diag([task_params[n]["hidden"][li]["w"] for n in names]))
            biases.append(jnp.concatenate(
                [task_params[n]["hidden"][li]["b"] for n in names], axis=0))
            relus.append(True)
        wf = _block_diag([task_params[n]["final"]["w"] for n in names])
    else:
        wf = jnp.concatenate([task_params[n]["final"]["w"] for n in names], axis=1)
    bf = jnp.concatenate([task_params[n]["final"]["b"] for n in names], axis=0)
    total = sum(classes)
    Cpad = _round_up(max(total, 1), 128)          # lane-dense output, sliced below
    wf = jnp.pad(wf, ((0, 0), (0, Cpad - total)))
    bf = jnp.pad(bf, ((0, Cpad - total),))
    weights.append(wf); biases.append(bf); relus.append(False)

    y = mlp_pallas(reg_feat.reshape(N * H * W, Cin), weights, biases, relus,
                   out_dtype=jnp.float32, compute_dtype=compute_dtype)
    ret, off = {}, 0
    for n, cls in zip(names, classes):
        ret[n] = y[:, off:off + cls].reshape(N, H, W, cls)
        off += cls
    return ret


# ------------------------------------------------------------------ params --

def init_params(key, in_ch, num_cls, heads, head_conv=64, dg=4, init_bias=-2.19):
    KK = 9
    it = iter(jax.random.split(key, 256))

    def nrm(shape, scale=0.1):
        return jax.random.normal(next(it), shape, jnp.float32) * scale

    params = {}
    for name in ("adapt_cls", "adapt_reg"):
        params[name] = dict(
            # FeatureAdaption.init_offset(): conv_offset weight is zero-initialized.
            off_w=jnp.zeros((in_ch, dg * 2 * KK), jnp.float32),
            off_b=nrm((dg * 2 * KK,), 0.5),
            dcn_w=nrm((KK, in_ch, in_ch)),        # DeformConv has no bias
        )
    params["cls_head"] = dict(
        w1=nrm((KK, in_ch, head_conv)), b1=nrm((head_conv,)),
        bn_gamma=1.0 + nrm((head_conv,)), bn_beta=nrm((head_conv,)),
        bn_mean=nrm((head_conv,)), bn_var=1.0 + jnp.abs(nrm((head_conv,))),
        w2=nrm((KK, head_conv, num_cls)),
        b2=jnp.full((num_cls,), init_bias, jnp.float32),   # cls_head[-1].bias.fill_(-2.19)
    )
    task = {}
    for hname, (classes, num_conv) in heads.items():
        cin = in_ch
        hidden = []
        for _ in range(num_conv - 1):
            hidden.append(dict(w=nrm((cin, head_conv)), b=nrm((head_conv,))))
            cin = head_conv
        task[hname] = dict(hidden=hidden,
                           final=dict(w=nrm((cin, classes)), b=nrm((classes,))))
    params["task"] = task
    return params


# ----------------------------------------------------------------- forward --

def dcn_sep_head_forward(x_nchw, params, compute_dtype=COMPUTE_DTYPE):
    # Single layout pass: NCHW -> NHWC with the cast to compute dtype fused in.
    x = jnp.transpose(x_nchw, (0, 2, 3, 1)).astype(compute_dtype)

    # Both offset convs fused into one lane-padded Pallas matmul.
    off_cls, off_reg = fused_offset_conv(x, params["adapt_cls"], params["adapt_reg"],
                                         compute_dtype=compute_dtype)
    center_feat = feature_adaption(x, off_cls, params["adapt_cls"]["dcn_w"], dg=4,
                                   compute_dtype=compute_dtype)
    reg_feat = feature_adaption(x, off_reg, params["adapt_reg"]["dcn_w"], dg=4,
                                compute_dtype=compute_dtype)

    # cls head: Conv3x3 -> BN -> ReLU -> Conv3x3. The 64-ch intermediate stays
    # lane-padded to 128 (padded channels are exact zeros) so both convs use
    # unmasked lane-dense stores/loads.
    # TODO(synk): BatchNorm is folded with running statistics (inference mode); a torch
    # module in train() mode would use per-batch statistics instead.
    # TODO(synk): a single fused row-block kernel keeping the intermediate in VMEM
    # (2-row halo) would remove one HBM round-trip of the activation.
    c = params["cls_head"]
    eps = 1e-5
    bn_scale = c["bn_gamma"] * lax.rsqrt(c["bn_var"] + eps)
    bn_shift = c["bn_beta"] - c["bn_mean"] * bn_scale
    w1_f = c["w1"] * bn_scale[None, None, :]
    b1_f = c["b1"] * bn_scale + bn_shift
    h = conv3x3(center_feat, w1_f, b1_f, relu=True, keep_pad=True,
                compute_dtype=compute_dtype)
    w2p = jnp.pad(c["w2"], ((0, 0), (0, h.shape[-1] - c["w2"].shape[1]), (0, 0)))
    cls_score = conv3x3(h, w2p, c["b2"], relu=False, out_dtype=jnp.float32,
                        compute_dtype=compute_dtype)

    ret = fused_task_heads(reg_feat, params["task"], compute_dtype=compute_dtype)
    ret = {k: jnp.transpose(v, (0, 3, 1, 2)) for k, v in ret.items()}   # back to NCHW
    ret["hm"] = jnp.transpose(cls_score, (0, 3, 1, 2))
    return ret


# -------------------------------------------------------------------- main --

if __name__ == "__main__":
    key = jax.random.PRNGKey(0)
    N, C, H, W = 2, 8, 16, 16          # in_channels must divide by deformable_groups=4
    num_cls = 2
    heads = {"reg": (2, 2), "height": (1, 2), "dim": (3, 2), "rot": (2, 2)}

    kx, kp = jax.random.split(key)
    x = jax.random.normal(kx, (N, C, H, W), jnp.float32)
    params = init_params(kp, C, num_cls, heads)

    fwd = jax.jit(dcn_sep_head_forward)
    out = fwd(x, params)
    out = jax.block_until_ready(out)

    assert out["hm"].shape == (N, num_cls, H, W)
    assert out["hm"].dtype == jnp.float32
    for name, (classes, _) in heads.items():
        assert out[name].shape == (N, classes, H, W)
    print("KERNEL_OK")
</pallas_src>

<mosaic_0001>
module attributes {stable_mosaic.version = 11 : i64} {
  func.func @_mlp_kernel(%arg0: i32, %arg1: memref<256x8xbf16, #tpu.memory_space<vmem>>, %arg2: memref<8x256xbf16, #tpu.memory_space<vmem>>, %arg3: memref<1x256xf32, #tpu.memory_space<vmem>>, %arg4: memref<256x256xf32, #tpu.memory_space<vmem>>) attributes {dimension_semantics = [#tpu.dimension_semantics<parallel>], iteration_bounds = array<i64: 2>, scalar_prefetch = 0 : i64, scratch_operands = 0 : i64, tpu.core_type = #tpu.core_type<tc>, window_params = [{transform_indices = @transform_0, window_bounds = array<i64: 256, 8>}, {pipeline_mode = #tpu.pipeline_mode<synchronous>, transform_indices = @transform_1, window_bounds = array<i64: 8, 256>}, {pipeline_mode = #tpu.pipeline_mode<synchronous>, transform_indices = @transform_2, window_bounds = array<i64: 1, 256>}, {transform_indices = @transform_3, window_bounds = array<i64: 256, 256>}]} {
    %c0 = arith.constant 0 : index
    %c0_0 = arith.constant 0 : index
    %0 = vector.load %arg1[%c0, %c0_0] : memref<256x8xbf16, #tpu.memory_space<vmem>>, vector<256x8xbf16>
    %c0_1 = arith.constant 0 : index
    %c0_2 = arith.constant 0 : index
    %1 = vector.load %arg2[%c0_1, %c0_2] : memref<8x256xbf16, #tpu.memory_space<vmem>>, vector<8x256xbf16>
    %c0_3 = arith.constant 0 : index
    %c0_4 = arith.constant 0 : index
    %2 = vector.load %arg3[%c0_3, %c0_4] : memref<1x256xf32, #tpu.memory_space<vmem>>, vector<1x256xf32>
    %cst = arith.constant dense<0.000000e+00> : vector<256x256xf32>
    %3 = tpu.matmul %0, %1, %cst {dimension_numbers = #tpu.dot_dimension_numbers<[1], [0], [0], [1], [0, 0, 1, 1], [], []>} : vector<256x8xbf16>, vector<8x256xbf16>, vector<256x256xf32> -> vector<256x256xf32>
    %4 = vector.broadcast %2 : vector<1x256xf32> to vector<256x256xf32>
    %5 = arith.addf %3, %4 : vector<256x256xf32>
    %c0_5 = arith.constant 0 : index
    %c0_6 = arith.constant 0 : index
    %6 = vector.load %arg4[%c0_5, %c0_6] : memref<256x256xf32, #tpu.memory_space<vmem>>, vector<256x256xf32>
    tpu.vector_store %arg4[%c0_5, %c0_6], %5 {strides = array<i32>} : memref<256x256xf32, #tpu.memory_space<vmem>>, vector<256x256xf32>,
    return
  }
  func.func @transform_0(%arg0: i32) -> (i32, i32) {
    %c0_i32 = arith.constant 0 : i32
    %c0_i32_0 = arith.constant 0 : i32
    return %arg0, %c0_i32 : i32, i32
  }
  func.func @transform_1(%arg0: i32) -> (i32, i32) {
    %c0_i32 = arith.constant 0 : i32
    %c0_i32_0 = arith.constant 0 : i32
    %c0_i32_1 = arith.constant 0 : i32
    return %c0_i32, %c0_i32_0 : i32, i32
  }
  func.func @transform_2(%arg0: i32) -> (i32, i32) {
    %c0_i32 = arith.constant 0 : i32
    %c0_i32_0 = arith.constant 0 : i32
    %c0_i32_1 = arith.constant 0 : i32
    return %c0_i32, %c0_i32_0 : i32, i32
  }
  func.func @transform_3(%arg0: i32) -> (i32, i32) {
    %c0_i32 = arith.constant 0 : i32
    %c0_i32_0 = arith.constant 0 : i32
    return %arg0, %c0_i32 : i32, i32
  }
}

module attributes {stable_mosaic.version = 11 : i64} {
  func.func @_mlp_kernel(%arg0: i32, %arg1: memref<256x72xbf16, #tpu.memory_space<vmem>>, %arg2: memref<72x8xbf16, #tpu.memory_space<vmem>>, %arg3: memref<1x8xf32, #tpu.memory_space<vmem>>, %arg4: memref<256x8xbf16, #tpu.memory_space<vmem>>) attributes {dimension_semantics = [#tpu.dimension_semantics<parallel>], iteration_bounds = array<i64: 2>, scalar_prefetch = 0 : i64, scratch_operands = 0 : i64, tpu.core_type = #tpu.core_type<tc>, window_params = [{transform_indices = @transform_0, window_bounds = array<i64: 256, 72>}, {pipeline_mode = #tpu.pipeline_mode<synchronous>, transform_indices = @transform_1, window_bounds = array<i64: 72, 8>}, {pipeline_mode = #tpu.pipeline_mode<synchronous>, transform_indices = @transform_2, window_bounds = array<i64: 1, 8>}, {transform_indices = @transform_3, window_bounds = array<i64: 256, 8>}]} {
    %c0 = arith.constant 0 : index
    %c0_0 = arith.constant 0 : index
    %0 = vector.load %arg1[%c0, %c0_0] : memref<256x72xbf16, #tpu.memory_space<vmem>>, vector<256x72xbf16>
    %c0_1 = arith.constant 0 : index
    %c0_2 = arith.constant 0 : index
    %1 = vector.load %arg2[%c0_1, %c0_2] : memref<72x8xbf16, #tpu.memory_space<vmem>>, vector<72x8xbf16>
    %c0_3 = arith.constant 0 : index
    %c0_4 = arith.constant 0 : index
    %2 = vector.load %arg3[%c0_3, %c0_4] : memref<1x8xf32, #tpu.memory_space<vmem>>, vector<1x8xf32>
    %cst = arith.constant dense<0.000000e+00> : vector<256x8xf32>
    %3 = tpu.matmul %0, %1, %cst {dimension_numbers = #tpu.dot_dimension_numbers<[1], [0], [0], [1], [0, 0, 1, 1], [], []>} : vector<256x72xbf16>, vector<72x8xbf16>, vector<256x8xf32> -> vector<256x8xf32>
    %4 = vector.broadcast %2 : vector<1x8xf32> to vector<256x8xf32>
    %5 = arith.addf %3, %4 : vector<256x8xf32>
    %cst_5 = arith.constant 0.000000e+00 : f32
    %6 = vector.broadcast %cst_5 : f32 to vector<256x8xf32>
    %7 = arith.maximumf %5, %6 : vector<256x8xf32>
    %8 = arith.truncf %7 : vector<256x8xf32> to vector<256x8xbf16>
    %c0_6 = arith.constant 0 : index
    %c0_7 = arith.constant 0 : index
    %9 = vector.load %arg4[%c0_6, %c0_7] : memref<256x8xbf16, #tpu.memory_space<vmem>>, vector<256x8xbf16>
    tpu.vector_store %arg4[%c0_6, %c0_7], %8 {strides = array<i32>} : memref<256x8xbf16, #tpu.memory_space<vmem>>, vector<256x8xbf16>,
    return
  }
  func.func @transform_0(%arg0: i32) -> (i32, i32) {
    %c0_i32 = arith.constant 0 : i32
    %c0_i32_0 = arith.constant 0 : i32
    return %arg0, %c0_i32 : i32, i32
  }
  func.func @transform_1(%arg0: i32) -> (i32, i32) {
    %c0_i32 = arith.constant 0 : i32
    %c0_i32_0 = arith.constant 0 : i32
    %c0_i32_1 = arith.constant 0 : i32
    return %c0_i32, %c0_i32_0 : i32, i32
  }
  func.func @transform_2(%arg0: i32) -> (i32, i32) {
    %c0_i32 = arith.constant 0 : i32
    %c0_i32_0 = arith.constant 0 : i32
    %c0_i32_1 = arith.constant 0 : i32
    return %c0_i32, %c0_i32_0 : i32, i32
  }
  func.func @transform_3(%arg0: i32) -> (i32, i32) {
    %c0_i32 = arith.constant 0 : i32
    %c0_i32_0 = arith.constant 0 : i32
    return %arg0, %c0_i32 : i32, i32
  }
}

module attributes {stable_mosaic.version = 11 : i64} {
  func.func @_conv3x3_block_kernel(%arg0: i32, %arg1: i32, %arg2: memref<1x8x18x8xbf16, #tpu.memory_space<vmem>>, %arg3: memref<1x2x18x8xbf16, #tpu.memory_space<vmem>>, %arg4: memref<9x8x128xbf16, #tpu.memory_space<vmem>>, %arg5: memref<1x128xf32, #tpu.memory_space<vmem>>, %arg6: memref<128x128xbf16, #tpu.memory_space<vmem>>) attributes {dimension_semantics = [#tpu.dimension_semantics<parallel>, #tpu.dimension_semantics<parallel>], iteration_bounds = array<i64: 2, 2>, scalar_prefetch = 0 : i64, scratch_operands = 0 : i64, tpu.core_type = #tpu.core_type<tc>, window_params = [{transform_indices = @transform_0, window_bounds = array<i64: 1, 8, 18, 8>}, {transform_indices = @transform_1, window_bounds = array<i64: 1, 2, 18, 8>}, {pipeline_mode = #tpu.pipeline_mode<synchronous>, transform_indices = @transform_2, window_bounds = array<i64: 9, 8, 128>}, {pipeline_mode = #tpu.pipeline_mode<synchronous>, transform_indices = @transform_3, window_bounds = array<i64: 1, 128>}, {transform_indices = @transform_4, window_bounds = array<i64: 128, 128>}]} {
    %c0 = arith.constant 0 : index
    %c0_0 = arith.constant 0 : index
    %c0_1 = arith.constant 0 : index
    %c0_2 = arith.constant 0 : index
    %0 = vector.load %arg2[%c0, %c0_0, %c0_1, %c0_2] : memref<1x8x18x8xbf16, #tpu.memory_space<vmem>>, vector<1x1x18x8xbf16>
    %1 = vector.shape_cast %0 : vector<1x1x18x8xbf16> to vector<18x8xbf16>
    %c0_3 = arith.constant 0 : index
    %c1 = arith.constant 1 : index
    %c0_4 = arith.constant 0 : index
    %c0_5 = arith.constant 0 : index
    %2 = vector.load %arg2[%c0_3, %c1, %c0_4, %c0_5] : memref<1x8x18x8xbf16, #tpu.memory_space<vmem>>, vector<1x1x18x8xbf16>
    %3 = vector.shape_cast %2 : vector<1x1x18x8xbf16> to vector<18x8xbf16>
    %c0_6 = arith.constant 0 : index
    %c2 = arith.constant 2 : index
    %c0_7 = arith.constant 0 : index
    %c0_8 = arith.constant 0 : index
    %4 = vector.load %arg2[%c0_6, %c2, %c0_7, %c0_8] : memref<1x8x18x8xbf16, #tpu.memory_space<vmem>>, vector<1x1x18x8xbf16>
    %5 = vector.shape_cast %4 : vector<1x1x18x8xbf16> to vector<18x8xbf16>
    %c0_9 = arith.constant 0 : index
    %c3 = arith.constant 3 : index
    %c0_10 = arith.constant 0 : index
    %c0_11 = arith.constant 0 : index
    %6 = vector.load %arg2[%c0_9, %c3, %c0_10, %c0_11] : memref<1x8x18x8xbf16, #tpu.memory_space<vmem>>, vector<1x1x18x8xbf16>
    %7 = vector.shape_cast %6 : vector<1x1x18x8xbf16> to vector<18x8xbf16>
    %c0_12 = arith.constant 0 : index
    %c4 = arith.constant 4 : index
    %c0_13 = arith.constant 0 : index
    %c0_14 = arith.constant 0 : index
    %8 = vector.load %arg2[%c0_12, %c4, %c0_13, %c0_14] : memref<1x8x18x8xbf16, #tpu.memory_space<vmem>>, vector<1x1x18x8xbf16>
    %9 = vector.shape_cast %8 : vector<1x1x18x8xbf16> to vector<18x8xbf16>
    %c0_15 = arith.constant 0 : index
    %c5 = arith.constant 5 : index
    %c0_16 = arith.constant 0 : index
    %c0_17 = arith.constant 0 : index
    %10 = vector.load %arg2[%c0_15, %c5, %c0_16, %c0_17] : memref<1x8x18x8xbf16, #tpu.memory_space<vmem>>, vector<1x1x18x8xbf16>
    %11 = vector.shape_cast %10 : vector<1x1x18x8xbf16> to vector<18x8xbf16>
    %c0_18 = arith.constant 0 : index
    %c6 = arith.constant 6 : index
    %c0_19 = arith.constant 0 : index
    %c0_20 = arith.constant 0 : index
    %12 = vector.load %arg2[%c0_18, %c6, %c0_19, %c0_20] : memref<1x8x18x8xbf16, #tpu.memory_space<vmem>>, vector<1x1x18x8xbf16>
    %13 = vector.shape_cast %12 : vector<1x1x18x8xbf16> to vector<18x8xbf16>
    %c0_21 = arith.constant 0 : index
    %c7 = arith.constant 7 : index
    %c0_22 = arith.constant 0 : index
    %c0_23 = arith.constant 0 : index
    %14 = vector.load %arg2[%c0_21, %c7, %c0_22, %c0_23] : memref<1x8x18x8xbf16, #tpu.memory_space<vmem>>, vector<1x1x18x8xbf16>
    %15 = vector.shape_cast %14 : vector<1x1x18x8xbf16> to vector<18x8xbf16>
    %c0_24 = arith.constant 0 : index
    %c0_25 = arith.constant 0 : index
    %c0_26 = arith.constant 0 : index
    %c0_27 = arith.constant 0 : index
    %16 = vector.load %arg3[%c0_24, %c0_25, %c0_26, %c0_27] : memref<1x2x18x8xbf16, #tpu.memory_space<vmem>>, vector<1x1x18x8xbf16>
    %17 = vector.shape_cast %16 : vector<1x1x18x8xbf16> to vector<18x8xbf16>
    %c0_28 = arith.constant 0 : index
    %c1_29 = arith.constant 1 : index
    %c0_30 = arith.constant 0 : index
    %c0_31 = arith.constant 0 : index
    %18 = vector.load %arg3[%c0_28, %c1_29, %c0_30, %c0_31] : memref<1x2x18x8xbf16, #tpu.memory_space<vmem>>, vector<1x1x18x8xbf16>
    %19 = vector.shape_cast %18 : vector<1x1x18x8xbf16> to vector<18x8xbf16>
    %cst = arith.constant 0.000000e+00 : f32
    %20 = vector.broadcast %cst : f32 to vector<128x128xf32>
    %c0_32 = arith.constant 0 : index
    %c0_33 = arith.constant 0 : index
    %21 = vector.load %arg5[%c0_32, %c0_33] : memref<1x128xf32, #tpu.memory_space<vmem>>, vector<1x128xf32>
    %22 = vector.broadcast %21 : vector<1x128xf32> to vector<128x128xf32>
    %23 = arith.addf %20, %22 : vector<128x128xf32>
    %24 = vector.extract_strided_slice %1 {offsets = [0, 0], sizes = [16, 8], strides = [1, 1]} : vector<18x8xbf16> to vector<16x8xbf16>
    %25 = vector.extract_strided_slice %3 {offsets = [0, 0], sizes = [16, 8], strides = [1, 1]} : vector<18x8xbf16> to vector<16x8xbf16>
    %26 = vector.extract_strided_slice %5 {offsets = [0, 0], sizes = [16, 8], strides = [1, 1]} : vector<18x8xbf16> to vector<16x8xbf16>
    %27 = vector.extract_strided_slice %7 {offsets = [0, 0], sizes = [16, 8], strides = [1, 1]} : vector<18x8xbf16> to vector<16x8xbf16>
    %28 = vector.extract_strided_slice %9 {offsets = [0, 0], sizes = [16, 8], strides = [1, 1]} : vector<18x8xbf16> to vector<16x8xbf16>
    %29 = vector.extract_strided_slice %11 {offsets = [0, 0], sizes = [16, 8], strides = [1, 1]} : vector<18x8xbf16> to vector<16x8xbf16>
    %30 = vector.extract_strided_slice %13 {offsets = [0, 0], sizes = [16, 8], strides = [1, 1]} : vector<18x8xbf16> to vector<16x8xbf16>
    %31 = vector.extract_strided_slice %15 {offsets = [0, 0], sizes = [16, 8], strides = [1, 1]} : vector<18x8xbf16> to vector<16x8xbf16>
    %32 = tpu.concatenate %24, %25, %26, %27, %28, %29, %30, %31 in 0 : vector<16x8xbf16>, vector<16x8xbf16>, vector<16x8xbf16>, vector<16x8xbf16>, vector<16x8xbf16>, vector<16x8xbf16>, vector<16x8xbf16>, vector<16x8xbf16> -> vector<128x8xbf16>
    %c0_34 = arith.constant 0 : index
    %c0_35 = arith.constant 0 : index
    %c0_36 = arith.constant 0 : index
    %33 = vector.load %arg4[%c0_34, %c0_35, %c0_36] : memref<9x8x128xbf16, #tpu.memory_space<vmem>>, vector<1x8x128xbf16>
    %34 = vector.shape_cast %33 : vector<1x8x128xbf16> to vector<8x128xbf16>
    %cst_37 = arith.constant dense<0.000000e+00> : vector<128x128xf32>
    %35 = tpu.matmul %32, %34, %cst_37 {dimension_numbers = #tpu.dot_dimension_numbers<[1], [0], [0], [1], [0, 0, 1, 1], [], []>} : vector<128x8xbf16>, vector<8x128xbf16>, vector<128x128xf32> -> vector<128x128xf32>
    %36 = arith.addf %23, %35 : vector<128x128xf32>
    %37 = vector.extract_strided_slice %1 {offsets = [1, 0], sizes = [16, 8], strides = [1, 1]} : vector<18x8xbf16> to vector<16x8xbf16>
    %38 = vector.extract_strided_slice %3 {offsets = [1, 0], sizes = [16, 8], strides = [1, 1]} : vector<18x8xbf16> to vector<16x8xbf16>
    %39 = vector.extract_strided_slice %5 {offsets = [1, 0], sizes = [16, 8], strides = [1, 1]} : vector<18x8xbf16> to vector<16x8xbf16>
    %40 = vector.extract_strided_slice %7 {offsets = [1, 0], sizes = [16, 8], strides = [1, 1]} : vector<18x8xbf16> to vector<16x8xbf16>
    %41 = vector.extract_strided_slice %9 {offsets = [1, 0], sizes = [16, 8], strides = [1, 1]} : vector<18x8xbf16> to vector<16x8xbf16>
    %42 = vector.extract_strided_slice %11 {offsets = [1, 0], sizes = [16, 8], strides = [1, 1]} : vector<18x8xbf16> to vector<16x8xbf16>
    %43 = vector.extract_strided_slice %13 {offsets = [1, 0], sizes = [16, 8], strides = [1, 1]} : vector<18x8xbf16> to vector<16x8xbf16>
    %44 = vector.extract_strided_slice %15 {offsets = [1, 0], sizes = [16, 8], strides = [1, 1]} : vector<18x8xbf16> to vector<16x8xbf16>
    %45 = tpu.concatenate %37, %38, %39, %40, %41, %42, %43, %44 in 0 : vector<16x8xbf16>, vector<16x8xbf16>, vector<16x8xbf16>, vector<16x8xbf16>, vector<16x8xbf16>, vector<16x8xbf16>, vector<16x8xbf16>, vector<16x8xbf16> -> vector<128x8xbf16>
    %c1_38 = arith.constant 1 : index
    %c0_39 = arith.constant 0 : index
    %c0_40 = arith.constant 0 : index
    %46 = vector.load %arg4[%c1_38, %c0_39, %c0_40] : memref<9x8x128xbf16, #tpu.memory_space<vmem>>, vector<1x8x128xbf16>
    %47 = vector.shape_cast %46 : vector<1x8x128xbf16> to vector<8x128xbf16>
    %cst_41 = arith.constant dense<0.000000e+00> : vector<128x128xf32>
    %48 = tpu.matmul %45, %47, %cst_41 {dimension_numbers = #tpu.dot_dimension_numbers<[1], [0], [0], [1], [0, 0, 1, 1], [], []>} : vector<128x8xbf16>, vector<8x128xbf16>, vector<128x128xf32> -> vector<128x128xf32>
    %49 = arith.addf %36, %48 : vector<128x128xf32>
    %50 = vector.extract_strided_slice %1 {offsets = [2, 0], sizes = [16, 8], strides = [1, 1]} : vector<18x8xbf16> to vector<16x8xbf16>
    %51 = vector.extract_strided_slice %3 {offsets = [2, 0], sizes = [16, 8], strides = [1, 1]} : vector<18x8xbf16> to vector<16x8xbf16>
    %52 = vector.extract_strided_slice %5 {offsets = [2, 0], sizes = [16, 8], strides = [1, 1]} : vector<18x8xbf16> to vector<16x8xbf16>
    %53 = vector.extract_strided_slice %7 {offsets = [2, 0], sizes = [16, 8], strides = [1, 1]} : vector<18x8xbf16> to vector<16x8xbf16>
    %54 = vector.extract_strided_slice %9 {offsets = [2, 0], sizes = [16, 8], strides = [1, 1]} : vector<18x8xbf16> to vector<16x8xbf16>
    %55 = vector.extract_strided_slice %11 {offsets = [2, 0], sizes = [16, 8], strides = [1, 1]} : vector<18x8xbf16> to vector<16x8xbf16>
    %56 = vector.extract_strided_slice %13 {offsets = [2, 0], sizes = [16, 8], strides = [1, 1]} : vector<18x8xbf16> to vector<16x8xbf16>
    %57 = vector.extract_strided_slice %15 {offsets = [2, 0], sizes = [16, 8], strides = [1, 1]} : vector<18x8xbf16> to vector<16x8xbf16>
    %58 = tpu.concatenate %50, %51, %52, %53, %54, %55, %56, %57 in 0 : vector<16x8xbf16>, vector<16x8xbf16>, vector<16x8xbf16>, vector<16x8xbf16>, vector<16x8xbf16>, vector<16x8xbf16>, vector<16x8xbf16>, vector<16x8xbf16> -> vector<128x8xbf16>
    %c2_42 = arith.constant 2 : index
    %c0_43 = arith.constant 0 : index
    %c0_44 = arith.constant 0 : index
    %59 = vector.load %arg4[%c2_42, %c0_43, %c0_44] : memref<9x8x128xbf16, #tpu.memory_space<vmem>>, vector<1x8x128xbf16>
    %60 = vector.shape_cast %59 : vector<1x8x128xbf16> to vector<8x128xbf16>
    %cst_45 = arith.constant dense<0.000000e+00> : vector<128x128xf32>
    %61 = tpu.matmul %58, %60, %cst_45 {dimension_numbers = #tpu.dot_dimension_numbers<[1], [0], [0], [1], [0, 0, 1, 1], [], []>} : vector<128x8xbf16>, vector<8x128xbf16>, vector<128x128xf32> -> vector<128x128xf32>
    %62 = arith.addf %49, %61 : vector<128x128xf32>
    %63 = vector.extract_strided_slice %3 {offsets = [0, 0], sizes = [16, 8], strides = [1, 1]} : vector<18x8xbf16> to vector<16x8xbf16>
    %64 = vector.extract_strided_slice %5 {offsets = [0, 0], sizes = [16, 8], strides = [1, 1]} : vector<18x8xbf16> to vector<16x8xbf16>
    %65 = vector.extract_strided_slice %7 {offsets = [0, 0], sizes = [16, 8], strides = [1, 1]} : vector<18x8xbf16> to vector<16x8xbf16>
    %66 = vector.extract_strided_slice %9 {offsets = [0, 0], sizes = [16, 8], strides = [1, 1]} : vector<18x8xbf16> to vector<16x8xbf16>
    %67 = vector.extract_strided_slice %11 {offsets = [0, 0], sizes = [16, 8], strides = [1, 1]} : vector<18x8xbf16> to vector<16x8xbf16>
    %68 = vector.extract_strided_slice %13 {offsets = [0, 0], sizes = [16, 8], strides = [1, 1]} : vector<18x8xbf16> to vector<16x8xbf16>
    %69 = vector.extract_strided_slice %15 {offsets = [0, 0], sizes = [16, 8], strides = [1, 1]} : vector<18x8xbf16> to vector<16x8xbf16>
    %70 = vector.extract_strided_slice %17 {offsets = [0, 0], sizes = [16, 8], strides = [1, 1]} : vector<18x8xbf16> to vector<16x8xbf16>
    %71 = tpu.concatenate %63, %64, %65, %66, %67, %68, %69, %70 in 0 : vector<16x8xbf16>, vector<16x8xbf16>, vector<16x8xbf16>, vector<16x8xbf16>, vector<16x8xbf16>, vector<16x8xbf16>, vector<16x8xbf16>, vector<16x8xbf16> -> vector<128x8xbf16>
    %c3_46 = arith.constant 3 : index
    %c0_47 = arith.constant 0 : index
    %c0_48 = arith.constant 0 : index
    %72 = vector.load %arg4[%c3_46, %c0_47, %c0_48] : memref<9x8x128xbf16, #tpu.memory_space<vmem>>, vector<1x8x128xbf16>
    %73 = vector.shape_cast %72 : vector<1x8x128xbf16> to vector<8x128xbf16>
    %cst_49 = arith.constant dense<0.000000e+00> : vector<128x128xf32>
    %74 = tpu.matmul %71, %73, %cst_49 {dimension_numbers = #tpu.dot_dimension_numbers<[1], [0], [0], [1], [0, 0, 1, 1], [], []>} : vector<128x8xbf16>, vector<8x128xbf16>, vector<128x128xf32> -> vector<128x128xf32>
    %75 = arith.addf %62, %74 : vector<128x128xf32>
    %76 = vector.extract_strided_slice %3 {offsets = [1, 0], sizes = [16, 8], strides = [1, 1]} : vector<18x8xbf16> to vector<16x8xbf16>
    %77 = vector.extract_strided_slice %5 {offsets = [1, 0], sizes = [16, 8], strides = [1, 1]} : vector<18x8xbf16> to vector<16x8xbf16>
    %78 = vector.extract_strided_slice %7 {offsets = [1, 0], sizes = [16, 8], strides = [1, 1]} : vector<18x8xbf16> to vector<16x8xbf16>
    %79 = vector.extract_strided_slice %9 {offsets = [1, 0], sizes = [16, 8], strides = [1, 1]} : vector<18x8xbf16> to vector<16x8xbf16>
    %80 = vector.extract_strided_slice %11 {offsets = [1, 0], sizes = [16, 8], strides = [1, 1]} : vector<18x8xbf16> to vector<16x8xbf16>
    %81 = vector.extract_strided_slice %13 {offsets = [1, 0], sizes = [16, 8], strides = [1, 1]} : vector<18x8xbf16> to vector<16x8xbf16>
    %82 = vector.extract_strided_slice %15 {offsets = [1, 0], sizes = [16, 8], strides = [1, 1]} : vector<18x8xbf16> to vector<16x8xbf16>
    %83 = vector.extract_strided_slice %17 {offsets = [1, 0], sizes = [16, 8], strides = [1, 1]} : vector<18x8xbf16> to vector<16x8xbf16>
    %84 = tpu.concatenate %76, %77, %78, %79, %80, %81, %82, %83 in 0 : vector<16x8xbf16>, vector<16x8xbf16>, vector<16x8xbf16>, vector<16x8xbf16>, vector<16x8xbf16>, vector<16x8xbf16>, vector<16x8xbf16>, vector<16x8xbf16> -> vector<128x8xbf16>
    %c4_50 = arith.constant 4 : index
    %c0_51 = arith.constant 0 : index
    %c0_52 = arith.constant 0 : index
    %85 = vector.load %arg4[%c4_50, %c0_51, %c0_52] : memref<9x8x128xbf16, #tpu.memory_space<vmem>>, vector<1x8x128xbf16>
    %86 = vector.shape_cast %85 : vector<1x8x128xbf16> to vector<8x128xbf16>
    %cst_53 = arith.constant dense<0.000000e+00> : vector<128x128xf32>
    %87 = tpu.matmul %84, %86, %cst_53 {dimension_numbers = #tpu.dot_dimension_numbers<[1], [0], [0], [1], [0, 0, 1, 1], [], []>} : vector<128x8xbf16>, vector<8x128xbf16>, vector<128x128xf32> -> vector<128x128xf32>
    %88 = arith.addf %75, %87 : vector<128x128xf32>
    %89 = vector.extract_strided_slice %3 {offsets = [2, 0], sizes = [16, 8], strides = [1, 1]} : vector<18x8xbf16> to vector<16x8xbf16>
    %90 = vector.extract_strided_slice %5 {offsets = [2, 0], sizes = [16, 8], strides = [1, 1]} : vector<18x8xbf16> to vector<16x8xbf16>
    %91 = vector.extract_strided_slice %7 {offsets = [2, 0], sizes = [16, 8], strides = [1, 1]} : vector<18x8xbf16> to vector<16x8xbf16>
    %92 = vector.extract_strided_slice %9 {offsets = [2, 0], sizes = [16, 8], strides = [1, 1]} : vector<18x8xbf16> to vector<16x8xbf16>
    %93 = vector.extract_strided_slice %11 {offsets = [2, 0], sizes = [16, 8], strides = [1, 1]} : vector<18x8xbf16> to vector<16x8xbf16>
    %94 = vector.extract_strided_slice %13 {offsets = [2, 0], sizes = [16, 8], strides = [1, 1]} : vector<18x8xbf16> to vector<16x8xbf16>
    %95 = vector.extract_strided_slice %15 {offsets = [2, 0], sizes = [16, 8], strides = [1, 1]} : vector<18x8xbf16> to vector<16x8xbf16>
    %96 = vector.extract_strided_slice %17 {offsets = [2, 0], sizes = [16, 8], strides = [1, 1]} : vector<18x8xbf16> to vector<16x8xbf16>
    %97 = tpu.concatenate %89, %90, %91, %92, %93, %94, %95, %96 in 0 : vector<16x8xbf16>, vector<16x8xbf16>, vector<16x8xbf16>, vector<16x8xbf16>, vector<16x8xbf16>, vector<16x8xbf16>, vector<16x8xbf16>, vector<16x8xbf16> -> vector<128x8xbf16>
    %c5_54 = arith.constant 5 : index
    %c0_55 = arith.constant 0 : index
    %c0_56 = arith.constant 0 : index
    %98 = vector.load %arg4[%c5_54, %c0_55, %c0_56] : memref<9x8x128xbf16, #tpu.memory_space<vmem>>, vector<1x8x128xbf16>
    %99 = vector.shape_cast %98 : vector<1x8x128xbf16> to vector<8x128xbf16>
    %cst_57 = arith.constant dense<0.000000e+00> : vector<128x128xf32>
    %100 = tpu.matmul %97, %99, %cst_57 {dimension_numbers = #tpu.dot_dimension_numbers<[1], [0], [0], [1], [0, 0, 1, 1], [], []>} : vector<128x8xbf16>, vector<8x128xbf16>, vector<128x128xf32> -> vector<128x128xf32>
    %101 = arith.addf %88, %100 : vector<128x128xf32>
    %102 = vector.extract_strided_slice %5 {offsets = [0, 0], sizes = [16, 8], strides = [1, 1]} : vector<18x8xbf16> to vector<16x8xbf16>
    %103 = vector.extract_strided_slice %7 {offsets = [0, 0], sizes = [16, 8], strides = [1, 1]} : vector<18x8xbf16> to vector<16x8xbf16>
    %104 = vector.extract_strided_slice %9 {offsets = [0, 0], sizes = [16, 8], strides = [1, 1]} : vector<18x8xbf16> to vector<16x8xbf16>
    %105 = vector.extract_strided_slice %11 {offsets = [0, 0], sizes = [16, 8], strides = [1, 1]} : vector<18x8xbf16> to vector<16x8xbf16>
    %106 = vector.extract_strided_slice %13 {offsets = [0, 0], sizes = [16, 8], strides = [1, 1]} : vector<18x8xbf16> to vector<16x8xbf16>
    %107 = vector.extract_strided_slice %15 {offsets = [0, 0], sizes = [16, 8], strides = [1, 1]} : vector<18x8xbf16> to vector<16x8xbf16>
    %108 = vector.extract_strided_slice %17 {offsets = [0, 0], sizes = [16, 8], strides = [1, 1]} : vector<18x8xbf16> to vector<16x8xbf16>
    %109 = vector.extract_strided_slice %19 {offsets = [0, 0], sizes = [16, 8], strides = [1, 1]} : vector<18x8xbf16> to vector<16x8xbf16>
    %110 = tpu.concatenate %102, %103, %104, %105, %106, %107, %108, %109 in 0 : vector<16x8xbf16>, vector<16x8xbf16>, vector<16x8xbf16>, vector<16x8xbf16>, vector<16x8xbf16>, vector<16x8xbf16>, vector<16x8xbf16>, vector<16x8xbf16> -> vector<128x8xbf16>
    %c6_58 = arith.constant 6 : index
    %c0_59 = arith.constant 0 : index
    %c0_60 = arith.constant 0 : index
    %111 = vector.load %arg4[%c6_58, %c0_59, %c0_60] : memref<9x8x128xbf16, #tpu.memory_space<vmem>>, vector<1x8x128xbf16>
    %112 = vector.shape_cast %111 : vector<1x8x128xbf16> to vector<8x128xbf16>
    %cst_61 = arith.constant dense<0.000000e+00> : vector<128x128xf32>
    %113 = tpu.matmul %110, %112, %cst_61 {dimension_numbers = #tpu.dot_dimension_numbers<[1], [0], [0], [1], [0, 0, 1, 1], [], []>} : vector<128x8xbf16>, vector<8x128xbf16>, vector<128x128xf32> -> vector<128x128xf32>
    %114 = arith.addf %101, %113 : vector<128x128xf32>
    %115 = vector.extract_strided_slice %5 {offsets = [1, 0], sizes = [16, 8], strides = [1, 1]} : vector<18x8xbf16> to vector<16x8xbf16>
    %116 = vector.extract_strided_slice %7 {offsets = [1, 0], sizes = [16, 8], strides = [1, 1]} : vector<18x8xbf16> to vector<16x8xbf16>
    %117 = vector.extract_strided_slice %9 {offsets = [1, 0], sizes = [16, 8], strides = [1, 1]} : vector<18x8xbf16> to vector<16x8xbf16>
    %118 = vector.extract_strided_slice %11 {offsets = [1, 0], sizes = [16, 8], strides = [1, 1]} : vector<18x8xbf16> to vector<16x8xbf16>
    %119 = vector.extract_strided_slice %13 {offsets = [1, 0], sizes = [16, 8], strides = [1, 1]} : vector<18x8xbf16> to vector<16x8xbf16>
    %120 = vector.extract_strided_slice %15 {offsets = [1, 0], sizes = [16, 8], strides = [1, 1]} : vector<18x8xbf16> to vector<16x8xbf16>
    %121 = vector.extract_strided_slice %17 {offsets = [1, 0], sizes = [16, 8], strides = [1, 1]} : vector<18x8xbf16> to vector<16x8xbf16>
    %122 = vector.extract_strided_slice %19 {offsets = [1, 0], sizes = [16, 8], strides = [1, 1]} : vector<18x8xbf16> to vector<16x8xbf16>
    %123 = tpu.concatenate %115, %116, %117, %118, %119, %120, %121, %122 in 0 : vector<16x8xbf16>, vector<16x8xbf16>, vector<16x8xbf16>, vector<16x8xbf16>, vector<16x8xbf16>, vector<16x8xbf16>, vector<16x8xbf16>, vector<16x8xbf16> -> vector<128x8xbf16>
    %c7_62 = arith.constant 7 : index
    %c0_63 = arith.constant 0 : index
    %c0_64 = arith.constant 0 : index
    %124 = vector.load %arg4[%c7_62, %c0_63, %c0_64] : memref<9x8x128xbf16, #tpu.memory_space<vmem>>, vector<1x8x128xbf16>
    %125 = vector.shape_cast %124 : vector<1x8x128xbf16> to vector<8x128xbf16>
    %cst_65 = arith.constant dense<0.000000e+00> : vector<128x128xf32>
    %126 = tpu.matmul %123, %125, %cst_65 {dimension_numbers = #tpu.dot_dimension_numbers<[1], [0], [0], [1], [0, 0, 1, 1], [], []>} : vector<128x8xbf16>, vector<8x128xbf16>, vector<128x128xf32> -> vector<128x128xf32>
    %127 = arith.addf %114, %126 : vector<128x128xf32>
    %128 = vector.extract_strided_slice %5 {offsets = [2, 0], sizes = [16, 8], strides = [1, 1]} : vector<18x8xbf16> to vector<16x8xbf16>
    %129 = vector.extract_strided_slice %7 {offsets = [2, 0], sizes = [16, 8], strides = [1, 1]} : vector<18x8xbf16> to vector<16x8xbf16>
    %130 = vector.extract_strided_slice %9 {offsets = [2, 0], sizes = [16, 8], strides = [1, 1]} : vector<18x8xbf16> to vector<16x8xbf16>
    %131 = vector.extract_strided_slice %11 {offsets = [2, 0], sizes = [16, 8], strides = [1, 1]} : vector<18x8xbf16> to vector<16x8xbf16>
    %132 = vector.extract_strided_slice %13 {offsets = [2, 0], sizes = [16, 8], strides = [1, 1]} : vector<18x8xbf16> to vector<16x8xbf16>
    %133 = vector.extract_strided_slice %15 {offsets = [2, 0], sizes = [16, 8], strides = [1, 1]} : vector<18x8xbf16> to vector<16x8xbf16>
    %134 = vector.extract_strided_slice %17 {offsets = [2, 0], sizes = [16, 8], strides = [1, 1]} : vector<18x8xbf16> to vector<16x8xbf16>
    %135 = vector.extract_strided_slice %19 {offsets = [2, 0], sizes = [16, 8], strides = [1, 1]} : vector<18x8xbf16> to vector<16x8xbf16>
    %136 = tpu.concatenate %128, %129, %130, %131, %132, %133, %134, %135 in 0 : vector<16x8xbf16>, vector<16x8xbf16>, vector<16x8xbf16>, vector<16x8xbf16>, vector<16x8xbf16>, vector<16x8xbf16>, vector<16x8xbf16>, vector<16x8xbf16> -> vector<128x8xbf16>
    %c8 = arith.constant 8 : index
    %c0_66 = arith.constant 0 : index
    %c0_67 = arith.constant 0 : index
    %137 = vector.load %arg4[%c8, %c0_66, %c0_67] : memref<9x8x128xbf16, #tpu.memory_space<vmem>>, vector<1x8x128xbf16>
    %138 = vector.shape_cast %137 : vector<1x8x128xbf16> to vector<8x128xbf16>
    %cst_68 = arith.constant dense<0.000000e+00> : vector<128x128xf32>
    %139 = tpu.matmul %136, %138, %cst_68 {dimension_numbers = #tpu.dot_dimension_numbers<[1], [0], [0], [1], [0, 0, 1, 1], [], []>} : vector<128x8xbf16>, vector<8x128xbf16>, vector<128x128xf32> -> vector<128x128xf32>
    %140 = arith.addf %127, %139 : vector<128x128xf32>
    %cst_69 = arith.constant 0.000000e+00 : f32
    %141 = vector.broadcast %cst_69 : f32 to vector<128x128xf32>
    %142 = arith.maximumf %140, %141 : vector<128x128xf32>
    %143 = arith.truncf %142 : vector<128x128xf32> to vector<128x128xbf16>
    %c0_70 = arith.constant 0 : index
    %c0_71 = arith.constant 0 : index
    %144 = vector.load %arg6[%c0_70, %c0_71] : memref<128x128xbf16, #tpu.memory_space<vmem>>, vector<128x128xbf16>
    tpu.vector_store %arg6[%c0_70, %c0_71], %143 {strides = array<i32>} : memref<128x128xbf16, #tpu.memory_space<vmem>>, vector<128x128xbf16>,
    return
  }
  func.func @transform_0(%arg0: i32, %arg1: i32) -> (i32, i32, i32, i32) {
    %c0_i32 = arith.constant 0 : i32
    %c0_i32_0 = arith.constant 0 : i32
    %c0_i32_1 = arith.constant 0 : i32
    return %arg0, %arg1, %c0_i32, %c0_i32_0 : i32, i32, i32, i32
  }
  func.func @transform_1(%arg0: i32, %arg1: i32) -> (i32, i32, i32, i32) {
    %c4_i32 = arith.constant 4 : i32
    %0 = arith.muli %arg1, %c4_i32 : i32
    %c4_i32_0 = arith.constant 4 : i32
    %1 = arith.addi %0, %c4_i32_0 : i32
    %c0_i32 = arith.constant 0 : i32
    %c0_i32_1 = arith.constant 0 : i32
    %c0_i32_2 = arith.constant 0 : i32
    return %arg0, %1, %c0_i32, %c0_i32_1 : i32, i32, i32, i32
  }
  func.func @transform_2(%arg0: i32, %arg1: i32) -> (i32, i32, i32) {
    %c0_i32 = arith.constant 0 : i32
    %c0_i32_0 = arith.constant 0 : i32
    %c0_i32_1 = arith.constant 0 : i32
    %c0_i32_2 = arith.constant 0 : i32
    return %c0_i32, %c0_i32_0, %c0_i32_1 : i32, i32, i32
  }
  func.func @transform_3(%arg0: i32, %arg1: i32) -> (i32, i32) {
    %c0_i32 = arith.constant 0 : i32
    %c0_i32_0 = arith.constant 0 : i32
    %c0_i32_1 = arith.constant 0 : i32
    return %c0_i32, %c0_i32_0 : i32, i32
  }
  func.func @transform_4(%arg0: i32, %arg1: i32) -> (i32, i32) {
    %c2_i32 = arith.constant 2 : i32
    %0 = arith.muli %arg0, %c2_i32 : i32
    %1 = arith.addi %0, %arg1 : i32
    %c0_i32 = arith.constant 0 : i32
    %c0_i32_0 = arith.constant 0 : i32
    return %1, %c0_i32 : i32, i32
  }
}

module attributes {stable_mosaic.version = 11 : i64} {
  func.func @_conv3x3_block_kernel(%arg0: i32, %arg1: i32, %arg2: memref<1x8x18x128xbf16, #tpu.memory_space<vmem>>, %arg3: memref<1x2x18x128xbf16, #tpu.memory_space<vmem>>, %arg4: memref<9x128x128xbf16, #tpu.memory_space<vmem>>, %arg5: memref<1x128xf32, #tpu.memory_space<vmem>>, %arg6: memref<128x128xf32, #tpu.memory_space<vmem>>) attributes {dimension_semantics = [#tpu.dimension_semantics<parallel>, #tpu.dimension_semantics<parallel>], iteration_bounds = array<i64: 2, 2>, scalar_prefetch = 0 : i64, scratch_operands = 0 : i64, tpu.core_type = #tpu.core_type<tc>, window_params = [{transform_indices = @transform_0, window_bounds = array<i64: 1, 8, 18, 128>}, {transform_indices = @transform_1, window_bounds = array<i64: 1, 2, 18, 128>}, {pipeline_mode = #tpu.pipeline_mode<synchronous>, transform_indices = @transform_2, window_bounds = array<i64: 9, 128, 128>}, {pipeline_mode = #tpu.pipeline_mode<synchronous>, transform_indices = @transform_3, window_bounds = array<i64: 1, 128>}, {transform_indices = @transform_4, window_bounds = array<i64: 128, 128>}]} {
    %c0 = arith.constant 0 : index
    %c0_0 = arith.constant 0 : index
    %c0_1 = arith.constant 0 : index
    %c0_2 = arith.constant 0 : index
    %0 = vector.load %arg2[%c0, %c0_0, %c0_1, %c0_2] : memref<1x8x18x128xbf16, #tpu.memory_space<vmem>>, vector<1x1x18x128xbf16>
    %1 = vector.shape_cast %0 : vector<1x1x18x128xbf16> to vector<18x128xbf16>
    %c0_3 = arith.constant 0 : index
    %c1 = arith.constant 1 : index
    %c0_4 = arith.constant 0 : index
    %c0_5 = arith.constant 0 : index
    %2 = vector.load %arg2[%c0_3, %c1, %c0_4, %c0_5] : memref<1x8x18x128xbf16, #tpu.memory_space<vmem>>, vector<1x1x18x128xbf16>
    %3 = vector.shape_cast %2 : vector<1x1x18x128xbf16> to vector<18x128xbf16>
    %c0_6 = arith.constant 0 : index
    %c2 = arith.constant 2 : index
    %c0_7 = arith.constant 0 : index
    %c0_8 = arith.constant 0 : index
    %4 = vector.load %arg2[%c0_6, %c2, %c0_7, %c0_8] : memref<1x8x18x128xbf16, #tpu.memory_space<vmem>>, vector<1x1x18x128xbf16>
    %5 = vector.shape_cast %4 : vector<1x1x18x128xbf16> to vector<18x128xbf16>
    %c0_9 = arith.constant 0 : index
    %c3 = arith.constant 3 : index
    %c0_10 = arith.constant 0 : index
    %c0_11 = arith.constant 0 : index
    %6 = vector.load %arg2[%c0_9, %c3, %c0_10, %c0_11] : memref<1x8x18x128xbf16, #tpu.memory_space<vmem>>, vector<1x1x18x128xbf16>
    %7 = vector.shape_cast %6 : vector<1x1x18x128xbf16> to vector<18x128xbf16>
    %c0_12 = arith.constant 0 : index
    %c4 = arith.constant 4 : index
    %c0_13 = arith.constant 0 : index
    %c0_14 = arith.constant 0 : index
    %8 = vector.load %arg2[%c0_12, %c4, %c0_13, %c0_14] : memref<1x8x18x128xbf16, #tpu.memory_space<vmem>>, vector<1x1x18x128xbf16>
    %9 = vector.shape_cast %8 : vector<1x1x18x128xbf16> to vector<18x128xbf16>
    %c0_15 = arith.constant 0 : index
    %c5 = arith.constant 5 : index
    %c0_16 = arith.constant 0 : index
    %c0_17 = arith.constant 0 : index
    %10 = vector.load %arg2[%c0_15, %c5, %c0_16, %c0_17] : memref<1x8x18x128xbf16, #tpu.memory_space<vmem>>, vector<1x1x18x128xbf16>
    %11 = vector.shape_cast %10 : vector<1x1x18x128xbf16> to vector<18x128xbf16>
    %c0_18 = arith.constant 0 : index
    %c6 = arith.constant 6 : index
    %c0_19 = arith.constant 0 : index
    %c0_20 = arith.constant 0 : index
    %12 = vector.load %arg2[%c0_18, %c6, %c0_19, %c0_20] : memref<1x8x18x128xbf16, #tpu.memory_space<vmem>>, vector<1x1x18x128xbf16>
    %13 = vector.shape_cast %12 : vector<1x1x18x128xbf16> to vector<18x128xbf16>
    %c0_21 = arith.constant 0 : index
    %c7 = arith.constant 7 : index
    %c0_22 = arith.constant 0 : index
    %c0_23 = arith.constant 0 : index
    %14 = vector.load %arg2[%c0_21, %c7, %c0_22, %c0_23] : memref<1x8x18x128xbf16, #tpu.memory_space<vmem>>, vector<1x1x18x128xbf16>
    %15 = vector.shape_cast %14 : vector<1x1x18x128xbf16> to vector<18x128xbf16>
    %c0_24 = arith.constant 0 : index
    %c0_25 = arith.constant 0 : index
    %c0_26 = arith.constant 0 : index
    %c0_27 = arith.constant 0 : index
    %16 = vector.load %arg3[%c0_24, %c0_25, %c0_26, %c0_27] : memref<1x2x18x128xbf16, #tpu.memory_space<vmem>>, vector<1x1x18x128xbf16>
    %17 = vector.shape_cast %16 : vector<1x1x18x128xbf16> to vector<18x128xbf16>
    %c0_28 = arith.constant 0 : index
    %c1_29 = arith.constant 1 : index
    %c0_30 = arith.constant 0 : index
    %c0_31 = arith.constant 0 : index
    %18 = vector.load %arg3[%c0_28, %c1_29, %c0_30, %c0_31] : memref<1x2x18x128xbf16, #tpu.memory_space<vmem>>, vector<1x1x18x128xbf16>
    %19 = vector.shape_cast %18 : vector<1x1x18x128xbf16> to vector<18x128xbf16>
    %cst = arith.constant 0.000000e+00 : f32
    %20 = vector.broadcast %cst : f32 to vector<128x128xf32>
    %c0_32 = arith.constant 0 : index
    %c0_33 = arith.constant 0 : index
    %21 = vector.load %arg5[%c0_32, %c0_33] : memref<1x128xf32, #tpu.memory_space<vmem>>, vector<1x128xf32>
    %22 = vector.broadcast %21 : vector<1x128xf32> to vector<128x128xf32>
    %23 = arith.addf %20, %22 : vector<128x128xf32>
    %24 = vector.extract_strided_slice %1 {offsets = [0, 0], sizes = [16, 128], strides = [1, 1]} : vector<18x128xbf16> to vector<16x128xbf16>
    %25 = vector.extract_strided_slice %3 {offsets = [0, 0], sizes = [16, 128], strides = [1, 1]} : vector<18x128xbf16> to vector<16x128xbf16>
    %26 = vector.extract_strided_slice %5 {offsets = [0, 0], sizes = [16, 128], strides = [1, 1]} : vector<18x128xbf16> to vector<16x128xbf16>
    %27 = vector.extract_strided_slice %7 {offsets = [0, 0], sizes = [16, 128], strides = [1, 1]} : vector<18x128xbf16> to vector<16x128xbf16>
    %28 = vector.extract_strided_slice %9 {offsets = [0, 0], sizes = [16, 128], strides = [1, 1]} : vector<18x128xbf16> to vector<16x128xbf16>
    %29 = vector.extract_strided_slice %11 {offsets = [0, 0], sizes = [16, 128], strides = [1, 1]} : vector<18x128xbf16> to vector<16x128xbf16>
    %30 = vector.extract_strided_slice %13 {offsets = [0, 0], sizes = [16, 128], strides = [1, 1]} : vector<18x128xbf16> to vector<16x128xbf16>
    %31 = vector.extract_strided_slice %15 {offsets = [0, 0], sizes = [16, 128], strides = [1, 1]} : vector<18x128xbf16> to vector<16x128xbf16>
    %32 = tpu.concatenate %24, %25, %26, %27, %28, %29, %30, %31 in 0 : vector<16x128xbf16>, vector<16x128xbf16>, vector<16x128xbf16>, vector<16x128xbf16>, vector<16x128xbf16>, vector<16x128xbf16>, vector<16x128xbf16>, vector<16x128xbf16> -> vector<128x128xbf16>
    %c0_34 = arith.constant 0 : index
    %c0_35 = arith.constant 0 : index
    %c0_36 = arith.constant 0 : index
    %33 = vector.load %arg4[%c0_34, %c0_35, %c0_36] : memref<9x128x128xbf16, #tpu.memory_space<vmem>>, vector<1x128x128xbf16>
    %34 = vector.shape_cast %33 : vector<1x128x128xbf16> to vector<128x128xbf16>
    %cst_37 = arith.constant dense<0.000000e+00> : vector<128x128xf32>
    %35 = tpu.matmul %32, %34, %cst_37 {dimension_numbers = #tpu.dot_dimension_numbers<[1], [0], [0], [1], [0, 0, 1, 1], [], []>} : vector<128x128xbf16>, vector<128x128xbf16>, vector<128x128xf32> -> vector<128x128xf32>
    %36 = arith.addf %23, %35 : vector<128x128xf32>
    %37 = vector.extract_strided_slice %1 {offsets = [1, 0], sizes = [16, 128], strides = [1, 1]} : vector<18x128xbf16> to vector<16x128xbf16>
    %38 = vector.extract_strided_slice %3 {offsets = [1, 0], sizes = [16, 128], strides = [1, 1]} : vector<18x128xbf16> to vector<16x128xbf16>
    %39 = vector.extract_strided_slice %5 {offsets = [1, 0], sizes = [16, 128], strides = [1, 1]} : vector<18x128xbf16> to vector<16x128xbf16>
    %40 = vector.extract_strided_slice %7 {offsets = [1, 0], sizes = [16, 128], strides = [1, 1]} : vector<18x128xbf16> to vector<16x128xbf16>
    %41 = vector.extract_strided_slice %9 {offsets = [1, 0], sizes = [16, 128], strides = [1, 1]} : vector<18x128xbf16> to vector<16x128xbf16>
    %42 = vector.extract_strided_slice %11 {offsets = [1, 0], sizes = [16, 128], strides = [1, 1]} : vector<18x128xbf16> to vector<16x128xbf16>
    %43 = vector.extract_strided_slice %13 {offsets = [1, 0], sizes = [16, 128], strides = [1, 1]} : vector<18x128xbf16> to vector<16x128xbf16>
    %44 = vector.extract_strided_slice %15 {offsets = [1, 0], sizes = [16, 128], strides = [1, 1]} : vector<18x128xbf16> to vector<16x128xbf16>
    %45 = tpu.concatenate %37, %38, %39, %40, %41, %42, %43, %44 in 0 : vector<16x128xbf16>, vector<16x128xbf16>, vector<16x128xbf16>, vector<16x128xbf16>, vector<16x128xbf16>, vector<16x128xbf16>, vector<16x128xbf16>, vector<16x128xbf16> -> vector<128x128xbf16>
    %c1_38 = arith.constant 1 : index
    %c0_39 = arith.constant 0 : index
    %c0_40 = arith.constant 0 : index
    %46 = vector.load %arg4[%c1_38, %c0_39, %c0_40] : memref<9x128x128xbf16, #tpu.memory_space<vmem>>, vector<1x128x128xbf16>
    %47 = vector.shape_cast %46 : vector<1x128x128xbf16> to vector<128x128xbf16>
    %cst_41 = arith.constant dense<0.000000e+00> : vector<128x128xf32>
    %48 = tpu.matmul %45, %47, %cst_41 {dimension_numbers = #tpu.dot_dimension_numbers<[1], [0], [0], [1], [0, 0, 1, 1], [], []>} : vector<128x128xbf16>, vector<128x128xbf16>, vector<128x128xf32> -> vector<128x128xf32>
    %49 = arith.addf %36, %48 : vector<128x128xf32>
    %50 = vector.extract_strided_slice %1 {offsets = [2, 0], sizes = [16, 128], strides = [1, 1]} : vector<18x128xbf16> to vector<16x128xbf16>
    %51 = vector.extract_strided_slice %3 {offsets = [2, 0], sizes = [16, 128], strides = [1, 1]} : vector<18x128xbf16> to vector<16x128xbf16>
    %52 = vector.extract_strided_slice %5 {offsets = [2, 0], sizes = [16, 128], strides = [1, 1]} : vector<18x128xbf16> to vector<16x128xbf16>
    %53 = vector.extract_strided_slice %7 {offsets = [2, 0], sizes = [16, 128], strides = [1, 1]} : vector<18x128xbf16> to vector<16x128xbf16>
    %54 = vector.extract_strided_slice %9 {offsets = [2, 0], sizes = [16, 128], strides = [1, 1]} : vector<18x128xbf16> to vector<16x128xbf16>
    %55 = vector.extract_strided_slice %11 {offsets = [2, 0], sizes = [16, 128], strides = [1, 1]} : vector<18x128xbf16> to vector<16x128xbf16>
    %56 = vector.extract_strided_slice %13 {offsets = [2, 0], sizes = [16, 128], strides = [1, 1]} : vector<18x128xbf16> to vector<16x128xbf16>
    %57 = vector.extract_strided_slice %15 {offsets = [2, 0], sizes = [16, 128], strides = [1, 1]} : vector<18x128xbf16> to vector<16x128xbf16>
    %58 = tpu.concatenate %50, %51, %52, %53, %54, %55, %56, %57 in 0 : vector<16x128xbf16>, vector<16x128xbf16>, vector<16x128xbf16>, vector<16x128xbf16>, vector<16x128xbf16>, vector<16x128xbf16>, vector<16x128xbf16>, vector<16x128xbf16> -> vector<128x128xbf16>
    %c2_42 = arith.constant 2 : index
    %c0_43 = arith.constant 0 : index
    %c0_44 = arith.constant 0 : index
    %59 = vector.load %arg4[%c2_42, %c0_43, %c0_44] : memref<9x128x128xbf16, #tpu.memory_space<vmem>>, vector<1x128x128xbf16>
    %60 = vector.shape_cast %59 : vector<1x128x128xbf16> to vector<128x128xbf16>
    %cst_45 = arith.constant dense<0.000000e+00> : vector<128x128xf32>
    %61 = tpu.matmul %58, %60, %cst_45 {dimension_numbers = #tpu.dot_dimension_numbers<[1], [0], [0], [1], [0, 0, 1, 1], [], []>} : vector<128x128xbf16>, vector<128x128xbf16>, vector<128x128xf32> -> vector<128x128xf32>
    %62 = arith.addf %49, %61 : vector<128x128xf32>
    %63 = vector.extract_strided_slice %3 {offsets = [0, 0], sizes = [16, 128], strides = [1, 1]} : vector<18x128xbf16> to vector<16x128xbf16>
    %64 = vector.extract_strided_slice %5 {offsets = [0, 0], sizes = [16, 128], strides = [1, 1]} : vector<18x128xbf16> to vector<16x128xbf16>
    %65 = vector.extract_strided_slice %7 {offsets = [0, 0], sizes = [16, 128], strides = [1, 1]} : vector<18x128xbf16> to vector<16x128xbf16>
    %66 = vector.extract_strided_slice %9 {offsets = [0, 0], sizes = [16, 128], strides = [1, 1]} : vector<18x128xbf16> to vector<16x128xbf16>
    %67 = vector.extract_strided_slice %11 {offsets = [0, 0], sizes = [16, 128], strides = [1, 1]} : vector<18x128xbf16> to vector<16x128xbf16>
    %68 = vector.extract_strided_slice %13 {offsets = [0, 0], sizes = [16, 128], strides = [1, 1]} : vector<18x128xbf16> to vector<16x128xbf16>
    %69 = vector.extract_strided_slice %15 {offsets = [0, 0], sizes = [16, 128], strides = [1, 1]} : vector<18x128xbf16> to vector<16x128xbf16>
    %70 = vector.extract_strided_slice %17 {offsets = [0, 0], sizes = [16, 128], strides = [1, 1]} : vector<18x128xbf16> to vector<16x128xbf16>
    %71 = tpu.concatenate %63, %64, %65, %66, %67, %68, %69, %70 in 0 : vector<16x128xbf16>, vector<16x128xbf16>, vector<16x128xbf16>, vector<16x128xbf16>, vector<16x128xbf16>, vector<16x128xbf16>, vector<16x128xbf16>, vector<16x128xbf16> -> vector<128x128xbf16>
    %c3_46 = arith.constant 3 : index
    %c0_47 = arith.constant 0 : index
    %c0_48 = arith.constant 0 : index
    %72 = vector.load %arg4[%c3_46, %c0_47, %c0_48] : memref<9x128x128xbf16, #tpu.memory_space<vmem>>, vector<1x128x128xbf16>
    %73 = vector.shape_cast %72 : vector<1x128x128xbf16> to vector<128x128xbf16>
    %cst_49 = arith.constant dense<0.000000e+00> : vector<128x128xf32>
    %74 = tpu.matmul %71, %73, %cst_49 {dimension_numbers = #tpu.dot_dimension_numbers<[1], [0], [0], [1], [0, 0, 1, 1], [], []>} : vector<128x128xbf16>, vector<128x128xbf16>, vector<128x128xf32> -> vector<128x128xf32>
    %75 = arith.addf %62, %74 : vector<128x128xf32>
    %76 = vector.extract_strided_slice %3 {offsets = [1, 0], sizes = [16, 128], strides = [1, 1]} : vector<18x128xbf16> to vector<16x128xbf16>
    %77 = vector.extract_strided_slice %5 {offsets = [1, 0], sizes = [16, 128], strides = [1, 1]} : vector<18x128xbf16> to vector<16x128xbf16>
    %78 = vector.extract_strided_slice %7 {offsets = [1, 0], sizes = [16, 128], strides = [1, 1]} : vector<18x128xbf16> to vector<16x128xbf16>
    %79 = vector.extract_strided_slice %9 {offsets = [1, 0], sizes = [16, 128], strides = [1, 1]} : vector<18x128xbf16> to vector<16x128xbf16>
    %80 = vector.extract_strided_slice %11 {offsets = [1, 0], sizes = [16, 128], strides = [1, 1]} : vector<18x128xbf16> to vector<16x128xbf16>
    %81 = vector.extract_strided_slice %13 {offsets = [1, 0], sizes = [16, 128], strides = [1, 1]} : vector<18x128xbf16> to vector<16x128xbf16>
    %82 = vector.extract_strided_slice %15 {offsets = [1, 0], sizes = [16, 128], strides = [1, 1]} : vector<18x128xbf16> to vector<16x128xbf16>
    %83 = vector.extract_strided_slice %17 {offsets = [1, 0], sizes = [16, 128], strides = [1, 1]} : vector<18x128xbf16> to vector<16x128xbf16>
    %84 = tpu.concatenate %76, %77, %78, %79, %80, %81, %82, %83 in 0 : vector<16x128xbf16>, vector<16x128xbf16>, vector<16x128xbf16>, vector<16x128xbf16>, vector<16x128xbf16>, vector<16x128xbf16>, vector<16x128xbf16>, vector<16x128xbf16> -> vector<128x128xbf16>
    %c4_50 = arith.constant 4 : index
    %c0_51 = arith.constant 0 : index
    %c0_52 = arith.constant 0 : index
    %85 = vector.load %arg4[%c4_50, %c0_51, %c0_52] : memref<9x128x128xbf16, #tpu.memory_space<vmem>>, vector<1x128x128xbf16>
    %86 = vector.shape_cast %85 : vector<1x128x128xbf16> to vector<128x128xbf16>
    %cst_53 = arith.constant dense<0.000000e+00> : vector<128x128xf32>
    %87 = tpu.matmul %84, %86, %cst_53 {dimension_numbers = #tpu.dot_dimension_numbers<[1], [0], [0], [1], [0, 0, 1, 1], [], []>} : vector<128x128xbf16>, vector<128x128xbf16>, vector<128x128xf32> -> vector<128x128xf32>
    %88 = arith.addf %75, %87 : vector<128x128xf32>
    %89 = vector.extract_strided_slice %3 {offsets = [2, 0], sizes = [16, 128], strides = [1, 1]} : vector<18x128xbf16> to vector<16x128xbf16>
    %90 = vector.extract_strided_slice %5 {offsets = [2, 0], sizes = [16, 128], strides = [1, 1]} : vector<18x128xbf16> to vector<16x128xbf16>
    %91 = vector.extract_strided_slice %7 {offsets = [2, 0], sizes = [16, 128], strides = [1, 1]} : vector<18x128xbf16> to vector<16x128xbf16>
    %92 = vector.extract_strided_slice %9 {offsets = [2, 0], sizes = [16, 128], strides = [1, 1]} : vector<18x128xbf16> to vector<16x128xbf16>
    %93 = vector.extract_strided_slice %11 {offsets = [2, 0], sizes = [16, 128], strides = [1, 1]} : vector<18x128xbf16> to vector<16x128xbf16>
    %94 = vector.extract_strided_slice %13 {offsets = [2, 0], sizes = [16, 128], strides = [1, 1]} : vector<18x128xbf16> to vector<16x128xbf16>
    %95 = vector.extract_strided_slice %15 {offsets = [2, 0], sizes = [16, 128], strides = [1, 1]} : vector<18x128xbf16> to vector<16x128xbf16>
    %96 = vector.extract_strided_slice %17 {offsets = [2, 0], sizes = [16, 128], strides = [1, 1]} : vector<18x128xbf16> to vector<16x128xbf16>
    %97 = tpu.concatenate %89, %90, %91, %92, %93, %94, %95, %96 in 0 : vector<16x128xbf16>, vector<16x128xbf16>, vector<16x128xbf16>, vector<16x128xbf16>, vector<16x128xbf16>, vector<16x128xbf16>, vector<16x128xbf16>, vector<16x128xbf16> -> vector<128x128xbf16>
    %c5_54 = arith.constant 5 : index
    %c0_55 = arith.constant 0 : index
    %c0_56 = arith.constant 0 : index
    %98 = vector.load %arg4[%c5_54, %c0_55, %c0_56] : memref<9x128x128xbf16, #tpu.memory_space<vmem>>, vector<1x128x128xbf16>
    %99 = vector.shape_cast %98 : vector<1x128x128xbf16> to vector<128x128xbf16>
    %cst_57 = arith.constant dense<0.000000e+00> : vector<128x128xf32>
    %100 = tpu.matmul %97, %99, %cst_57 {dimension_numbers = #tpu.dot_dimension_numbers<[1], [0], [0], [1], [0, 0, 1, 1], [], []>} : vector<128x128xbf16>, vector<128x128xbf16>, vector<128x128xf32> -> vector<128x128xf32>
    %101 = arith.addf %88, %100 : vector<128x128xf32>
    %102 = vector.extract_strided_slice %5 {offsets = [0, 0], sizes = [16, 128], strides = [1, 1]} : vector<18x128xbf16> to vector<16x128xbf16>
    %103 = vector.extract_strided_slice %7 {offsets = [0, 0], sizes = [16, 128], strides = [1, 1]} : vector<18x128xbf16> to vector<16x128xbf16>
    %104 = vector.extract_strided_slice %9 {offsets = [0, 0], sizes = [16, 128], strides = [1, 1]} : vector<18x128xbf16> to vector<16x128xbf16>
    %105 = vector.extract_strided_slice %11 {offsets = [0, 0], sizes = [16, 128], strides = [1, 1]} : vector<18x128xbf16> to vector<16x128xbf16>
    %106 = vector.extract_strided_slice %13 {offsets = [0, 0], sizes = [16, 128], strides = [1, 1]} : vector<18x128xbf16> to vector<16x128xbf16>
    %107 = vector.extract_strided_slice %15 {offsets = [0, 0], sizes = [16, 128], strides = [1, 1]} : vector<18x128xbf16> to vector<16x128xbf16>
    %108 = vector.extract_strided_slice %17 {offsets = [0, 0], sizes = [16, 128], strides = [1, 1]} : vector<18x128xbf16> to vector<16x128xbf16>
    %109 = vector.extract_strided_slice %19 {offsets = [0, 0], sizes = [16, 128], strides = [1, 1]} : vector<18x128xbf16> to vector<16x128xbf16>
    %110 = tpu.concatenate %102, %103, %104, %105, %106, %107, %108, %109 in 0 : vector<16x128xbf16>, vector<16x128xbf16>, vector<16x128xbf16>, vector<16x128xbf16>, vector<16x128xbf16>, vector<16x128xbf16>, vector<16x128xbf16>, vector<16x128xbf16> -> vector<128x128xbf16>
    %c6_58 = arith.constant 6 : index
    %c0_59 = arith.constant 0 : index
    %c0_60 = arith.constant 0 : index
    %111 = vector.load %arg4[%c6_58, %c0_59, %c0_60] : memref<9x128x128xbf16, #tpu.memory_space<vmem>>, vector<1x128x128xbf16>
    %112 = vector.shape_cast %111 : vector<1x128x128xbf16> to vector<128x128xbf16>
    %cst_61 = arith.constant dense<0.000000e+00> : vector<128x128xf32>
    %113 = tpu.matmul %110, %112, %cst_61 {dimension_numbers = #tpu.dot_dimension_numbers<[1], [0], [0], [1], [0, 0, 1, 1], [], []>} : vector<128x128xbf16>, vector<128x128xbf16>, vector<128x128xf32> -> vector<128x128xf32>
    %114 = arith.addf %101, %113 : vector<128x128xf32>
    %115 = vector.extract_strided_slice %5 {offsets = [1, 0], sizes = [16, 128], strides = [1, 1]} : vector<18x128xbf16> to vector<16x128xbf16>
    %116 = vector.extract_strided_slice %7 {offsets = [1, 0], sizes = [16, 128], strides = [1, 1]} : vector<18x128xbf16> to vector<16x128xbf16>
    %117 = vector.extract_strided_slice %9 {offsets = [1, 0], sizes = [16, 128], strides = [1, 1]} : vector<18x128xbf16> to vector<16x128xbf16>
    %118 = vector.extract_strided_slice %11 {offsets = [1, 0], sizes = [16, 128], strides = [1, 1]} : vector<18x128xbf16> to vector<16x128xbf16>
    %119 = vector.extract_strided_slice %13 {offsets = [1, 0], sizes = [16, 128], strides = [1, 1]} : vector<18x128xbf16> to vector<16x128xbf16>
    %120 = vector.extract_strided_slice %15 {offsets = [1, 0], sizes = [16, 128], strides = [1, 1]} : vector<18x128xbf16> to vector<16x128xbf16>
    %121 = vector.extract_strided_slice %17 {offsets = [1, 0], sizes = [16, 128], strides = [1, 1]} : vector<18x128xbf16> to vector<16x128xbf16>
    %122 = vector.extract_strided_slice %19 {offsets = [1, 0], sizes = [16, 128], strides = [1, 1]} : vector<18x128xbf16> to vector<16x128xbf16>
    %123 = tpu.concatenate %115, %116, %117, %118, %119, %120, %121, %122 in 0 : vector<16x128xbf16>, vector<16x128xbf16>, vector<16x128xbf16>, vector<16x128xbf16>, vector<16x128xbf16>, vector<16x128xbf16>, vector<16x128xbf16>, vector<16x128xbf16> -> vector<128x128xbf16>
    %c7_62 = arith.constant 7 : index
    %c0_63 = arith.constant 0 : index
    %c0_64 = arith.constant 0 : index
    %124 = vector.load %arg4[%c7_62, %c0_63, %c0_64] : memref<9x128x128xbf16, #tpu.memory_space<vmem>>, vector<1x128x128xbf16>
    %125 = vector.shape_cast %124 : vector<1x128x128xbf16> to vector<128x128xbf16>
    %cst_65 = arith.constant dense<0.000000e+00> : vector<128x128xf32>
    %126 = tpu.matmul %123, %125, %cst_65 {dimension_numbers = #tpu.dot_dimension_numbers<[1], [0], [0], [1], [0, 0, 1, 1], [], []>} : vector<128x128xbf16>, vector<128x128xbf16>, vector<128x128xf32> -> vector<128x128xf32>
    %127 = arith.addf %114, %126 : vector<128x128xf32>
    %128 = vector.extract_strided_slice %5 {offsets = [2, 0], sizes = [16, 128], strides = [1, 1]} : vector<18x128xbf16> to vector<16x128xbf16>
    %129 = vector.extract_strided_slice %7 {offsets = [2, 0], sizes = [16, 128], strides = [1, 1]} : vector<18x128xbf16> to vector<16x128xbf16>
    %130 = vector.extract_strided_slice %9 {offsets = [2, 0], sizes = [16, 128], strides = [1, 1]} : vector<18x128xbf16> to vector<16x128xbf16>
    %131 = vector.extract_strided_slice %11 {offsets = [2, 0], sizes = [16, 128], strides = [1, 1]} : vector<18x128xbf16> to vector<16x128xbf16>
    %132 = vector.extract_strided_slice %13 {offsets = [2, 0], sizes = [16, 128], strides = [1, 1]} : vector<18x128xbf16> to vector<16x128xbf16>
    %133 = vector.extract_strided_slice %15 {offsets = [2, 0], sizes = [16, 128], strides = [1, 1]} : vector<18x128xbf16> to vector<16x128xbf16>
    %134 = vector.extract_strided_slice %17 {offsets = [2, 0], sizes = [16, 128], strides = [1, 1]} : vector<18x128xbf16> to vector<16x128xbf16>
    %135 = vector.extract_strided_slice %19 {offsets = [2, 0], sizes = [16, 128], strides = [1, 1]} : vector<18x128xbf16> to vector<16x128xbf16>
    %136 = tpu.concatenate %128, %129, %130, %131, %132, %133, %134, %135 in 0 : vector<16x128xbf16>, vector<16x128xbf16>, vector<16x128xbf16>, vector<16x128xbf16>, vector<16x128xbf16>, vector<16x128xbf16>, vector<16x128xbf16>, vector<16x128xbf16> -> vector<128x128xbf16>
    %c8 = arith.constant 8 : index
    %c0_66 = arith.constant 0 : index
    %c0_67 = arith.constant 0 : index
    %137 = vector.load %arg4[%c8, %c0_66, %c0_67] : memref<9x128x128xbf16, #tpu.memory_space<vmem>>, vector<1x128x128xbf16>
    %138 = vector.shape_cast %137 : vector<1x128x128xbf16> to vector<128x128xbf16>
    %cst_68 = arith.constant dense<0.000000e+00> : vector<128x128xf32>
    %139 = tpu.matmul %136, %138, %cst_68 {dimension_numbers = #tpu.dot_dimension_numbers<[1], [0], [0], [1], [0, 0, 1, 1], [], []>} : vector<128x128xbf16>, vector<128x128xbf16>, vector<128x128xf32> -> vector<128x128xf32>
    %140 = arith.addf %127, %139 : vector<128x128xf32>
    %c0_69 = arith.constant 0 : index
    %c0_70 = arith.constant 0 : index
    %141 = vector.load %arg6[%c0_69, %c0_70] : memref<128x128xf32, #tpu.memory_space<vmem>>, vector<128x128xf32>
    tpu.vector_store %arg6[%c0_69, %c0_70], %140 {strides = array<i32>} : memref<128x128xf32, #tpu.memory_space<vmem>>, vector<128x128xf32>,
    return
  }
  func.func @transform_0(%arg0: i32, %arg1: i32) -> (i32, i32, i32, i32) {
    %c0_i32 = arith.constant 0 : i32
    %c0_i32_0 = arith.constant 0 : i32
    %c0_i32_1 = arith.constant 0 : i32
    return %arg0, %arg1, %c0_i32, %c0_i32_0 : i32, i32, i32, i32
  }
  func.func @transform_1(%arg0: i32, %arg1: i32) -> (i32, i32, i32, i32) {
    %c4_i32 = arith.constant 4 : i32
    %0 = arith.muli %arg1, %c4_i32 : i32
    %c4_i32_0 = arith.constant 4 : i32
    %1 = arith.addi %0, %c4_i32_0 : i32
    %c0_i32 = arith.constant 0 : i32
    %c0_i32_1 = arith.constant 0 : i32
    %c0_i32_2 = arith.constant 0 : i32
    return %arg0, %1, %c0_i32, %c0_i32_1 : i32, i32, i32, i32
  }
  func.func @transform_2(%arg0: i32, %arg1: i32) -> (i32, i32, i32) {
    %c0_i32 = arith.constant 0 : i32
    %c0_i32_0 = arith.constant 0 : i32
    %c0_i32_1 = arith.constant 0 : i32
    %c0_i32_2 = arith.constant 0 : i32
    return %c0_i32, %c0_i32_0, %c0_i32_1 : i32, i32, i32
  }
  func.func @transform_3(%arg0: i32, %arg1: i32) -> (i32, i32) {
    %c0_i32 = arith.constant 0 : i32
    %c0_i32_0 = arith.constant 0 : i32
    %c0_i32_1 = arith.constant 0 : i32
    return %c0_i32, %c0_i32_0 : i32, i32
  }
  func.func @transform_4(%arg0: i32, %arg1: i32) -> (i32, i32) {
    %c2_i32 = arith.constant 2 : i32
    %0 = arith.muli %arg0, %c2_i32 : i32
    %1 = arith.addi %0, %arg1 : i32
    %c0_i32 = arith.constant 0 : i32
    %c0_i32_0 = arith.constant 0 : i32
    return %1, %c0_i32 : i32, i32
  }
}

module attributes {stable_mosaic.version = 11 : i64} {
  func.func @_mlp_kernel(%arg0: i32, %arg1: memref<256x8xbf16, #tpu.memory_space<vmem>>, %arg2: memref<8x256xbf16, #tpu.memory_space<vmem>>, %arg3: memref<1x256xf32, #tpu.memory_space<vmem>>, %arg4: memref<256x128xbf16, #tpu.memory_space<vmem>>, %arg5: memref<1x128xf32, #tpu.memory_space<vmem>>, %arg6: memref<256x128xf32, #tpu.memory_space<vmem>>) attributes {dimension_semantics = [#tpu.dimension_semantics<parallel>], iteration_bounds = array<i64: 2>, scalar_prefetch = 0 : i64, scratch_operands = 0 : i64, tpu.core_type = #tpu.core_type<tc>, window_params = [{transform_indices = @transform_0, window_bounds = array<i64: 256, 8>}, {pipeline_mode = #tpu.pipeline_mode<synchronous>, transform_indices = @transform_1, window_bounds = array<i64: 8, 256>}, {pipeline_mode = #tpu.pipeline_mode<synchronous>, transform_indices = @transform_2, window_bounds = array<i64: 1, 256>}, {pipeline_mode = #tpu.pipeline_mode<synchronous>, transform_indices = @transform_3, window_bounds = array<i64: 256, 128>}, {pipeline_mode = #tpu.pipeline_mode<synchronous>, transform_indices = @transform_4, window_bounds = array<i64: 1, 128>}, {transform_indices = @transform_5, window_bounds = array<i64: 256, 128>}]} {
    %c0 = arith.constant 0 : index
    %c0_0 = arith.constant 0 : index
    %0 = vector.load %arg1[%c0, %c0_0] : memref<256x8xbf16, #tpu.memory_space<vmem>>, vector<256x8xbf16>
    %c0_1 = arith.constant 0 : index
    %c0_2 = arith.constant 0 : index
    %1 = vector.load %arg2[%c0_1, %c0_2] : memref<8x256xbf16, #tpu.memory_space<vmem>>, vector<8x256xbf16>
    %c0_3 = arith.constant 0 : index
    %c0_4 = arith.constant 0 : index
    %2 = vector.load %arg3[%c0_3, %c0_4] : memref<1x256xf32, #tpu.memory_space<vmem>>, vector<1x256xf32>
    %cst = arith.constant dense<0.000000e+00> : vector<256x256xf32>
    %3 = tpu.matmul %0, %1, %cst {dimension_numbers = #tpu.dot_dimension_numbers<[1], [0], [0], [1], [0, 0, 1, 1], [], []>} : vector<256x8xbf16>, vector<8x256xbf16>, vector<256x256xf32> -> vector<256x256xf32>
    %4 = vector.broadcast %2 : vector<1x256xf32> to vector<256x256xf32>
    %5 = arith.addf %3, %4 : vector<256x256xf32>
    %cst_5 = arith.constant 0.000000e+00 : f32
    %6 = vector.broadcast %cst_5 : f32 to vector<256x256xf32>
    %7 = arith.maximumf %5, %6 : vector<256x256xf32>
    %8 = arith.truncf %7 : vector<256x256xf32> to vector<256x256xbf16>
    %c0_6 = arith.constant 0 : index
    %c0_7 = arith.constant 0 : index
    %9 = vector.load %arg4[%c0_6, %c0_7] : memref<256x128xbf16, #tpu.memory_space<vmem>>, vector<256x128xbf16>
    %c0_8 = arith.constant 0 : index
    %c0_9 = arith.constant 0 : index
    %10 = vector.load %arg5[%c0_8, %c0_9] : memref<1x128xf32, #tpu.memory_space<vmem>>, vector<1x128xf32>
    %cst_10 = arith.constant dense<0.000000e+00> : vector<256x128xf32>
    %11 = tpu.matmul %8, %9, %cst_10 {dimension_numbers = #tpu.dot_dimension_numbers<[1], [0], [0], [1], [0, 0, 1, 1], [], []>} : vector<256x256xbf16>, vector<256x128xbf16>, vector<256x128xf32> -> vector<256x128xf32>
    %12 = vector.broadcast %10 : vector<1x128xf32> to vector<256x128xf32>
    %13 = arith.addf %11, %12 : vector<256x128xf32>
    %c0_11 = arith.constant 0 : index
    %c0_12 = arith.constant 0 : index
    %14 = vector.load %arg6[%c0_11, %c0_12] : memref<256x128xf32, #tpu.memory_space<vmem>>, vector<256x128xf32>
    tpu.vector_store %arg6[%c0_11, %c0_12], %13 {strides = array<i32>} : memref<256x128xf32, #tpu.memory_space<vmem>>, vector<256x128xf32>,
    return
  }
  func.func @transform_0(%arg0: i32) -> (i32, i32) {
    %c0_i32 = arith.constant 0 : i32
    %c0_i32_0 = arith.constant 0 : i32
    return %arg0, %c0_i32 : i32, i32
  }
  func.func @transform_1(%arg0: i32) -> (i32, i32) {
    %c0_i32 = arith.constant 0 : i32
    %c0_i32_0 = arith.constant 0 : i32
    %c0_i32_1 = arith.constant 0 : i32
    return %c0_i32, %c0_i32_0 : i32, i32
  }
  func.func @transform_2(%arg0: i32) -> (i32, i32) {
    %c0_i32 = arith.constant 0 : i32
    %c0_i32_0 = arith.constant 0 : i32
    %c0_i32_1 = arith.constant 0 : i32
    return %c0_i32, %c0_i32_0 : i32, i32
  }
  func.func @transform_3(%arg0: i32) -> (i32, i32) {
    %c0_i32 = arith.constant 0 : i32
    %c0_i32_0 = arith.constant 0 : i32
    %c0_i32_1 = arith.constant 0 : i32
    return %c0_i32, %c0_i32_0 : i32, i32
  }
  func.func @transform_4(%arg0: i32) -> (i32, i32) {
    %c0_i32 = arith.constant 0 : i32
    %c0_i32_0 = arith.constant 0 : i32
    %c0_i32_1 = arith.constant 0 : i32
    return %c0_i32, %c0_i32_0 : i32, i32
  }
  func.func @transform_5(%arg0: i32) -> (i32, i32) {
    %c0_i32 = arith.constant 0 : i32
    %c0_i32_0 = arith.constant 0 : i32
    return %arg0, %c0_i32 : i32, i32
  }
}

</mosaic_0001>

<llo_original>
// kernel: dcn_sep_head_forward.6
$region0: #{dcn_sep_head_forward.6}
  #allocation0 [shape = 'u32[]', space=smem, size = 0x4, offset = 0x4, fixed_abs, tag = 'smem constant byte address 0x4 - core index']
  #allocation1 [shape = 'u32[72,128]{1,0:T(1,128)}', space=vmem, size = 0x9000, scoped, tag = 'internal scratch']
  %s0 = inlined_call_operand.vmem [shape: bf16[512,8], index: 0, kind: input, shape index: {}]
  %s1 = inlined_call_operand.vmem [shape: bf16[8,256], index: 1, kind: input, shape index: {}]
  %s2 = inlined_call_operand.vmem [shape: f32[1,256], index: 2, kind: input, shape index: {}]
  %s3 = inlined_call_operand.vmem [shape: f32[512,256], index: 3, kind: output, shape index: {}]
  %s4 = sld [smem:[#allocation0]]
  $region45: #{dcn_sep_head_forward.6} parent=0
    _
  %s6 = ssub.s32 1, %s4
  %s7 = scalar_select 0, %s6, %s4
  loop: start=0, step=1, limit=4
  $region2: #{dcn_sep_head_forward.6} parent=0 // loop_pre_header
    _
  $region3: #{dcn_sep_head_forward.6} parent=0 // loop_header
    %s9 = sphi 0, %s13
    %p10 = scmp.ge.s32.totalorder %s9, 4
    %s19 = sphi 0, %s21
    %s22 = sphi 0, %s19
    %s23 = sphi 0, %s22
    %s39 = sphi 0, %s23
    %s43 = sphi 0, %s43
    %s45 = sphi 0, %s43
    %s46 = sphi 0, %s45
    %s60 = sphi 0, %s46
    %s64 = sphi 0, %s64
    %s66 = sphi 0, %s64
    %s67 = sphi 0, %s66
    %s81 = sphi 0, %s67
    %s87 = sphi 0, %s89
    %s90 = sphi 0, %s87
    %s91 = sphi 0, %s90
    %s107 = sphi 0, %s91
  $region4: #{dcn_sep_head_forward.6} parent=0 // loop_header_branch
    %12 = sbr.rel (%p10) target = $region8
  $region5: #{dcn_sep_head_forward.6} parent=0 // loop_body
    %s14 = ssub.s32 %s9, 1
    %s15 = ssub.s32 %s9, 2
    %s16 = sadd.s32 %s9, 1
    %s17 = ssub.s32 %s9, %s16
    %p18 = scmp.eq.s32.totalorder %s17, 0
    %s20 = sadd.s32 %s19, 1
    %s21 = scalar_select %p18, %s19, %s20
    %p24 = pneg %p18
    %p25 = scmp.eq.s32.totalorder %s9, 1
    %p26 = por %p24, %p25
    %p27 = scmp.ne.s32.totalorder %s19, %s22
    %p28 = scmp.eq.s32.totalorder %s9, 0
    %p29 = por %p27, %p28
    %p30 = scmp.ne.s32.totalorder %s19, %s22
    %p31 = scmp.eq.s32.totalorder %s14, 1
    %p32 = por %p30, %p31
    %p33 = scmp.ne.s32.totalorder %s22, %s23
    %p34 = scmp.eq.s32.totalorder %s14, 0
    %p35 = por %p33, %p34
    %p36 = scmp.ne.s32.totalorder %s22, %s23
    %p37 = scmp.eq.s32.totalorder %s15, 1
    %p38 = por %p36, %p37
    %p40 = scmp.ne.s32.totalorder %s23, %s39
    %p41 = scmp.eq.s32.totalorder %s15, 0
    %p42 = por %p40, %p41
    %s44 = sadd.s32 %s43, 1
    %p47 = scmp.eq.s32.totalorder %s9, 1
    %p48 = scmp.ne.s32.totalorder %s43, %s45
    %p49 = scmp.eq.s32.totalorder %s9, 0
    %p50 = por %p48, %p49
    %p51 = scmp.ne.s32.totalorder %s43, %s45
    %p52 = scmp.eq.s32.totalorder %s14, 1
    %p53 = por %p51, %p52
    %p54 = scmp.ne.s32.totalorder %s45, %s46
    %p55 = scmp.eq.s32.totalorder %s14, 0
    %p56 = por %p54, %p55
    %p57 = scmp.ne.s32.totalorder %s45, %s46
    %p58 = scmp.eq.s32.totalorder %s15, 1
    %p59 = por %p57, %p58
    %p61 = scmp.ne.s32.totalorder %s46, %s60
    %p62 = scmp.eq.s32.totalorder %s15, 0
    %p63 = por %p61, %p62
    %s65 = sadd.s32 %s64, 1
    %p68 = scmp.eq.s32.totalorder %s9, 1
    %p69 = scmp.ne.s32.totalorder %s64, %s66
    %p70 = scmp.eq.s32.totalorder %s9, 0
    %p71 = por %p69, %p70
    %p72 = scmp.ne.s32.totalorder %s64, %s66
    %p73 = scmp.eq.s32.totalorder %s14, 1
    %p74 = por %p72, %p73
    %p75 = scmp.ne.s32.totalorder %s66, %s67
    %p76 = scmp.eq.s32.totalorder %s14, 0
    %p77 = por %p75, %p76
    %p78 = scmp.ne.s32.totalorder %s66, %s67
    %p79 = scmp.eq.s32.totalorder %s15, 1
    %p80 = por %p78, %p79
    %p82 = scmp.ne.s32.totalorder %s67, %s81
    %p83 = scmp.eq.s32.totalorder %s15, 0
    %p84 = por %p82, %p83
    %s85 = ssub.s32 %s9, %s16
    %p86 = scmp.eq.s32.totalorder %s85, 0
    %s88 = sadd.s32 %s87, 1
    %s89 = scalar_select %p86, %s87, %s88
    %p92 = pneg %p86
    %p93 = scmp.eq.s32.totalorder %s9, 1
    %p94 = por %p92, %p93
    %p95 = scmp.ne.s32.totalorder %s87, %s90
    %p96 = scmp.eq.s32.totalorder %s9, 0
    %p97 = por %p95, %p96
    %p98 = scmp.ne.s32.totalorder %s87, %s90
    %p99 = scmp.eq.s32.totalorder %s14, 1
    %p100 = por %p98, %p99
    %p101 = scmp.ne.s32.totalorder %s90, %s91
    %p102 = scmp.eq.s32.totalorder %s14, 0
    %p103 = por %p101, %p102
    %p104 = scmp.ne.s32.totalorder %s90, %s91
    %p105 = scmp.eq.s32.totalorder %s15, 1
    %p106 = por %p104, %p105
    %p108 = scmp.ne.s32.totalorder %s91, %s107
    %p109 = scmp.eq.s32.totalorder %s15, 0
    %p110 = por %p108, %p109
    %p111 = scmp.le.s32.totalorder 1, %s9
    %p112 = scmp.lt.s32.totalorder %s9, 3
    %p113 = pnand %p111, %p112
    %p114 = pneg %p113
    // Predicated region
    $region9: #{dcn_sep_head_forward.6} parent=5 // pred_check
      _
    $region10: #{dcn_sep_head_forward.6} parent=5 // pred_check_branch
      %116 = sbr.rel (%p113) target = $region12
    $region11: #{dcn_sep_head_forward.6} parent=5 // pred_region
      %s117 = ssub.s32 %s9, 1
      // Predicated region
      $region13: #{dcn_sep_head_forward.6} parent=11 // pred_check
        %p118 = pneg %p56
      $region14: #{dcn_sep_head_forward.6} parent=11 // pred_check_branch
        %120 = sbr.rel (%p118) target = $region16
      $region15: #{dcn_sep_head_forward.6} parent=11 // pred_region
        _
      $region16: #{dcn_sep_head_forward.6} parent=11 // pred_fallthru
        _
      // Predicated region
      $region17: #{dcn_sep_head_forward.6} parent=11 // pred_check
        %p121 = pneg %p77
      $region18: #{dcn_sep_head_forward.6} parent=11 // pred_check_branch
        %123 = sbr.rel (%p121) target = $region20
      $region19: #{dcn_sep_head_forward.6} parent=11 // pred_region
        _
      $region20: #{dcn_sep_head_forward.6} parent=11 // pred_fallthru
        _
    $region12: #{dcn_sep_head_forward.6} parent=5 // pred_fallthru
      _
    %p124 = scmp.lt.s32.totalorder %s9, 2
    // Predicated region
    $region21: #{dcn_sep_head_forward.6} parent=5 // pred_check
      %p125 = pneg %p124
    $region22: #{dcn_sep_head_forward.6} parent=5 // pred_check_branch
      %127 = sbr.rel (%p125) target = $region24
    $region23: #{dcn_sep_head_forward.6} parent=5 // pred_region
      // Predicated region
      $region25: #{dcn_sep_head_forward.6} parent=23 // pred_check
        %p128 = pneg %p29
      $region26: #{dcn_sep_head_forward.6} parent=23 // pred_check_branch
        %130 = sbr.rel (%p128) target = $region28
      $region27: #{dcn_sep_head_forward.6} parent=23 // pred_region
        %s131 = smul.u32 32, %s9
        %p132 = scmp.lt.s32.totalorder %s131, 63
        %s133 = scalar_select %p132, %s131, 63
        %s134 = smul.addr %s133, 4
        %s135 = scalar_lea.vmem %s0, %s134
        %s136 = smul.u32 32, %s9
      $region28: #{dcn_sep_head_forward.6} parent=23 // pred_fallthru
        _
    $region24: #{dcn_sep_head_forward.6} parent=5 // pred_fallthru
      _
    %p137 = scmp.le.s32.totalorder 1, %s9
    %p138 = scmp.lt.s32.totalorder %s9, 3
    %p139 = pnand %p137, %p138
    %p140 = pneg %p139
    // Predicated region
    $region29: #{dcn_sep_head_forward.6} parent=5 // pred_check
      _
    $region30: #{dcn_sep_head_forward.6} parent=5 // pred_check_branch
      %142 = sbr.rel (%p139) target = $region32
    $region31: #{dcn_sep_head_forward.6} parent=5 // pred_region
      %s143 = ssub.s32 %s9, 1
      %s144 = smul.u32 32, %s14
      %p145 = scmp.lt.s32.totalorder %s144, 63
      %s146 = scalar_select %p145, %s144, 63
      %s147 = smul.addr %s146, 4
      %s148 = scalar_lea.vmem %s0, %s147
      %p149 = pneg %p35
      %p150 = pneg %p32
      %p151 = pneg %p56
      %p152 = pneg %p53
      %p153 = pneg %p77
      %p154 = pneg %p74
      %p155 = pneg %p103
      %p156 = pneg %p100
      %s157 = smul.u32 32, %s14
      %p158 = scmp.lt.s32.totalorder %s157, 63
      %s159 = scalar_select %p158, %s157, 63
      %s160 = smul.addr %s159, 2
      %s161 = smul.addr %s160, 8
      %s162 = scalar_lea.vmem %s3, %s161
      %s163 = smul.u32 32, %s14
      %p164 = scmp.lt.s32.totalorder %s163, 63
      %s165 = scalar_select %p164, %s163, 63
      %s166 = smul.addr %s165, 4
      %s167 = scalar_lea.vmem %s0, %s166
      %s168 = smul.u32 32, %s14
      %s169 = smul.u32 32, %s14
      %p170 = scmp.lt.s32.totalorder %s169, 63
      %s171 = scalar_select %p170, %s169, 63
      %s172 = smul.addr %s171, 2
      %s173 = smul.addr %s172, 8
      %s174 = scalar_lea.vmem %s3, %s173
      %s175 = smul.u32 32, %s14
      %v177 = vld [vmem:[%s167] sm:$0xf]
      %v178 = vld [vmem:[%s167 + $0x4] sm:$0xf]
      %v179 = vld [vmem:[%s167 + $0x8] sm:$0xf]
      %v180 = vld [vmem:[%s167 + $0xc] sm:$0xf]
      %v181 = vld [vmem:[%s167 + $0x10] sm:$0xf]
      %v182 = vld [vmem:[%s167 + $0x14] sm:$0xf]
      %v183 = vld [vmem:[%s167 + $0x18] sm:$0xf]
      %v184 = vld [vmem:[%s167 + $0x1c] sm:$0xf]
      %v185 = vld [vmem:[%s167 + $0x20] sm:$0xf]
      %v186 = vld [vmem:[%s167 + $0x24] sm:$0xf]
      %v187 = vld [vmem:[%s167 + $0x28] sm:$0xf]
      %v188 = vld [vmem:[%s167 + $0x2c] sm:$0xf]
      %v189 = vld [vmem:[%s167 + $0x30] sm:$0xf]
      %v190 = vld [vmem:[%s167 + $0x34] sm:$0xf]
      %v191 = vld [vmem:[%s167 + $0x38] sm:$0xf]
      %v192 = vld [vmem:[%s167 + $0x3c] sm:$0xf]
      %v193 = vld [vmem:[%s167 + $0x40] sm:$0xf]
      %v194 = vld [vmem:[%s167 + $0x44] sm:$0xf]
      %v195 = vld [vmem:[%s167 + $0x48] sm:$0xf]
      %v196 = vld [vmem:[%s167 + $0x4c] sm:$0xf]
      %v197 = vld [vmem:[%s167 + $0x50] sm:$0xf]
      %v198 = vld [vmem:[%s167 + $0x54] sm:$0xf]
      %v199 = vld [vmem:[%s167 + $0x58] sm:$0xf]
      %v200 = vld [vmem:[%s167 + $0x5c] sm:$0xf]
      %v201 = vld [vmem:[%s167 + $0x60] sm:$0xf]
      %v202 = vld [vmem:[%s167 + $0x64] sm:$0xf]
      %v203 = vld [vmem:[%s167 + $0x68] sm:$0xf]
      %v204 = vld [vmem:[%s167 + $0x6c] sm:$0xf]
      %v205 = vld [vmem:[%s167 + $0x70] sm:$0xf]
      %v206 = vld [vmem:[%s167 + $0x74] sm:$0xf]
      %v207 = vld [vmem:[%s167 + $0x78] sm:$0xf]
      %v208 = vld [vmem:[%s167 + $0x7c] sm:$0xf]
      %v209 = vld [vmem:[%s1] sm:$0xff]
      %v210 = vld [vmem:[%s2] sm:$0x3]
      %v212 = vperm.slane %v210, 0
      %v213 = vperm.slane %v210, 1
      %v248 = vunpack.c.l.b16 %v177
      %v249 = vunpack.c.l.b16 %v178
      %v250 = vunpack.c.l.b16 %v179
      %v251 = vunpack.c.l.b16 %v180
      %v252 = vunpack.c.l.b16 %v181
      %v253 = vunpack.c.l.b16 %v182
      %v254 = vunpack.c.l.b16 %v183
      %v255 = vunpack.c.l.b16 %v184
      %v256 = vunpack.c.l.b16 %v185
      %v257 = vunpack.c.l.b16 %v186
      %v258 = vunpack.c.l.b16 %v187
      %v259 = vunpack.c.l.b16 %v188
      %v260 = vunpack.c.l.b16 %v189
      %v261 = vunpack.c.l.b16 %v190
      %v262 = vunpack.c.l.b16 %v191
      %v263 = vunpack.c.l.b16 %v192
      %v264 = vunpack.c.l.b16 %v193
      %v265 = vunpack.c.l.b16 %v194
      %v266 = vunpack.c.l.b16 %v195
      %v267 = vunpack.c.l.b16 %v196
      %v268 = vunpack.c.l.b16 %v197
      %v269 = vunpack.c.l.b16 %v198
      %v270 = vunpack.c.l.b16 %v199
      %v271 = vunpack.c.l.b16 %v200
      %v272 = vunpack.c.l.b16 %v201
      %v273 = vunpack.c.l.b16 %v202
      %v274 = vunpack.c.l.b16 %v203
      %v275 = vunpack.c.l.b16 %v204
      %v276 = vunpack.c.l.b16 %v205
      %v277 = vunpack.c.l.b16 %v206
      %v278 = vunpack.c.l.b16 %v207
      %v279 = vunpack.c.l.b16 %v208
      %v280 = vpack.c.b16 %v249, %v248
      %v281 = vpack.c.b16 %v251, %v250
      %v282 = vpack.c.b16 %v253, %v252
      %v283 = vpack.c.b16 %v255, %v254
      %v284 = vpack.c.b16 %v257, %v256
      %v285 = vpack.c.b16 %v259, %v258
      %v286 = vpack.c.b16 %v261, %v260
      %v287 = vpack.c.b16 %v263, %v262
      %v288 = vpack.c.b16 %v265, %v264
      %v289 = vpack.c.b16 %v267, %v266
      %v290 = vpack.c.b16 %v269, %v268
      %v291 = vpack.c.b16 %v271, %v270
      %v292 = vpack.c.b16 %v273, %v272
      %v293 = vpack.c.b16 %v275, %v274
      %v294 = vpack.c.b16 %v277, %v276
      %v295 = vpack.c.b16 %v279, %v278
      %v297 = vunpack.c.l.b16 %v209
      %v298 = vunpack.c.h.b16 %v209
      %v299 = vpack.c.b16 %v297, %v297
      %v300 = vpack.c.b16 %v298, %v298
      %vm301 = vcmask 64512
      %v303 = vsel %vm301, %v280, 0
      %v306 = vsel %vm301, %v281, 0
      %v309 = vsel %vm301, %v282, 0
      %v312 = vsel %vm301, %v283, 0
      %v315 = vsel %vm301, %v284, 0
      %v318 = vsel %vm301, %v285, 0
      %v321 = vsel %vm301, %v286, 0
      %v324 = vsel %vm301, %v287, 0
      %v327 = vsel %vm301, %v288, 0
      %v330 = vsel %vm301, %v289, 0
      %v333 = vsel %vm301, %v290, 0
      %v336 = vsel %vm301, %v291, 0
      %v339 = vsel %vm301, %v292, 0
      %v342 = vsel %vm301, %v293, 0
      %v345 = vsel %vm301, %v294, 0
      %v348 = vsel %vm301, %v295, 0
      %vm350 = vcmask 1043456
      %v352 = vsel %vm350, %v299, 0
      %v355 = vsel %vm350, %v300, 0
      %357 = vmatpush.bf16.msra.mxu0 0
      %358 = vmatpush.bf16.msra.mxu0 0
      %359 = vmatpush.bf16.msra.mxu0 0
      %360 = vmatpush.bf16.msra.mxu0 0
      %361 = vmatpush.bf16.msra.mxu0 0
      %362 = vmatpush.bf16.msra.mxu0 0
      %363 = vmatpush.bf16.msra.mxu0 0
      %364 = vmatpush.bf16.msra.mxu0 %v352
      %365 = vmatmul.bf16.gmra.mxu0 %v303
      %v366 = vpop.f32.mrf.mxu0
      %v367 = vadd.f32 %v212, %v366
      %v368 = vpop.f32.mrf.mxu0
      %v369 = vadd.f32 %v212, %v368
      %370 = vmatmul.bf16.gmra.mxu0 %v306
      %v371 = vpop.f32.mrf.mxu0
      %v372 = vadd.f32 %v212, %v371
      %v373 = vpop.f32.mrf.mxu0
      %v374 = vadd.f32 %v212, %v373
      %375 = vmatmul.bf16.gmra.mxu0 %v309
      %v376 = vpop.f32.mrf.mxu0
      %v377 = vadd.f32 %v212, %v376
      %v378 = vpop.f32.mrf.mxu0
      %v379 = vadd.f32 %v212, %v378
      %380 = vmatmul.bf16.gmra.mxu0 %v312
      %v381 = vpop.f32.mrf.mxu0
      %v382 = vadd.f32 %v212, %v381
      %v383 = vpop.f32.mrf.mxu0
      %v384 = vadd.f32 %v212, %v383
      %385 = vmatmul.bf16.gmra.mxu0 %v315
      %v386 = vpop.f32.mrf.mxu0
      %v387 = vadd.f32 %v212, %v386
      %v388 = vpop.f32.mrf.mxu0
      %v389 = vadd.f32 %v212, %v388
      %390 = vmatmul.bf16.gmra.mxu0 %v318
      %v391 = vpop.f32.mrf.mxu0
      %v392 = vadd.f32 %v212, %v391
      %v393 = vpop.f32.mrf.mxu0
      %v394 = vadd.f32 %v212, %v393
      %395 = vmatmul.bf16.gmra.mxu0 %v321
      %v396 = vpop.f32.mrf.mxu0
      %v397 = vadd.f32 %v212, %v396
      %v398 = vpop.f32.mrf.mxu0
      %v399 = vadd.f32 %v212, %v398
      %400 = vmatmul.bf16.gmra.mxu0 %v324
      %v401 = vpop.f32.mrf.mxu0
      %v402 = vadd.f32 %v212, %v401
      %v403 = vpop.f32.mrf.mxu0
      %v404 = vadd.f32 %v212, %v403
      %405 = vmatmul.bf16.gmra.mxu0 %v327
      %v406 = vpop.f32.mrf.mxu0
      %v407 = vadd.f32 %v212, %v406
      %v408 = vpop.f32.mrf.mxu0
      %v409 = vadd.f32 %v212, %v408
      %410 = vmatmul.bf16.gmra.mxu0 %v330
      %v411 = vpop.f32.mrf.mxu0
      %v412 = vadd.f32 %v212, %v411
      %v413 = vpop.f32.mrf.mxu0
      %v414 = vadd.f32 %v212, %v413
      %415 = vmatmul.bf16.gmra.mxu0 %v333
      %v416 = vpop.f32.mrf.mxu0
      %v417 = vadd.f32 %v212, %v416
      %v418 = vpop.f32.mrf.mxu0
      %v419 = vadd.f32 %v212, %v418
      %420 = vmatmul.bf16.gmra.mxu0 %v336
      %v421 = vpop.f32.mrf.mxu0
      %v422 = vadd.f32 %v212, %v421
      %v423 = vpop.f32.mrf.mxu0
      %v424 = vadd.f32 %v212, %v423
      %425 = vmatmul.bf16.gmra.mxu0 %v339
      %v426 = vpop.f32.mrf.mxu0
      %v427 = vadd.f32 %v212, %v426
      %v428 = vpop.f32.mrf.mxu0
      %v429 = vadd.f32 %v212, %v428
      %430 = vmatmul.bf16.gmra.mxu0 %v342
      %v431 = vpop.f32.mrf.mxu0
      %v432 = vadd.f32 %v212, %v431
      %v433 = vpop.f32.mrf.mxu0
      %v434 = vadd.f32 %v212, %v433
      %435 = vmatmul.bf16.gmra.mxu0 %v345
      %v436 = vpop.f32.mrf.mxu0
      %v437 = vadd.f32 %v212, %v436
      %v438 = vpop.f32.mrf.mxu0
      %v439 = vadd.f32 %v212, %v438
      %440 = vmatmul.bf16.gmra.mxu0 %v348
      %v441 = vpop.f32.mrf.mxu0
      %v442 = vadd.f32 %v212, %v441
      %v443 = vpop.f32.mrf.mxu0
      %v444 = vadd.f32 %v212, %v443
      %445 = vdwg.mxu0
      %446 = vmatpush.bf16.msra.mxu0 0
      %447 = vmatpush.bf16.msra.mxu0 0
      %448 = vmatpush.bf16.msra.mxu0 0
      %449 = vmatpush.bf16.msra.mxu0 0
      %450 = vmatpush.bf16.msra.mxu0 0
      %451 = vmatpush.bf16.msra.mxu0 0
      %452 = vmatpush.bf16.msra.mxu0 0
      %453 = vmatpush.bf16.msra.mxu0 %v355
      %454 = vmatmul.bf16.gmra.mxu0 %v303
      %v455 = vpop.f32.mrf.mxu0
      %v456 = vadd.f32 %v213, %v455
      %v457 = vpop.f32.mrf.mxu0
      %v458 = vadd.f32 %v213, %v457
      %459 = vmatmul.bf16.gmra.mxu0 %v306
      %v460 = vpop.f32.mrf.mxu0
      %v461 = vadd.f32 %v213, %v460
      %v462 = vpop.f32.mrf.mxu0
      %v463 = vadd.f32 %v213, %v462
      %464 = vmatmul.bf16.gmra.mxu0 %v309
      %v465 = vpop.f32.mrf.mxu0
      %v466 = vadd.f32 %v213, %v465
      %v467 = vpop.f32.mrf.mxu0
      %v468 = vadd.f32 %v213, %v467
      %469 = vmatmul.bf16.gmra.mxu0 %v312
      %v470 = vpop.f32.mrf.mxu0
      %v471 = vadd.f32 %v213, %v470
      %v472 = vpop.f32.mrf.mxu0
      %v473 = vadd.f32 %v213, %v472
      %474 = vmatmul.bf16.gmra.mxu0 %v315
      %v475 = vpop.f32.mrf.mxu0
      %v476 = vadd.f32 %v213, %v475
      %v477 = vpop.f32.mrf.mxu0
      %v478 = vadd.f32 %v213, %v477
      %479 = vmatmul.bf16.gmra.mxu0 %v318
      %v480 = vpop.f32.mrf.mxu0
      %v481 = vadd.f32 %v213, %v480
      %v482 = vpop.f32.mrf.mxu0
      %v483 = vadd.f32 %v213, %v482
      %484 = vmatmul.bf16.gmra.mxu0 %v321
      %v485 = vpop.f32.mrf.mxu0
      %v486 = vadd.f32 %v213, %v485
      %v487 = vpop.f32.mrf.mxu0
      %v488 = vadd.f32 %v213, %v487
      %489 = vmatmul.bf16.gmra.mxu0 %v324
      %v490 = vpop.f32.mrf.mxu0
      %v491 = vadd.f32 %v213, %v490
      %v492 = vpop.f32.mrf.mxu0
      %v493 = vadd.f32 %v213, %v492
      %494 = vmatmul.bf16.gmra.mxu0 %v327
      %v495 = vpop.f32.mrf.mxu0
      %v496 = vadd.f32 %v213, %v495
      %v497 = vpop.f32.mrf.mxu0
      %v498 = vadd.f32 %v213, %v497
      %499 = vmatmul.bf16.gmra.mxu0 %v330
      %v500 = vpop.f32.mrf.mxu0
      %v501 = vadd.f32 %v213, %v500
      %v502 = vpop.f32.mrf.mxu0
      %v503 = vadd.f32 %v213, %v502
      %504 = vmatmul.bf16.gmra.mxu0 %v333
      %v505 = vpop.f32.mrf.mxu0
      %v506 = vadd.f32 %v213, %v505
      %v507 = vpop.f32.mrf.mxu0
      %v508 = vadd.f32 %v213, %v507
      %509 = vmatmul.bf16.gmra.mxu0 %v336
      %v510 = vpop.f32.mrf.mxu0
      %v511 = vadd.f32 %v213, %v510
      %v512 = vpop.f32.mrf.mxu0
      %v513 = vadd.f32 %v213, %v512
      %514 = vmatmul.bf16.gmra.mxu0 %v339
      %v515 = vpop.f32.mrf.mxu0
      %v516 = vadd.f32 %v213, %v515
      %v517 = vpop.f32.mrf.mxu0
      %v518 = vadd.f32 %v213, %v517
      %519 = vmatmul.bf16.gmra.mxu0 %v342
      %v520 = vpop.f32.mrf.mxu0
      %v521 = vadd.f32 %v213, %v520
      %v522 = vpop.f32.mrf.mxu0
      %v523 = vadd.f32 %v213, %v522
      %524 = vmatmul.bf16.gmra.mxu0 %v345
      %v525 = vpop.f32.mrf.mxu0
      %v526 = vadd.f32 %v213, %v525
      %v527 = vpop.f32.mrf.mxu0
      %v528 = vadd.f32 %v213, %v527
      %529 = vmatmul.bf16.gmra.mxu0 %v348
      %v530 = vpop.f32.mrf.mxu0
      %v531 = vadd.f32 %v213, %v530
      %v532 = vpop.f32.mrf.mxu0
      %v533 = vadd.f32 %v213, %v532
      %534 = vdwg.mxu0
      %535 = vst [vmem:[%s174] sm:$0xff] %v367
      %536 = vst [vmem:[%s174 + $0x8] sm:$0xff] %v456
      %537 = vst [vmem:[%s174 + $0x10] sm:$0xff] %v369
      %538 = vst [vmem:[%s174 + $0x18] sm:$0xff] %v458
      %539 = vst [vmem:[%s174 + $0x20] sm:$0xff] %v372
      %540 = vst [vmem:[%s174 + $0x28] sm:$0xff] %v461
      %541 = vst [vmem:[%s174 + $0x30] sm:$0xff] %v374
      %542 = vst [vmem:[%s174 + $0x38] sm:$0xff] %v463
      %543 = vst [vmem:[%s174 + $0x40] sm:$0xff] %v377
      %544 = vst [vmem:[%s174 + $0x48] sm:$0xff] %v466
      %545 = vst [vmem:[%s174 + $0x50] sm:$0xff] %v379
      %546 = vst [vmem:[%s174 + $0x58] sm:$0xff] %v468
      %547 = vst [vmem:[%s174 + $0x60] sm:$0xff] %v382
      %548 = vst [vmem:[%s174 + $0x68] sm:$0xff] %v471
      %549 = vst [vmem:[%s174 + $0x70] sm:$0xff] %v384
      %550 = vst [vmem:[%s174 + $0x78] sm:$0xff] %v473
      %551 = vst [vmem:[%s174 + $0x80] sm:$0xff] %v387
      %552 = vst [vmem:[%s174 + $0x88] sm:$0xff] %v476
      %553 = vst [vmem:[%s174 + $0x90] sm:$0xff] %v389
      %554 = vst [vmem:[%s174 + $0x98] sm:$0xff] %v478
      %555 = vst [vmem:[%s174 + $0xa0] sm:$0xff] %v392
      %556 = vst [vmem:[%s174 + $0xa8] sm:$0xff] %v481
      %557 = vst [vmem:[%s174 + $0xb0] sm:$0xff] %v394
      %558 = vst [vmem:[%s174 + $0xb8] sm:$0xff] %v483
      %559 = vst [vmem:[%s174 + $0xc0] sm:$0xff] %v397
      %560 = vst [vmem:[%s174 + $0xc8] sm:$0xff] %v486
      %561 = vst [vmem:[%s174 + $0xd0] sm:$0xff] %v399
      %562 = vst [vmem:[%s174 + $0xd8] sm:$0xff] %v488
      %563 = vst [vmem:[%s174 + $0xe0] sm:$0xff] %v402
      %564 = vst [vmem:[%s174 + $0xe8] sm:$0xff] %v491
      %565 = vst [vmem:[%s174 + $0xf0] sm:$0xff] %v404
      %566 = vst [vmem:[%s174 + $0xf8] sm:$0xff] %v493
      %567 = vst [vmem:[%s174 + $0x100] sm:$0xff] %v407
      %568 = vst [vmem:[%s174 + $0x108] sm:$0xff] %v496
      %569 = vst [vmem:[%s174 + $0x110] sm:$0xff] %v409
      %570 = vst [vmem:[%s174 + $0x118] sm:$0xff] %v498
      %571 = vst [vmem:[%s174 + $0x120] sm:$0xff] %v412
      %572 = vst [vmem:[%s174 + $0x128] sm:$0xff] %v501
      %573 = vst [vmem:[%s174 + $0x130] sm:$0xff] %v414
      %574 = vst [vmem:[%s174 + $0x138] sm:$0xff] %v503
      %575 = vst [vmem:[%s174 + $0x140] sm:$0xff] %v417
      %576 = vst [vmem:[%s174 + $0x148] sm:$0xff] %v506
      %577 = vst [vmem:[%s174 + $0x150] sm:$0xff] %v419
      %578 = vst [vmem:[%s174 + $0x158] sm:$0xff] %v508
      %579 = vst [vmem:[%s174 + $0x160] sm:$0xff] %v422
      %580 = vst [vmem:[%s174 + $0x168] sm:$0xff] %v511
      %581 = vst [vmem:[%s174 + $0x170] sm:$0xff] %v424
      %582 = vst [vmem:[%s174 + $0x178] sm:$0xff] %v513
      %583 = vst [vmem:[%s174 + $0x180] sm:$0xff] %v427
      %584 = vst [vmem:[%s174 + $0x188] sm:$0xff] %v516
      %585 = vst [vmem:[%s174 + $0x190] sm:$0xff] %v429
      %586 = vst [vmem:[%s174 + $0x198] sm:$0xff] %v518
      %587 = vst [vmem:[%s174 + $0x1a0] sm:$0xff] %v432
      %588 = vst [vmem:[%s174 + $0x1a8] sm:$0xff] %v521
      %589 = vst [vmem:[%s174 + $0x1b0] sm:$0xff] %v434
      %590 = vst [vmem:[%s174 + $0x1b8] sm:$0xff] %v523
      %591 = vst [vmem:[%s174 + $0x1c0] sm:$0xff] %v437
      %592 = vst [vmem:[%s174 + $0x1c8] sm:$0xff] %v526
      %593 = vst [vmem:[%s174 + $0x1d0] sm:$0xff] %v439
      %594 = vst [vmem:[%s174 + $0x1d8] sm:$0xff] %v528
      %595 = vst [vmem:[%s174 + $0x1e0] sm:$0xff] %v442
      %596 = vst [vmem:[%s174 + $0x1e8] sm:$0xff] %v531
      %597 = vst [vmem:[%s174 + $0x1f0] sm:$0xff] %v444
      %598 = vst [vmem:[%s174 + $0x1f8] sm:$0xff] %v533
      %s599 = smul.u32 32, %s14
      %p600 = scmp.lt.s32.totalorder %s599, 63
      %s601 = scalar_select %p600, %s599, 63
      %s602 = smul.addr %s601, 2
      %s603 = smul.addr %s602, 8
      %s604 = scalar_lea.vmem %s3, %s603
      // Predicated region
      $region33: #{dcn_sep_head_forward.6} parent=31 // pred_check
        %p605 = pneg %p100
      $region34: #{dcn_sep_head_forward.6} parent=31 // pred_check_branch
        %607 = sbr.rel (%p605) target = $region36
      $region35: #{dcn_sep_head_forward.6} parent=31 // pred_region
        %s608 = smul.u32 32, %s14
      $region36: #{dcn_sep_head_forward.6} parent=31 // pred_fallthru
        _
    $region32: #{dcn_sep_head_forward.6} parent=5 // pred_fallthru
      _
    %p609 = scmp.le.s32.totalorder 2, %s9
    // Predicated region
    $region37: #{dcn_sep_head_forward.6} parent=5 // pred_check
      %p610 = pneg %p609
    $region38: #{dcn_sep_head_forward.6} parent=5 // pred_check_branch
      %612 = sbr.rel (%p610) target = $region40
    $region39: #{dcn_sep_head_forward.6} parent=5 // pred_region
      %s613 = ssub.s32 %s9, 2
      // Predicated region
      $region41: #{dcn_sep_head_forward.6} parent=39 // pred_check
        %p614 = pneg %p106
      $region42: #{dcn_sep_head_forward.6} parent=39 // pred_check_branch
        %616 = sbr.rel (%p614) target = $region44
      $region43: #{dcn_sep_head_forward.6} parent=39 // pred_region
        %s617 = smul.u32 32, %s15
        %p618 = scmp.lt.s32.totalorder %s617, 63
        %s619 = scalar_select %p618, %s617, 63
        %s620 = smul.addr %s619, 2
        %s621 = smul.addr %s620, 8
        %s622 = scalar_lea.vmem %s3, %s621
      $region44: #{dcn_sep_head_forward.6} parent=39 // pred_fallthru
        _
    $region40: #{dcn_sep_head_forward.6} parent=5 // pred_fallthru
      _
  $region6: #{dcn_sep_head_forward.6} parent=0 // loop_footer
    %s13 = sadd.s32 1, %s9
  $region7: #{dcn_sep_head_forward.6} parent=0 // loop_footer_branch
    %8 = sbr.rel target = $region3
  $region8: #{dcn_sep_head_forward.6} parent=0 // loop_exit
    _

// kernel: dcn_sep_head_forward.7
$region0: #{dcn_sep_head_forward.7}
  #allocation0 [shape = 'u32[]', space=smem, size = 0x4, offset = 0x4, fixed_abs, tag = 'smem constant byte address 0x4 - core index']
  #allocation1 [shape = 'u32[72,128]{1,0:T(1,128)}', space=vmem, size = 0x9000, scoped, tag = 'internal scratch']
  %s0 = inlined_call_operand.vmem [shape: bf16[512,72], index: 0, kind: input, shape index: {}]
  %s1 = inlined_call_operand.vmem [shape: bf16[72,8], index: 1, kind: input, shape index: {}]
  %s2 = inlined_call_operand.vmem [shape: f32[1,8], index: 2, kind: input, shape index: {}]
  %s3 = inlined_call_operand.vmem [shape: bf16[512,8], index: 3, kind: output, shape index: {}]
  %s4 = sld [smem:[#allocation0]]
  $region45: #{dcn_sep_head_forward.7} parent=0
    _
  %s6 = ssub.s32 1, %s4
  %s7 = scalar_select 0, %s6, %s4
  loop: start=0, step=1, limit=4
  $region2: #{dcn_sep_head_forward.7} parent=0 // loop_pre_header
    _
  $region3: #{dcn_sep_head_forward.7} parent=0 // loop_header
    %s9 = sphi 0, %s13
    %p10 = scmp.ge.s32.totalorder %s9, 4
    %s19 = sphi 0, %s21
    %s22 = sphi 0, %s19
    %s23 = sphi 0, %s22
    %s39 = sphi 0, %s23
    %s43 = sphi 0, %s43
    %s45 = sphi 0, %s43
    %s46 = sphi 0, %s45
    %s60 = sphi 0, %s46
    %s64 = sphi 0, %s64
    %s66 = sphi 0, %s64
    %s67 = sphi 0, %s66
    %s81 = sphi 0, %s67
    %s87 = sphi 0, %s89
    %s90 = sphi 0, %s87
    %s91 = sphi 0, %s90
    %s107 = sphi 0, %s91
  $region4: #{dcn_sep_head_forward.7} parent=0 // loop_header_branch
    %12 = sbr.rel (%p10) target = $region8
  $region5: #{dcn_sep_head_forward.7} parent=0 // loop_body
    %s14 = ssub.s32 %s9, 1
    %s15 = ssub.s32 %s9, 2
    %s16 = sadd.s32 %s9, 1
    %s17 = ssub.s32 %s9, %s16
    %p18 = scmp.eq.s32.totalorder %s17, 0
    %s20 = sadd.s32 %s19, 1
    %s21 = scalar_select %p18, %s19, %s20
    %p24 = pneg %p18
    %p25 = scmp.eq.s32.totalorder %s9, 1
    %p26 = por %p24, %p25
    %p27 = scmp.ne.s32.totalorder %s19, %s22
    %p28 = scmp.eq.s32.totalorder %s9, 0
    %p29 = por %p27, %p28
    %p30 = scmp.ne.s32.totalorder %s19, %s22
    %p31 = scmp.eq.s32.totalorder %s14, 1
    %p32 = por %p30, %p31
    %p33 = scmp.ne.s32.totalorder %s22, %s23
    %p34 = scmp.eq.s32.totalorder %s14, 0
    %p35 = por %p33, %p34
    %p36 = scmp.ne.s32.totalorder %s22, %s23
    %p37 = scmp.eq.s32.totalorder %s15, 1
    %p38 = por %p36, %p37
    %p40 = scmp.ne.s32.totalorder %s23, %s39
    %p41 = scmp.eq.s32.totalorder %s15, 0
    %p42 = por %p40, %p41
    %s44 = sadd.s32 %s43, 1
    %p47 = scmp.eq.s32.totalorder %s9, 1
    %p48 = scmp.ne.s32.totalorder %s43, %s45
    %p49 = scmp.eq.s32.totalorder %s9, 0
    %p50 = por %p48, %p49
    %p51 = scmp.ne.s32.totalorder %s43, %s45
    %p52 = scmp.eq.s32.totalorder %s14, 1
    %p53 = por %p51, %p52
    %p54 = scmp.ne.s32.totalorder %s45, %s46
    %p55 = scmp.eq.s32.totalorder %s14, 0
    %p56 = por %p54, %p55
    %p57 = scmp.ne.s32.totalorder %s45, %s46
    %p58 = scmp.eq.s32.totalorder %s15, 1
    %p59 = por %p57, %p58
    %p61 = scmp.ne.s32.totalorder %s46, %s60
    %p62 = scmp.eq.s32.totalorder %s15, 0
    %p63 = por %p61, %p62
    %s65 = sadd.s32 %s64, 1
    %p68 = scmp.eq.s32.totalorder %s9, 1
    %p69 = scmp.ne.s32.totalorder %s64, %s66
    %p70 = scmp.eq.s32.totalorder %s9, 0
    %p71 = por %p69, %p70
    %p72 = scmp.ne.s32.totalorder %s64, %s66
    %p73 = scmp.eq.s32.totalorder %s14, 1
    %p74 = por %p72, %p73
    %p75 = scmp.ne.s32.totalorder %s66, %s67
    %p76 = scmp.eq.s32.totalorder %s14, 0
    %p77 = por %p75, %p76
    %p78 = scmp.ne.s32.totalorder %s66, %s67
    %p79 = scmp.eq.s32.totalorder %s15, 1
    %p80 = por %p78, %p79
    %p82 = scmp.ne.s32.totalorder %s67, %s81
    %p83 = scmp.eq.s32.totalorder %s15, 0
    %p84 = por %p82, %p83
    %s85 = ssub.s32 %s9, %s16
    %p86 = scmp.eq.s32.totalorder %s85, 0
    %s88 = sadd.s32 %s87, 1
    %s89 = scalar_select %p86, %s87, %s88
    %p92 = pneg %p86
    %p93 = scmp.eq.s32.totalorder %s9, 1
    %p94 = por %p92, %p93
    %p95 = scmp.ne.s32.totalorder %s87, %s90
    %p96 = scmp.eq.s32.totalorder %s9, 0
    %p97 = por %p95, %p96
    %p98 = scmp.ne.s32.totalorder %s87, %s90
    %p99 = scmp.eq.s32.totalorder %s14, 1
    %p100 = por %p98, %p99
    %p101 = scmp.ne.s32.totalorder %s90, %s91
    %p102 = scmp.eq.s32.totalorder %s14, 0
    %p103 = por %p101, %p102
    %p104 = scmp.ne.s32.totalorder %s90, %s91
    %p105 = scmp.eq.s32.totalorder %s15, 1
    %p106 = por %p104, %p105
    %p108 = scmp.ne.s32.totalorder %s91, %s107
    %p109 = scmp.eq.s32.totalorder %s15, 0
    %p110 = por %p108, %p109
    %p111 = scmp.le.s32.totalorder 1, %s9
    %p112 = scmp.lt.s32.totalorder %s9, 3
    %p113 = pnand %p111, %p112
    %p114 = pneg %p113
    // Predicated region
    $region9: #{dcn_sep_head_forward.7} parent=5 // pred_check
      _
    $region10: #{dcn_sep_head_forward.7} parent=5 // pred_check_branch
      %116 = sbr.rel (%p113) target = $region12
    $region11: #{dcn_sep_head_forward.7} parent=5 // pred_region
      %s117 = ssub.s32 %s9, 1
      // Predicated region
      $region13: #{dcn_sep_head_forward.7} parent=11 // pred_check
        %p118 = pneg %p56
      $region14: #{dcn_sep_head_forward.7} parent=11 // pred_check_branch
        %120 = sbr.rel (%p118) target = $region16
      $region15: #{dcn_sep_head_forward.7} parent=11 // pred_region
        _
      $region16: #{dcn_sep_head_forward.7} parent=11 // pred_fallthru
        _
      // Predicated region
      $region17: #{dcn_sep_head_forward.7} parent=11 // pred_check
        %p121 = pneg %p77
      $region18: #{dcn_sep_head_forward.7} parent=11 // pred_check_branch
        %123 = sbr.rel (%p121) target = $region20
      $region19: #{dcn_sep_head_forward.7} parent=11 // pred_region
        _
      $region20: #{dcn_sep_head_forward.7} parent=11 // pred_fallthru
        _
    $region12: #{dcn_sep_head_forward.7} parent=5 // pred_fallthru
      _
    %p124 = scmp.lt.s32.totalorder %s9, 2
    // Predicated region
    $region21: #{dcn_sep_head_forward.7} parent=5 // pred_check
      %p125 = pneg %p124
    $region22: #{dcn_sep_head_forward.7} parent=5 // pred_check_branch
      %127 = sbr.rel (%p125) target = $region24
    $region23: #{dcn_sep_head_forward.7} parent=5 // pred_region
      // Predicated region
      $region25: #{dcn_sep_head_forward.7} parent=23 // pred_check
        %p128 = pneg %p29
      $region26: #{dcn_sep_head_forward.7} parent=23 // pred_check_branch
        %130 = sbr.rel (%p128) target = $region28
      $region27: #{dcn_sep_head_forward.7} parent=23 // pred_region
        %s131 = smul.u32 32, %s9
        %p132 = scmp.lt.s32.totalorder %s131, 63
        %s133 = scalar_select %p132, %s131, 63
        %s134 = smul.addr %s133, 4
        %s135 = scalar_lea.vmem %s0, %s134
        %s136 = smul.u32 32, %s9
      $region28: #{dcn_sep_head_forward.7} parent=23 // pred_fallthru
        _
    $region24: #{dcn_sep_head_forward.7} parent=5 // pred_fallthru
      _
    %p137 = scmp.le.s32.totalorder 1, %s9
    %p138 = scmp.lt.s32.totalorder %s9, 3
    %p139 = pnand %p137, %p138
    %p140 = pneg %p139
    // Predicated region
    $region29: #{dcn_sep_head_forward.7} parent=5 // pred_check
      _
    $region30: #{dcn_sep_head_forward.7} parent=5 // pred_check_branch
      %142 = sbr.rel (%p139) target = $region32
    $region31: #{dcn_sep_head_forward.7} parent=5 // pred_region
      %s143 = ssub.s32 %s9, 1
      %s144 = smul.u32 32, %s14
      %p145 = scmp.lt.s32.totalorder %s144, 63
      %s146 = scalar_select %p145, %s144, 63
      %s147 = smul.addr %s146, 4
      %s148 = scalar_lea.vmem %s0, %s147
      %p149 = pneg %p35
      %p150 = pneg %p32
      %p151 = pneg %p56
      %p152 = pneg %p53
      %p153 = pneg %p77
      %p154 = pneg %p74
      %p155 = pneg %p103
      %p156 = pneg %p100
      %s157 = smul.u32 32, %s14
      %p158 = scmp.lt.s32.totalorder %s157, 63
      %s159 = scalar_select %p158, %s157, 63
      %s160 = smul.addr %s159, 4
      %s161 = scalar_lea.vmem %s3, %s160
      %s162 = smul.u32 32, %s14
      %p163 = scmp.lt.s32.totalorder %s162, 63
      %s164 = scalar_select %p163, %s162, 63
      %s165 = smul.addr %s164, 4
      %s166 = scalar_lea.vmem %s0, %s165
      %s167 = smul.u32 32, %s14
      %s168 = smul.u32 32, %s14
      %p169 = scmp.lt.s32.totalorder %s168, 63
      %s170 = scalar_select %p169, %s168, 63
      %s171 = smul.addr %s170, 4
      %s172 = scalar_lea.vmem %s3, %s171
      %s173 = smul.u32 32, %s14
      %v175 = vld [vmem:[%s166] sm:$0xf]
      %v176 = vld [vmem:[%s166 + $0x4] sm:$0xf]
      %v177 = vld [vmem:[%s166 + $0x8] sm:$0xf]
      %v178 = vld [vmem:[%s166 + $0xc] sm:$0xf]
      %v179 = vld [vmem:[%s166 + $0x10] sm:$0xf]
      %v180 = vld [vmem:[%s166 + $0x14] sm:$0xf]
      %v181 = vld [vmem:[%s166 + $0x18] sm:$0xf]
      %v182 = vld [vmem:[%s166 + $0x1c] sm:$0xf]
      %v183 = vld [vmem:[%s166 + $0x20] sm:$0xf]
      %v184 = vld [vmem:[%s166 + $0x24] sm:$0xf]
      %v185 = vld [vmem:[%s166 + $0x28] sm:$0xf]
      %v186 = vld [vmem:[%s166 + $0x2c] sm:$0xf]
      %v187 = vld [vmem:[%s166 + $0x30] sm:$0xf]
      %v188 = vld [vmem:[%s166 + $0x34] sm:$0xf]
      %v189 = vld [vmem:[%s166 + $0x38] sm:$0xf]
      %v190 = vld [vmem:[%s166 + $0x3c] sm:$0xf]
      %v191 = vld [vmem:[%s166 + $0x40] sm:$0xf]
      %v192 = vld [vmem:[%s166 + $0x44] sm:$0xf]
      %v193 = vld [vmem:[%s166 + $0x48] sm:$0xf]
      %v194 = vld [vmem:[%s166 + $0x4c] sm:$0xf]
      %v195 = vld [vmem:[%s166 + $0x50] sm:$0xf]
      %v196 = vld [vmem:[%s166 + $0x54] sm:$0xf]
      %v197 = vld [vmem:[%s166 + $0x58] sm:$0xf]
      %v198 = vld [vmem:[%s166 + $0x5c] sm:$0xf]
      %v199 = vld [vmem:[%s166 + $0x60] sm:$0xf]
      %v200 = vld [vmem:[%s166 + $0x64] sm:$0xf]
      %v201 = vld [vmem:[%s166 + $0x68] sm:$0xf]
      %v202 = vld [vmem:[%s166 + $0x6c] sm:$0xf]
      %v203 = vld [vmem:[%s166 + $0x70] sm:$0xf]
      %v204 = vld [vmem:[%s166 + $0x74] sm:$0xf]
      %v205 = vld [vmem:[%s166 + $0x78] sm:$0xf]
      %v206 = vld [vmem:[%s166 + $0x7c] sm:$0xf]
      %v207 = vld [vmem:[%s1] sm:$0xf]
      %v208 = vld [vmem:[%s1 + $0x4] sm:$0xf]
      %v209 = vld [vmem:[%s1 + $0x8] sm:$0xf]
      %v210 = vld [vmem:[%s1 + $0xc] sm:$0xf]
      %v211 = vld [vmem:[%s1 + $0x10] sm:$0xf]
      %v212 = vld [vmem:[%s1 + $0x14] sm:$0xf]
      %v213 = vld [vmem:[%s1 + $0x18] sm:$0xf]
      %v214 = vld [vmem:[%s1 + $0x1c] sm:$0xf]
      %v215 = vld [vmem:[%s1 + $0x20] sm:$0xf]
      %v216 = vld [vmem:[%s2] sm:$0x1]
      %v218 = vperm.slane %v216, 0
      %v252 = vunpack.c.l.b16 %v175
      %v253 = vunpack.c.l.b16 %v176
      %v254 = vunpack.c.l.b16 %v177
      %v255 = vunpack.c.l.b16 %v178
      %v256 = vunpack.c.l.b16 %v179
      %v257 = vunpack.c.l.b16 %v180
      %v258 = vunpack.c.l.b16 %v181
      %v259 = vunpack.c.l.b16 %v182
      %v260 = vunpack.c.l.b16 %v183
      %v261 = vunpack.c.l.b16 %v184
      %v262 = vunpack.c.l.b16 %v185
      %v263 = vunpack.c.l.b16 %v186
      %v264 = vunpack.c.l.b16 %v187
      %v265 = vunpack.c.l.b16 %v188
      %v266 = vunpack.c.l.b16 %v189
      %v267 = vunpack.c.l.b16 %v190
      %v268 = vunpack.c.l.b16 %v191
      %v269 = vunpack.c.l.b16 %v192
      %v270 = vunpack.c.l.b16 %v193
      %v271 = vunpack.c.l.b16 %v194
      %v272 = vunpack.c.l.b16 %v195
      %v273 = vunpack.c.l.b16 %v196
      %v274 = vunpack.c.l.b16 %v197
      %v275 = vunpack.c.l.b16 %v198
      %v276 = vunpack.c.l.b16 %v199
      %v277 = vunpack.c.l.b16 %v200
      %v278 = vunpack.c.l.b16 %v201
      %v279 = vunpack.c.l.b16 %v202
      %v280 = vunpack.c.l.b16 %v203
      %v281 = vunpack.c.l.b16 %v204
      %v282 = vunpack.c.l.b16 %v205
      %v283 = vunpack.c.l.b16 %v206
      %v284 = vpack.c.b16 %v253, %v252
      %v285 = vpack.c.b16 %v255, %v254
      %v286 = vpack.c.b16 %v257, %v256
      %v287 = vpack.c.b16 %v259, %v258
      %v288 = vpack.c.b16 %v261, %v260
      %v289 = vpack.c.b16 %v263, %v262
      %v290 = vpack.c.b16 %v265, %v264
      %v291 = vpack.c.b16 %v267, %v266
      %v292 = vpack.c.b16 %v269, %v268
      %v293 = vpack.c.b16 %v271, %v270
      %v294 = vpack.c.b16 %v273, %v272
      %v295 = vpack.c.b16 %v275, %v274
      %v296 = vpack.c.b16 %v277, %v276
      %v297 = vpack.c.b16 %v279, %v278
      %v298 = vpack.c.b16 %v281, %v280
      %v299 = vpack.c.b16 %v283, %v282
      %v309 = vunpack.c.l.b16 %v207
      %v310 = vunpack.c.l.b16 %v208
      %v311 = vunpack.c.l.b16 %v209
      %v312 = vunpack.c.l.b16 %v210
      %v313 = vunpack.c.l.b16 %v211
      %v314 = vunpack.c.l.b16 %v212
      %v315 = vunpack.c.l.b16 %v213
      %v316 = vunpack.c.l.b16 %v214
      %v317 = vunpack.c.l.b16 %v215
      %v318 = vpack.c.b16 %v310, %v309
      %v319 = vpack.c.b16 %v312, %v311
      %v320 = vpack.c.b16 %v314, %v313
      %v321 = vpack.c.b16 %v316, %v315
      %v322 = vpack.c.b16 %v317, %v317
      %vm327 = vcmask 588800
      %v329 = vsel %vm327, %v284, 0
      %v332 = vsel %vm327, %v285, 0
      %v335 = vsel %vm327, %v286, 0
      %v338 = vsel %vm327, %v287, 0
      %v341 = vsel %vm327, %v288, 0
      %v344 = vsel %vm327, %v289, 0
      %v347 = vsel %vm327, %v290, 0
      %v350 = vsel %vm327, %v291, 0
      %v353 = vsel %vm327, %v292, 0
      %v356 = vsel %vm327, %v293, 0
      %v359 = vsel %vm327, %v294, 0
      %v362 = vsel %vm327, %v295, 0
      %v365 = vsel %vm327, %v296, 0
      %v368 = vsel %vm327, %v297, 0
      %v371 = vsel %vm327, %v298, 0
      %v374 = vsel %vm327, %v299, 0
      %vm376 = vcmask 1043456
      %v378 = vsel %vm376, %v322, 0
      %380 = vmatpush.bf16.msra.mxu0 0
      %381 = vmatpush.bf16.msra.mxu0 0
      %382 = vmatpush.bf16.msra.mxu0 0
      %383 = vmatpush.bf16.msra.mxu0 %v378
      %384 = vmatpush.bf16.msra.mxu0 %v321
      %385 = vmatpush.bf16.msra.mxu0 %v320
      %386 = vmatpush.bf16.msra.mxu0 %v319
      %387 = vmatpush.bf16.msra.mxu0 %v318
      %388 = vmatmul.bf16.gmra.mxu0 %v329
      %v389 = vpop.f32.mrf.mxu0
      %v390 = vadd.f32 %v218, %v389
      %v391 = vpop.f32.mrf.mxu0
      %v392 = vadd.f32 %v218, %v391
      %393 = vmatmul.bf16.gmra.mxu0 %v332
      %v394 = vpop.f32.mrf.mxu0
      %v395 = vadd.f32 %v218, %v394
      %v396 = vpop.f32.mrf.mxu0
      %v397 = vadd.f32 %v218, %v396
      %398 = vmatmul.bf16.gmra.mxu0 %v335
      %v399 = vpop.f32.mrf.mxu0
      %v400 = vadd.f32 %v218, %v399
      %v401 = vpop.f32.mrf.mxu0
      %v402 = vadd.f32 %v218, %v401
      %403 = vmatmul.bf16.gmra.mxu0 %v338
      %v404 = vpop.f32.mrf.mxu0
      %v405 = vadd.f32 %v218, %v404
      %v406 = vpop.f32.mrf.mxu0
      %v407 = vadd.f32 %v218, %v406
      %408 = vmatmul.bf16.gmra.mxu0 %v341
      %v409 = vpop.f32.mrf.mxu0
      %v410 = vadd.f32 %v218, %v409
      %v411 = vpop.f32.mrf.mxu0
      %v412 = vadd.f32 %v218, %v411
      %413 = vmatmul.bf16.gmra.mxu0 %v344
      %v414 = vpop.f32.mrf.mxu0
      %v415 = vadd.f32 %v218, %v414
      %v416 = vpop.f32.mrf.mxu0
      %v417 = vadd.f32 %v218, %v416
      %418 = vmatmul.bf16.gmra.mxu0 %v347
      %v419 = vpop.f32.mrf.mxu0
      %v420 = vadd.f32 %v218, %v419
      %v421 = vpop.f32.mrf.mxu0
      %v422 = vadd.f32 %v218, %v421
      %423 = vmatmul.bf16.gmra.mxu0 %v350
      %v424 = vpop.f32.mrf.mxu0
      %v425 = vadd.f32 %v218, %v424
      %v426 = vpop.f32.mrf.mxu0
      %v427 = vadd.f32 %v218, %v426
      %428 = vmatmul.bf16.gmra.mxu0 %v353
      %v429 = vpop.f32.mrf.mxu0
      %v430 = vadd.f32 %v218, %v429
      %v431 = vpop.f32.mrf.mxu0
      %v432 = vadd.f32 %v218, %v431
      %433 = vmatmul.bf16.gmra.mxu0 %v356
      %v434 = vpop.f32.mrf.mxu0
      %v435 = vadd.f32 %v218, %v434
      %v436 = vpop.f32.mrf.mxu0
      %v437 = vadd.f32 %v218, %v436
      %438 = vmatmul.bf16.gmra.mxu0 %v359
      %v439 = vpop.f32.mrf.mxu0
      %v440 = vadd.f32 %v218, %v439
      %v441 = vpop.f32.mrf.mxu0
      %v442 = vadd.f32 %v218, %v441
      %443 = vmatmul.bf16.gmra.mxu0 %v362
      %v444 = vpop.f32.mrf.mxu0
      %v445 = vadd.f32 %v218, %v444
      %v446 = vpop.f32.mrf.mxu0
      %v447 = vadd.f32 %v218, %v446
      %448 = vmatmul.bf16.gmra.mxu0 %v365
      %v449 = vpop.f32.mrf.mxu0
      %v450 = vadd.f32 %v218, %v449
      %v451 = vpop.f32.mrf.mxu0
      %v452 = vadd.f32 %v218, %v451
      %453 = vmatmul.bf16.gmra.mxu0 %v368
      %v454 = vpop.f32.mrf.mxu0
      %v455 = vadd.f32 %v218, %v454
      %v456 = vpop.f32.mrf.mxu0
      %v457 = vadd.f32 %v218, %v456
      %458 = vmatmul.bf16.gmra.mxu0 %v371
      %v459 = vpop.f32.mrf.mxu0
      %v460 = vadd.f32 %v218, %v459
      %v461 = vpop.f32.mrf.mxu0
      %v462 = vadd.f32 %v218, %v461
      %463 = vmatmul.bf16.gmra.mxu0 %v374
      %v464 = vpop.f32.mrf.mxu0
      %v465 = vadd.f32 %v218, %v464
      %v466 = vpop.f32.mrf.mxu0
      %v467 = vadd.f32 %v218, %v466
      %468 = vdwg.mxu0
      %v469 = vmax.f32 %v390, 0.0
      %v470 = vmax.f32 %v392, 0.0
      %v471 = vmax.f32 %v395, 0.0
      %v472 = vmax.f32 %v397, 0.0
      %v473 = vmax.f32 %v400, 0.0
      %v474 = vmax.f32 %v402, 0.0
      %v475 = vmax.f32 %v405, 0.0
      %v476 = vmax.f32 %v407, 0.0
      %v477 = vmax.f32 %v410, 0.0
      %v478 = vmax.f32 %v412, 0.0
      %v479 = vmax.f32 %v415, 0.0
      %v480 = vmax.f32 %v417, 0.0
      %v481 = vmax.f32 %v420, 0.0
      %v482 = vmax.f32 %v422, 0.0
      %v483 = vmax.f32 %v425, 0.0
      %v484 = vmax.f32 %v427, 0.0
      %v485 = vmax.f32 %v430, 0.0
      %v486 = vmax.f32 %v432, 0.0
      %v487 = vmax.f32 %v435, 0.0
      %v488 = vmax.f32 %v437, 0.0
      %v489 = vmax.f32 %v440, 0.0
      %v490 = vmax.f32 %v442, 0.0
      %v491 = vmax.f32 %v445, 0.0
      %v492 = vmax.f32 %v447, 0.0
      %v493 = vmax.f32 %v450, 0.0
      %v494 = vmax.f32 %v452, 0.0
      %v495 = vmax.f32 %v455, 0.0
      %v496 = vmax.f32 %v457, 0.0
      %v497 = vmax.f32 %v460, 0.0
      %v498 = vmax.f32 %v462, 0.0
      %v499 = vmax.f32 %v465, 0.0
      %v500 = vmax.f32 %v467, 0.0
      %v501 = vpack.c.bf16 %v469, %v469
      %v502 = vpack.c.bf16 %v470, %v470
      %v503 = vpack.c.bf16 %v471, %v471
      %v504 = vpack.c.bf16 %v472, %v472
      %v505 = vpack.c.bf16 %v473, %v473
      %v506 = vpack.c.bf16 %v474, %v474
      %v507 = vpack.c.bf16 %v475, %v475
      %v508 = vpack.c.bf16 %v476, %v476
      %v509 = vpack.c.bf16 %v477, %v477
      %v510 = vpack.c.bf16 %v478, %v478
      %v511 = vpack.c.bf16 %v479, %v479
      %v512 = vpack.c.bf16 %v480, %v480
      %v513 = vpack.c.bf16 %v481, %v481
      %v514 = vpack.c.bf16 %v482, %v482
      %v515 = vpack.c.bf16 %v483, %v483
      %v516 = vpack.c.bf16 %v484, %v484
      %v517 = vpack.c.bf16 %v485, %v485
      %v518 = vpack.c.bf16 %v486, %v486
      %v519 = vpack.c.bf16 %v487, %v487
      %v520 = vpack.c.bf16 %v488, %v488
      %v521 = vpack.c.bf16 %v489, %v489
      %v522 = vpack.c.bf16 %v490, %v490
      %v523 = vpack.c.bf16 %v491, %v491
      %v524 = vpack.c.bf16 %v492, %v492
      %v525 = vpack.c.bf16 %v493, %v493
      %v526 = vpack.c.bf16 %v494, %v494
      %v527 = vpack.c.bf16 %v495, %v495
      %v528 = vpack.c.bf16 %v496, %v496
      %v529 = vpack.c.bf16 %v497, %v497
      %v530 = vpack.c.bf16 %v498, %v498
      %v531 = vpack.c.bf16 %v499, %v499
      %v532 = vpack.c.bf16 %v500, %v500
      %vm533 = vcmask 60416
      %534 = vst.msk [vmem:[%s172] sm:$0xf] %vm533, %v501
      %535 = vst.msk [vmem:[%s172 + $0x4] sm:$0xf] %vm533, %v502
      %536 = vst.msk [vmem:[%s172 + $0x8] sm:$0xf] %vm533, %v503
      %537 = vst.msk [vmem:[%s172 + $0xc] sm:$0xf] %vm533, %v504
      %538 = vst.msk [vmem:[%s172 + $0x10] sm:$0xf] %vm533, %v505
      %539 = vst.msk [vmem:[%s172 + $0x14] sm:$0xf] %vm533, %v506
      %540 = vst.msk [vmem:[%s172 + $0x18] sm:$0xf] %vm533, %v507
      %541 = vst.msk [vmem:[%s172 + $0x1c] sm:$0xf] %vm533, %v508
      %542 = vst.msk [vmem:[%s172 + $0x20] sm:$0xf] %vm533, %v509
      %543 = vst.msk [vmem:[%s172 + $0x24] sm:$0xf] %vm533, %v510
      %544 = vst.msk [vmem:[%s172 + $0x28] sm:$0xf] %vm533, %v511
      %545 = vst.msk [vmem:[%s172 + $0x2c] sm:$0xf] %vm533, %v512
      %546 = vst.msk [vmem:[%s172 + $0x30] sm:$0xf] %vm533, %v513
      %547 = vst.msk [vmem:[%s172 + $0x34] sm:$0xf] %vm533, %v514
      %548 = vst.msk [vmem:[%s172 + $0x38] sm:$0xf] %vm533, %v515
      %549 = vst.msk [vmem:[%s172 + $0x3c] sm:$0xf] %vm533, %v516
      %550 = vst.msk [vmem:[%s172 + $0x40] sm:$0xf] %vm533, %v517
      %551 = vst.msk [vmem:[%s172 + $0x44] sm:$0xf] %vm533, %v518
      %552 = vst.msk [vmem:[%s172 + $0x48] sm:$0xf] %vm533, %v519
      %553 = vst.msk [vmem:[%s172 + $0x4c] sm:$0xf] %vm533, %v520
      %554 = vst.msk [vmem:[%s172 + $0x50] sm:$0xf] %vm533, %v521
      %555 = vst.msk [vmem:[%s172 + $0x54] sm:$0xf] %vm533, %v522
      %556 = vst.msk [vmem:[%s172 + $0x58] sm:$0xf] %vm533, %v523
      %557 = vst.msk [vmem:[%s172 + $0x5c] sm:$0xf] %vm533, %v524
      %558 = vst.msk [vmem:[%s172 + $0x60] sm:$0xf] %vm533, %v525
      %559 = vst.msk [vmem:[%s172 + $0x64] sm:$0xf] %vm533, %v526
      %560 = vst.msk [vmem:[%s172 + $0x68] sm:$0xf] %vm533, %v527
      %561 = vst.msk [vmem:[%s172 + $0x6c] sm:$0xf] %vm533, %v528
      %562 = vst.msk [vmem:[%s172 + $0x70] sm:$0xf] %vm533, %v529
      %563 = vst.msk [vmem:[%s172 + $0x74] sm:$0xf] %vm533, %v530
      %564 = vst.msk [vmem:[%s172 + $0x78] sm:$0xf] %vm533, %v531
      %565 = vst.msk [vmem:[%s172 + $0x7c] sm:$0xf] %vm533, %v532
      %s566 = smul.u32 32, %s14
      %p567 = scmp.lt.s32.totalorder %s566, 63
      %s568 = scalar_select %p567, %s566, 63
      %s569 = smul.addr %s568, 4
      %s570 = scalar_lea.vmem %s3, %s569
      // Predicated region
      $region33: #{dcn_sep_head_forward.7} parent=31 // pred_check
        %p571 = pneg %p100
      $region34: #{dcn_sep_head_forward.7} parent=31 // pred_check_branch
        %573 = sbr.rel (%p571) target = $region36
      $region35: #{dcn_sep_head_forward.7} parent=31 // pred_region
        %s574 = smul.u32 32, %s14
      $region36: #{dcn_sep_head_forward.7} parent=31 // pred_fallthru
        _
    $region32: #{dcn_sep_head_forward.7} parent=5 // pred_fallthru
      _
    %p575 = scmp.le.s32.totalorder 2, %s9
    // Predicated region
    $region37: #{dcn_sep_head_forward.7} parent=5 // pred_check
      %p576 = pneg %p575
    $region38: #{dcn_sep_head_forward.7} parent=5 // pred_check_branch
      %578 = sbr.rel (%p576) target = $region40
    $region39: #{dcn_sep_head_forward.7} parent=5 // pred_region
      %s579 = ssub.s32 %s9, 2
      // Predicated region
      $region41: #{dcn_sep_head_forward.7} parent=39 // pred_check
        %p580 = pneg %p106
      $region42: #{dcn_sep_head_forward.7} parent=39 // pred_check_branch
        %582 = sbr.rel (%p580) target = $region44
      $region43: #{dcn_sep_head_forward.7} parent=39 // pred_region
        %s583 = smul.u32 32, %s15
        %p584 = scmp.lt.s32.totalorder %s583, 63
        %s585 = scalar_select %p584, %s583, 63
        %s586 = smul.addr %s585, 4
        %s587 = scalar_lea.vmem %s3, %s586
      $region44: #{dcn_sep_head_forward.7} parent=39 // pred_fallthru
        _
    $region40: #{dcn_sep_head_forward.7} parent=5 // pred_fallthru
      _
  $region6: #{dcn_sep_head_forward.7} parent=0 // loop_footer
    %s13 = sadd.s32 1, %s9
  $region7: #{dcn_sep_head_forward.7} parent=0 // loop_footer_branch
    %8 = sbr.rel target = $region3
  $region8: #{dcn_sep_head_forward.7} parent=0 // loop_exit
    _

// kernel: dcn_sep_head_forward.9
$region0: #{dcn_sep_head_forward.9}
  #allocation0 [shape = 'u32[]', space=smem, size = 0x4, offset = 0x4, fixed_abs, tag = 'smem constant byte address 0x4 - core index']
  #allocation1 [shape = 'u32[72,128]{1,0:T(1,128)}', space=vmem, size = 0x9000, scoped, tag = 'internal scratch']
  %s0 = inlined_call_operand.vmem [shape: bf16[2,18,18,8], index: 0, kind: input, shape index: {}, may-alias: {0,1}]
  %s1 = inlined_call_operand.vmem [shape: bf16[2,18,18,8], index: 1, kind: input, shape index: {}, may-alias: {0,1}]
  %s2 = inlined_call_operand.vmem [shape: bf16[9,8,128], index: 2, kind: input, shape index: {}]
  %s3 = inlined_call_operand.vmem [shape: f32[1,128], index: 3, kind: input, shape index: {}]
  %s4 = inlined_call_operand.vmem [shape: bf16[512,128], index: 4, kind: output, shape index: {}]
  %s5 = sld [smem:[#allocation0]]
  $region49: #{dcn_sep_head_forward.9} parent=0
    _
  %s7 = ssub.s32 1, %s5
  %s8 = scalar_select 0, %s7, %s5
  loop: start=0, step=1, limit=6
  $region2: #{dcn_sep_head_forward.9} parent=0 // loop_pre_header
    _
  $region3: #{dcn_sep_head_forward.9} parent=0 // loop_header
    %s10 = sphi 0, %s14
    %p11 = scmp.ge.s32.totalorder %s10, 6
    %s17 = sphi 0, %s29
    %s18 = sphi 0, %s25
    %s19 = sphi 0, %s17
    %s20 = sphi 0, %s18
    %s21 = sphi 0, %s19
    %s22 = sphi 0, %s20
    %s34 = sphi 0, %s36
    %s37 = sphi 0, %s34
    %s38 = sphi 0, %s37
    %s54 = sphi 0, %s38
    %s66 = sphi 0, %s68
    %s69 = sphi 0, %s66
    %s70 = sphi 0, %s69
    %s86 = sphi 0, %s70
    %s90 = sphi 0, %s90
    %s92 = sphi 0, %s90
    %s93 = sphi 0, %s92
    %s107 = sphi 0, %s93
    %s111 = sphi 0, %s111
    %s113 = sphi 0, %s111
    %s114 = sphi 0, %s113
    %s128 = sphi 0, %s114
    %s138 = sphi 0, %s140
    %s141 = sphi 0, %s138
    %s142 = sphi 0, %s141
    %s158 = sphi 0, %s142
  $region4: #{dcn_sep_head_forward.9} parent=0 // loop_header_branch
    %13 = sbr.rel (%p11) target = $region8
  $region5: #{dcn_sep_head_forward.9} parent=0 // loop_body
    %s15 = ssub.s32 %s10, 1
    %s16 = ssub.s32 %s10, 2
    %s23 = sadd.s32 1, %s18
    %p24 = scmp.ge.s32.totalorder %s23, 2
    %s25 = scalar_select %p24, 0, %s23
    %s26 = sadd.s32 1, %s17
    %s27 = scalar_select %p24, %s26, %s17
    %p28 = scmp.ge.s32.totalorder %s27, 2
    %s29 = scalar_select %p28, 0, %s27
    %s30 = ssub.s32 %s17, %s29
    %s31 = ssub.s32 %s18, %s25
    %s32 = sor.u32 %s30, %s31
    %p33 = scmp.eq.s32.totalorder %s32, 0
    %s35 = sadd.s32 %s34, 1
    %s36 = scalar_select %p33, %s34, %s35
    %p39 = pneg %p33
    %p40 = scmp.eq.s32.totalorder %s10, 3
    %p41 = por %p39, %p40
    %p42 = scmp.ne.s32.totalorder %s34, %s37
    %p43 = scmp.eq.s32.totalorder %s10, 0
    %p44 = por %p42, %p43
    %p45 = scmp.ne.s32.totalorder %s34, %s37
    %p46 = scmp.eq.s32.totalorder %s15, 3
    %p47 = por %p45, %p46
    %p48 = scmp.ne.s32.totalorder %s37, %s38
    %p49 = scmp.eq.s32.totalorder %s15, 0
    %p50 = por %p48, %p49
    %p51 = scmp.ne.s32.totalorder %s37, %s38
    %p52 = scmp.eq.s32.totalorder %s16, 3
    %p53 = por %p51, %p52
    %p55 = scmp.ne.s32.totalorder %s38, %s54
    %p56 = scmp.eq.s32.totalorder %s16, 0
    %p57 = por %p55, %p56
    %s58 = smul.u32 %s18, 4
    %s59 = sadd.s32 %s58, 4
    %s60 = smul.u32 %s25, 4
    %s61 = sadd.s32 %s60, 4
    %s62 = ssub.s32 %s17, %s29
    %s63 = ssub.s32 %s59, %s61
    %s64 = sor.u32 %s62, %s63
    %p65 = scmp.eq.s32.totalorder %s64, 0
    %s67 = sadd.s32 %s66, 1
    %s68 = scalar_select %p65, %s66, %s67
    %p71 = pneg %p65
    %p72 = scmp.eq.s32.totalorder %s10, 3
    %p73 = por %p71, %p72
    %p74 = scmp.ne.s32.totalorder %s66, %s69
    %p75 = scmp.eq.s32.totalorder %s10, 0
    %p76 = por %p74, %p75
    %p77 = scmp.ne.s32.totalorder %s66, %s69
    %p78 = scmp.eq.s32.totalorder %s15, 3
    %p79 = por %p77, %p78
    %p80 = scmp.ne.s32.totalorder %s69, %s70
    %p81 = scmp.eq.s32.totalorder %s15, 0
    %p82 = por %p80, %p81
    %p83 = scmp.ne.s32.totalorder %s69, %s70
    %p84 = scmp.eq.s32.totalorder %s16, 3
    %p85 = por %p83, %p84
    %p87 = scmp.ne.s32.totalorder %s70, %s86
    %p88 = scmp.eq.s32.totalorder %s16, 0
    %p89 = por %p87, %p88
    %s91 = sadd.s32 %s90, 1
    %p94 = scmp.eq.s32.totalorder %s10, 3
    %p95 = scmp.ne.s32.totalorder %s90, %s92
    %p96 = scmp.eq.s32.totalorder %s10, 0
    %p97 = por %p95, %p96
    %p98 = scmp.ne.s32.totalorder %s90, %s92
    %p99 = scmp.eq.s32.totalorder %s15, 3
    %p100 = por %p98, %p99
    %p101 = scmp.ne.s32.totalorder %s92, %s93
    %p102 = scmp.eq.s32.totalorder %s15, 0
    %p103 = por %p101, %p102
    %p104 = scmp.ne.s32.totalorder %s92, %s93
    %p105 = scmp.eq.s32.totalorder %s16, 3
    %p106 = por %p104, %p105
    %p108 = scmp.ne.s32.totalorder %s93, %s107
    %p109 = scmp.eq.s32.totalorder %s16, 0
    %p110 = por %p108, %p109
    %s112 = sadd.s32 %s111, 1
    %p115 = scmp.eq.s32.totalorder %s10, 3
    %p116 = scmp.ne.s32.totalorder %s111, %s113
    %p117 = scmp.eq.s32.totalorder %s10, 0
    %p118 = por %p116, %p117
    %p119 = scmp.ne.s32.totalorder %s111, %s113
    %p120 = scmp.eq.s32.totalorder %s15, 3
    %p121 = por %p119, %p120
    %p122 = scmp.ne.s32.totalorder %s113, %s114
    %p123 = scmp.eq.s32.totalorder %s15, 0
    %p124 = por %p122, %p123
    %p125 = scmp.ne.s32.totalorder %s113, %s114
    %p126 = scmp.eq.s32.totalorder %s16, 3
    %p127 = por %p125, %p126
    %p129 = scmp.ne.s32.totalorder %s114, %s128
    %p130 = scmp.eq.s32.totalorder %s16, 0
    %p131 = por %p129, %p130
    %s132 = smul.u32 %s17, 2
    %s133 = sadd.s32 %s132, %s18
    %s134 = smul.u32 %s29, 2
    %s135 = sadd.s32 %s134, %s25
    %s136 = ssub.s32 %s133, %s135
    %p137 = scmp.eq.s32.totalorder %s136, 0
    %s139 = sadd.s32 %s138, 1
    %s140 = scalar_select %p137, %s138, %s139
    %p143 = pneg %p137
    %p144 = scmp.eq.s32.totalorder %s10, 3
    %p145 = por %p143, %p144
    %p146 = scmp.ne.s32.totalorder %s138, %s141
    %p147 = scmp.eq.s32.totalorder %s10, 0
    %p148 = por %p146, %p147
    %p149 = scmp.ne.s32.totalorder %s138, %s141
    %p150 = scmp.eq.s32.totalorder %s15, 3
    %p151 = por %p149, %p150
    %p152 = scmp.ne.s32.totalorder %s141, %s142
    %p153 = scmp.eq.s32.totalorder %s15, 0
    %p154 = por %p152, %p153
    %p155 = scmp.ne.s32.totalorder %s141, %s142
    %p156 = scmp.eq.s32.totalorder %s16, 3
    %p157 = por %p155, %p156
    %p159 = scmp.ne.s32.totalorder %s142, %s158
    %p160 = scmp.eq.s32.totalorder %s16, 0
    %p161 = por %p159, %p160
    %p162 = scmp.le.s32.totalorder 1, %s10
    %p163 = scmp.lt.s32.totalorder %s10, 5
    %p164 = pnand %p162, %p163
    %p165 = pneg %p164
    // Predicated region
    $region9: #{dcn_sep_head_forward.9} parent=5 // pred_check
      _
    $region10: #{dcn_sep_head_forward.9} parent=5 // pred_check_branch
      %167 = sbr.rel (%p164) target = $region12
    $region11: #{dcn_sep_head_forward.9} parent=5 // pred_region
      %s168 = ssub.s32 %s10, 1
      // Predicated region
      $region13: #{dcn_sep_head_forward.9} parent=11 // pred_check
        %p169 = pneg %p103
      $region14: #{dcn_sep_head_forward.9} parent=11 // pred_check_branch
        %171 = sbr.rel (%p169) target = $region16
      $region15: #{dcn_sep_head_forward.9} parent=11 // pred_region
        _
      $region16: #{dcn_sep_head_forward.9} parent=11 // pred_fallthru
        _
      // Predicated region
      $region17: #{dcn_sep_head_forward.9} parent=11 // pred_check
        %p172 = pneg %p124
      $region18: #{dcn_sep_head_forward.9} parent=11 // pred_check_branch
        %174 = sbr.rel (%p172) target = $region20
      $region19: #{dcn_sep_head_forward.9} parent=11 // pred_region
        _
      $region20: #{dcn_sep_head_forward.9} parent=11 // pred_fallthru
        _
    $region12: #{dcn_sep_head_forward.9} parent=5 // pred_fallthru
      _
    %p175 = scmp.lt.s32.totalorder %s10, 4
    // Predicated region
    $region21: #{dcn_sep_head_forward.9} parent=5 // pred_check
      %p176 = pneg %p175
    $region22: #{dcn_sep_head_forward.9} parent=5 // pred_check_branch
      %178 = sbr.rel (%p176) target = $region24
    $region23: #{dcn_sep_head_forward.9} parent=5 // pred_region
      // Predicated region
      $region25: #{dcn_sep_head_forward.9} parent=23 // pred_check
        %p179 = pneg %p44
      $region26: #{dcn_sep_head_forward.9} parent=23 // pred_check_branch
        %181 = sbr.rel (%p179) target = $region28
      $region27: #{dcn_sep_head_forward.9} parent=23 // pred_region
        %s182 = smul.u32 8, %s18
        %s183 = ssub.s32 18, %s182
        %p184 = scmp.lt.s32.totalorder %s183, 8
        %s185 = scalar_select %p184, %s183, 8
        %s186 = smul.u32 4, %s185
        %s187 = smul.u32 %s186, 3
        %p188 = scmp.lt.s32.totalorder %s17, 1
        %s189 = scalar_select %p188, %s17, 1
        %p190 = scmp.lt.s32.totalorder %s182, 17
        %s191 = scalar_select %p190, %s182, 17
        %s192 = smul.addr %s191, 3
        %s193 = smul.addr %s189, 54
        %s194 = sadd.s32 %s192, %s193
        %s195 = smul.addr %s194, 4
        %s196 = scalar_lea.vmem %s0, %s195
        %s197 = smul.u32 8, %s18
        %s198 = ssub.s32 18, %s197
        %p199 = scmp.lt.s32.totalorder %s198, 8
        %s200 = scalar_select %p199, %s198, 8
        %s201 = smul.u32 4, %s200
        %s202 = smul.u32 %s201, 3
      $region28: #{dcn_sep_head_forward.9} parent=23 // pred_fallthru
        _
      // Predicated region
      $region29: #{dcn_sep_head_forward.9} parent=23 // pred_check
        %p203 = pneg %p76
      $region30: #{dcn_sep_head_forward.9} parent=23 // pred_check_branch
        %205 = sbr.rel (%p203) target = $region32
      $region31: #{dcn_sep_head_forward.9} parent=23 // pred_region
        %s206 = smul.u32 %s18, 4
        %s207 = sadd.s32 %s206, 4
        %s208 = smul.u32 2, %s207
        %p209 = scmp.lt.s32.totalorder %s17, 1
        %s210 = scalar_select %p209, %s17, 1
        %p211 = scmp.lt.s32.totalorder %s208, 17
        %s212 = scalar_select %p211, %s208, 17
        %s213 = smul.addr %s212, 3
        %s214 = smul.addr %s210, 54
        %s215 = sadd.s32 %s213, %s214
        %s216 = smul.addr %s215, 4
        %s217 = scalar_lea.vmem %s1, %s216
        %s218 = smul.u32 %s18, 4
        %s219 = sadd.s32 %s218, 4
        %s220 = smul.u32 2, %s219
      $region32: #{dcn_sep_head_forward.9} parent=23 // pred_fallthru
        _
    $region24: #{dcn_sep_head_forward.9} parent=5 // pred_fallthru
      _
    %p221 = scmp.le.s32.totalorder 1, %s10
    %p222 = scmp.lt.s32.totalorder %s10, 5
    %p223 = pnand %p221, %p222
    %p224 = pneg %p223
    // Predicated region
    $region33: #{dcn_sep_head_forward.9} parent=5 // pred_check
      _
    $region34: #{dcn_sep_head_forward.9} parent=5 // pred_check_branch
      %226 = sbr.rel (%p223) target = $region36
    $region35: #{dcn_sep_head_forward.9} parent=5 // pred_region
      %s227 = ssub.s32 %s10, 1
      %s228 = smul.u32 8, %s20
      %s229 = ssub.s32 18, %s228
      %p230 = scmp.lt.s32.totalorder %s229, 8
      %s231 = scalar_select %p230, %s229, 8
      %s232 = smul.u32 4, %s231
      %s233 = smul.u32 %s232, 3
      %p234 = scmp.lt.s32.totalorder %s19, 1
      %s235 = scalar_select %p234, %s19, 1
      %p236 = scmp.lt.s32.totalorder %s228, 17
      %s237 = scalar_select %p236, %s228, 17
      %s238 = smul.addr %s237, 3
      %s239 = smul.addr %s235, 54
      %s240 = sadd.s32 %s238, %s239
      %s241 = smul.addr %s240, 4
      %s242 = scalar_lea.vmem %s0, %s241
      %p243 = pneg %p50
      %p244 = pneg %p47
      %s245 = smul.u32 %s20, 4
      %s246 = sadd.s32 %s245, 4
      %s247 = smul.u32 2, %s246
      %p248 = scmp.lt.s32.totalorder %s19, 1
      %s249 = scalar_select %p248, %s19, 1
      %p250 = scmp.lt.s32.totalorder %s247, 17
      %s251 = scalar_select %p250, %s247, 17
      %s252 = smul.addr %s251, 3
      %s253 = smul.addr %s249, 54
      %s254 = sadd.s32 %s252, %s253
      %s255 = smul.addr %s254, 4
      %s256 = scalar_lea.vmem %s1, %s255
      %p257 = pneg %p82
      %p258 = pneg %p79
      %p259 = pneg %p103
      %p260 = pneg %p100
      %p261 = pneg %p124
      %p262 = pneg %p121
      %p263 = pneg %p154
      %p264 = pneg %p151
      %s265 = smul.u32 %s19, 2
      %s266 = sadd.s32 %s265, %s20
      %s267 = smul.u32 16, %s266
      %p268 = scmp.lt.s32.totalorder %s267, 63
      %s269 = scalar_select %p268, %s267, 63
      %s270 = smul.addr %s269, 4
      %s271 = scalar_lea.vmem %s4, %s270
      %s272 = smul.u32 8, %s20
      %s273 = ssub.s32 18, %s272
      %p274 = scmp.lt.s32.totalorder %s273, 8
      %s275 = scalar_select %p274, %s273, 8
      %s276 = smul.u32 4, %s275
      %s277 = smul.u32 %s276, 3
      %p278 = scmp.lt.s32.totalorder %s19, 1
      %s279 = scalar_select %p278, %s19, 1
      %p280 = scmp.lt.s32.totalorder %s272, 17
      %s281 = scalar_select %p280, %s272, 17
      %s282 = smul.addr %s281, 3
      %s283 = smul.addr %s279, 54
      %s284 = sadd.s32 %s282, %s283
      %s285 = smul.addr %s284, 4
      %s286 = scalar_lea.vmem %s0, %s285
      %s287 = smul.u32 8, %s20
      %s288 = ssub.s32 18, %s287
      %p289 = scmp.lt.s32.totalorder %s288, 8
      %s290 = scalar_select %p289, %s288, 8
      %s291 = smul.u32 4, %s290
      %s292 = smul.u32 %s291, 3
      %s293 = smul.u32 %s20, 4
      %s294 = sadd.s32 %s293, 4
      %s295 = smul.u32 2, %s294
      %p296 = scmp.lt.s32.totalorder %s19, 1
      %s297 = scalar_select %p296, %s19, 1
      %p298 = scmp.lt.s32.totalorder %s295, 17
      %s299 = scalar_select %p298, %s295, 17
      %s300 = smul.addr %s299, 3
      %s301 = smul.addr %s297, 54
      %s302 = sadd.s32 %s300, %s301
      %s303 = smul.addr %s302, 4
      %s304 = scalar_lea.vmem %s1, %s303
      %s305 = smul.u32 %s20, 4
      %s306 = sadd.s32 %s305, 4
      %s307 = smul.u32 2, %s306
      %s308 = smul.u32 %s19, 2
      %s309 = sadd.s32 %s308, %s20
      %s310 = smul.u32 16, %s309
      %p311 = scmp.lt.s32.totalorder %s310, 63
      %s312 = scalar_select %p311, %s310, 63
      %s313 = smul.addr %s312, 4
      %s314 = scalar_lea.vmem %s4, %s313
      %s315 = smul.u32 %s19, 2
      %s316 = sadd.s32 %s315, %s20
      %s317 = smul.u32 16, %s316
      %v319 = vld [vmem:[%s286] sm:$0xf]
      %v320 = vld [vmem:[%s286 + $0x4] sm:$0xf]
      %v321 = vld [vmem:[%s286 + $0x8] sm:$0x1]
      %s322 = scalar_lea.vmem %s286, 12
      %v323 = vld [vmem:[%s322] sm:$0xf]
      %v324 = vld [vmem:[%s322 + $0x4] sm:$0xf]
      %v325 = vld [vmem:[%s322 + $0x8] sm:$0x1]
      %s326 = scalar_lea.vmem %s286, 24
      %v327 = vld [vmem:[%s326] sm:$0xf]
      %v328 = vld [vmem:[%s326 + $0x4] sm:$0xf]
      %v329 = vld [vmem:[%s326 + $0x8] sm:$0x1]
      %s330 = scalar_lea.vmem %s286, 36
      %v331 = vld [vmem:[%s330] sm:$0xf]
      %v332 = vld [vmem:[%s330 + $0x4] sm:$0xf]
      %v333 = vld [vmem:[%s330 + $0x8] sm:$0x1]
      %s334 = scalar_lea.vmem %s286, 48
      %v335 = vld [vmem:[%s334] sm:$0xf]
      %v336 = vld [vmem:[%s334 + $0x4] sm:$0xf]
      %v337 = vld [vmem:[%s334 + $0x8] sm:$0x1]
      %s338 = scalar_lea.vmem %s286, 60
      %v339 = vld [vmem:[%s338] sm:$0xf]
      %v340 = vld [vmem:[%s338 + $0x4] sm:$0xf]
      %v341 = vld [vmem:[%s338 + $0x8] sm:$0x1]
      %s342 = scalar_lea.vmem %s286, 72
      %v343 = vld [vmem:[%s342] sm:$0xf]
      %v344 = vld [vmem:[%s342 + $0x4] sm:$0xf]
      %v345 = vld [vmem:[%s342 + $0x8] sm:$0x1]
      %s346 = scalar_lea.vmem %s286, 84
      %v347 = vld [vmem:[%s346] sm:$0xf]
      %v348 = vld [vmem:[%s346 + $0x4] sm:$0xf]
      %v349 = vld [vmem:[%s346 + $0x8] sm:$0x1]
      %v350 = vld [vmem:[%s304] sm:$0xf]
      %v351 = vld [vmem:[%s304 + $0x4] sm:$0xf]
      %v352 = vld [vmem:[%s304 + $0x8] sm:$0x1]
      %s353 = scalar_lea.vmem %s304, 12
      %v354 = vld [vmem:[%s353] sm:$0xf]
      %v355 = vld [vmem:[%s353 + $0x4] sm:$0xf]
      %v356 = vld [vmem:[%s353 + $0x8] sm:$0x1]
      %v357 = vld [vmem:[%s3] sm:$0x1]
      %v359 = vperm.slane %v357, 0
      %v361 = vadd.f32 %v359, 0.0
      %v364 = vunpack.c.l.b16 %v319
      %v365 = vunpack.c.l.b16 %v320
      %v366 = vpack.c.b16 %v365, %v364
      %v369 = vunpack.c.l.b16 %v323
      %v370 = vunpack.c.l.b16 %v324
      %v371 = vpack.c.b16 %v370, %v369
      %v374 = vunpack.c.l.b16 %v327
      %v375 = vunpack.c.l.b16 %v328
      %v376 = vpack.c.b16 %v375, %v374
      %v379 = vunpack.c.l.b16 %v331
      %v380 = vunpack.c.l.b16 %v332
      %v381 = vpack.c.b16 %v380, %v379
      %v384 = vunpack.c.l.b16 %v335
      %v385 = vunpack.c.l.b16 %v336
      %v386 = vpack.c.b16 %v385, %v384
      %v389 = vunpack.c.l.b16 %v339
      %v390 = vunpack.c.l.b16 %v340
      %v391 = vpack.c.b16 %v390, %v389
      %v394 = vunpack.c.l.b16 %v343
      %v395 = vunpack.c.l.b16 %v344
      %v396 = vpack.c.b16 %v395, %v394
      %v399 = vunpack.c.l.b16 %v347
      %v400 = vunpack.c.l.b16 %v348
      %v401 = vpack.c.b16 %v400, %v399
      %v402 = vld [vmem:[%s2] sm:$0xf]
      %vm403 = vcmask 64512
      %v405 = vsel %vm403, %v366, 0
      %v408 = vsel %vm403, %v371, 0
      %v411 = vsel %vm403, %v376, 0
      %v414 = vsel %vm403, %v381, 0
      %v417 = vsel %vm403, %v386, 0
      %v420 = vsel %vm403, %v391, 0
      %v423 = vsel %vm403, %v396, 0
      %v426 = vsel %vm403, %v401, 0
      %vm428 = vcmask 1043456
      %v430 = vsel %vm428, %v402, 0
      %432 = vmatpush.bf16.msra.mxu0 0
      %433 = vmatpush.bf16.msra.mxu0 0
      %434 = vmatpush.bf16.msra.mxu0 0
      %435 = vmatpush.bf16.msra.mxu0 0
      %436 = vmatpush.bf16.msra.mxu0 0
      %437 = vmatpush.bf16.msra.mxu0 0
      %438 = vmatpush.bf16.msra.mxu0 0
      %439 = vmatpush.bf16.msra.mxu0 %v430
      %440 = vmatmul.bf16.gmra.mxu0 %v405
      %v441 = vpop.f32.mrf.mxu0
      %v442 = vadd.f32 0.0, %v441
      %v443 = vpop.f32.mrf.mxu0
      %v444 = vadd.f32 0.0, %v443
      %445 = vmatmul.bf16.gmra.mxu0 %v408
      %v446 = vpop.f32.mrf.mxu0
      %v447 = vadd.f32 0.0, %v446
      %v448 = vpop.f32.mrf.mxu0
      %v449 = vadd.f32 0.0, %v448
      %450 = vmatmul.bf16.gmra.mxu0 %v411
      %v451 = vpop.f32.mrf.mxu0
      %v452 = vadd.f32 0.0, %v451
      %v453 = vpop.f32.mrf.mxu0
      %v454 = vadd.f32 0.0, %v453
      %455 = vmatmul.bf16.gmra.mxu0 %v414
      %v456 = vpop.f32.mrf.mxu0
      %v457 = vadd.f32 0.0, %v456
      %v458 = vpop.f32.mrf.mxu0
      %v459 = vadd.f32 0.0, %v458
      %460 = vmatmul.bf16.gmra.mxu0 %v417
      %v461 = vpop.f32.mrf.mxu0
      %v462 = vadd.f32 0.0, %v461
      %v463 = vpop.f32.mrf.mxu0
      %v464 = vadd.f32 0.0, %v463
      %465 = vmatmul.bf16.gmra.mxu0 %v420
      %v466 = vpop.f32.mrf.mxu0
      %v467 = vadd.f32 0.0, %v466
      %v468 = vpop.f32.mrf.mxu0
      %v469 = vadd.f32 0.0, %v468
      %470 = vmatmul.bf16.gmra.mxu0 %v423
      %v471 = vpop.f32.mrf.mxu0
      %v472 = vadd.f32 0.0, %v471
      %v473 = vpop.f32.mrf.mxu0
      %v474 = vadd.f32 0.0, %v473
      %475 = vmatmul.bf16.gmra.mxu0 %v426
      %v476 = vpop.f32.mrf.mxu0
      %v477 = vadd.f32 0.0, %v476
      %v478 = vpop.f32.mrf.mxu0
      %v479 = vadd.f32 0.0, %v478
      %480 = vdwg.mxu0
      %v481 = vadd.f32 %v361, %v442
      %v482 = vadd.f32 %v361, %v444
      %v483 = vadd.f32 %v361, %v447
      %v484 = vadd.f32 %v361, %v449
      %v485 = vadd.f32 %v361, %v452
      %v486 = vadd.f32 %v361, %v454
      %v487 = vadd.f32 %v361, %v457
      %v488 = vadd.f32 %v361, %v459
      %v489 = vadd.f32 %v361, %v462
      %v490 = vadd.f32 %v361, %v464
      %v491 = vadd.f32 %v361, %v467
      %v492 = vadd.f32 %v361, %v469
      %v493 = vadd.f32 %v361, %v472
      %v494 = vadd.f32 %v361, %v474
      %v495 = vadd.f32 %v361, %v477
      %v496 = vadd.f32 %v361, %v479
      %v498 = vunpack.c.l.b16 %v321
      %v499 = vpack.c.b16 %v498, %v498
      %vm500 = vsmask.f32 7424
      %v501 = vshrl.u32 %v366, 16
      %v503 = vshll.u32 %v366, 16
      %v505 = vrot.slane %v503, 1
      %v506 = vor.u32 %v501, %v505
      %v508 = vshll.u32 %v499, 16
      %v510 = vrot.slane %v508, 1
      %v511 = vsel %vm500, %v506, %v510
      %v513 = vunpack.c.l.b16 %v325
      %v514 = vpack.c.b16 %v513, %v513
      %v515 = vshrl.u32 %v371, 16
      %v517 = vshll.u32 %v371, 16
      %v519 = vrot.slane %v517, 1
      %v520 = vor.u32 %v515, %v519
      %v522 = vshll.u32 %v514, 16
      %v524 = vrot.slane %v522, 1
      %v525 = vsel %vm500, %v520, %v524
      %v527 = vunpack.c.l.b16 %v329
      %v528 = vpack.c.b16 %v527, %v527
      %v529 = vshrl.u32 %v376, 16
      %v531 = vshll.u32 %v376, 16
      %v533 = vrot.slane %v531, 1
      %v534 = vor.u32 %v529, %v533
      %v536 = vshll.u32 %v528, 16
      %v538 = vrot.slane %v536, 1
      %v539 = vsel %vm500, %v534, %v538
      %v541 = vunpack.c.l.b16 %v333
      %v542 = vpack.c.b16 %v541, %v541
      %v543 = vshrl.u32 %v381, 16
      %v545 = vshll.u32 %v381, 16
      %v547 = vrot.slane %v545, 1
      %v548 = vor.u32 %v543, %v547
      %v550 = vshll.u32 %v542, 16
      %v552 = vrot.slane %v550, 1
      %v553 = vsel %vm500, %v548, %v552
      %v555 = vunpack.c.l.b16 %v337
      %v556 = vpack.c.b16 %v555, %v555
      %v557 = vshrl.u32 %v386, 16
      %v559 = vshll.u32 %v386, 16
      %v561 = vrot.slane %v559, 1
      %v562 = vor.u32 %v557, %v561
      %v564 = vshll.u32 %v556, 16
      %v566 = vrot.slane %v564, 1
      %v567 = vsel %vm500, %v562, %v566
      %v569 = vunpack.c.l.b16 %v341
      %v570 = vpack.c.b16 %v569, %v569
      %v571 = vshrl.u32 %v391, 16
      %v573 = vshll.u32 %v391, 16
      %v575 = vrot.slane %v573, 1
      %v576 = vor.u32 %v571, %v575
      %v578 = vshll.u32 %v570, 16
      %v580 = vrot.slane %v578, 1
      %v581 = vsel %vm500, %v576, %v580
      %v583 = vunpack.c.l.b16 %v345
      %v584 = vpack.c.b16 %v583, %v583
      %v585 = vshrl.u32 %v396, 16
      %v587 = vshll.u32 %v396, 16
      %v589 = vrot.slane %v587, 1
      %v590 = vor.u32 %v585, %v589
      %v592 = vshll.u32 %v584, 16
      %v594 = vrot.slane %v592, 1
      %v595 = vsel %vm500, %v590, %v594
      %v597 = vunpack.c.l.b16 %v349
      %v598 = vpack.c.b16 %v597, %v597
      %v599 = vshrl.u32 %v401, 16
      %v601 = vshll.u32 %v401, 16
      %v603 = vrot.slane %v601, 1
      %v604 = vor.u32 %v599, %v603
      %v606 = vshll.u32 %v598, 16
      %v608 = vrot.slane %v606, 1
      %v609 = vsel %vm500, %v604, %v608
      %s610 = scalar_lea.vmem %s2, 4
      %v611 = vld [vmem:[%s610] sm:$0xf]
      %v613 = vsel %vm403, %v511, 0
      %v616 = vsel %vm403, %v525, 0
      %v619 = vsel %vm403, %v539, 0
      %v622 = vsel %vm403, %v553, 0
      %v625 = vsel %vm403, %v567, 0
      %v628 = vsel %vm403, %v581, 0
      %v631 = vsel %vm403, %v595, 0
      %v634 = vsel %vm403, %v609, 0
      %v637 = vsel %vm428, %v611, 0
      %639 = vmatpush.bf16.msra.mxu0 0
      %640 = vmatpush.bf16.msra.mxu0 0
      %641 = vmatpush.bf16.msra.mxu0 0
      %642 = vmatpush.bf16.msra.mxu0 0
      %643 = vmatpush.bf16.msra.mxu0 0
      %644 = vmatpush.bf16.msra.mxu0 0
      %645 = vmatpush.bf16.msra.mxu0 0
      %646 = vmatpush.bf16.msra.mxu0 %v637
      %647 = vmatmul.bf16.gmra.mxu0 %v613
      %v648 = vpop.f32.mrf.mxu0
      %v649 = vadd.f32 0.0, %v648
      %v650 = vpop.f32.mrf.mxu0
      %v651 = vadd.f32 0.0, %v650
      %652 = vmatmul.bf16.gmra.mxu0 %v616
      %v653 = vpop.f32.mrf.mxu0
      %v654 = vadd.f32 0.0, %v653
      %v655 = vpop.f32.mrf.mxu0
      %v656 = vadd.f32 0.0, %v655
      %657 = vmatmul.bf16.gmra.mxu0 %v619
      %v658 = vpop.f32.mrf.mxu0
      %v659 = vadd.f32 0.0, %v658
      %v660 = vpop.f32.mrf.mxu0
      %v661 = vadd.f32 0.0, %v660
      %662 = vmatmul.bf16.gmra.mxu0 %v622
      %v663 = vpop.f32.mrf.mxu0
      %v664 = vadd.f32 0.0, %v663
      %v665 = vpop.f32.mrf.mxu0
      %v666 = vadd.f32 0.0, %v665
      %667 = vmatmul.bf16.gmra.mxu0 %v625
      %v668 = vpop.f32.mrf.mxu0
      %v669 = vadd.f32 0.0, %v668
      %v670 = vpop.f32.mrf.mxu0
      %v671 = vadd.f32 0.0, %v670
      %672 = vmatmul.bf16.gmra.mxu0 %v628
      %v673 = vpop.f32.mrf.mxu0
      %v674 = vadd.f32 0.0, %v673
      %v675 = vpop.f32.mrf.mxu0
      %v676 = vadd.f32 0.0, %v675
      %677 = vmatmul.bf16.gmra.mxu0 %v631
      %v678 = vpop.f32.mrf.mxu0
      %v679 = vadd.f32 0.0, %v678
      %v680 = vpop.f32.mrf.mxu0
      %v681 = vadd.f32 0.0, %v680
      %682 = vmatmul.bf16.gmra.mxu0 %v634
      %v683 = vpop.f32.mrf.mxu0
      %v684 = vadd.f32 0.0, %v683
      %v685 = vpop.f32.mrf.mxu0
      %v686 = vadd.f32 0.0, %v685
      %687 = vdwg.mxu0
      %v688 = vadd.f32 %v481, %v649
      %v689 = vadd.f32 %v482, %v651
      %v690 = vadd.f32 %v483, %v654
      %v691 = vadd.f32 %v484, %v656
      %v692 = vadd.f32 %v485, %v659
      %v693 = vadd.f32 %v486, %v661
      %v694 = vadd.f32 %v487, %v664
      %v695 = vadd.f32 %v488, %v666
      %v696 = vadd.f32 %v489, %v669
      %v697 = vadd.f32 %v490, %v671
      %v698 = vadd.f32 %v491, %v674
      %v699 = vadd.f32 %v492, %v676
      %v700 = vadd.f32 %v493, %v679
      %v701 = vadd.f32 %v494, %v681
      %v702 = vadd.f32 %v495, %v684
      %v703 = vadd.f32 %v496, %v686
      %vm704 = vcmask 1046528
      %v705 = vrot.slane %v366, 1
      %v706 = vrot.slane %v499, 1
      %v707 = vsel %vm704, %v705, %v706
      %v708 = vrot.slane %v371, 1
      %v709 = vrot.slane %v514, 1
      %v710 = vsel %vm704, %v708, %v709
      %v711 = vrot.slane %v376, 1
      %v712 = vrot.slane %v528, 1
      %v713 = vsel %vm704, %v711, %v712
      %v714 = vrot.slane %v381, 1
      %v715 = vrot.slane %v542, 1
      %v716 = vsel %vm704, %v714, %v715
      %v717 = vrot.slane %v386, 1
      %v718 = vrot.slane %v556, 1
      %v719 = vsel %vm704, %v717, %v718
      %v720 = vrot.slane %v391, 1
      %v721 = vrot.slane %v570, 1
      %v722 = vsel %vm704, %v720, %v721
      %v723 = vrot.slane %v396, 1
      %v724 = vrot.slane %v584, 1
      %v725 = vsel %vm704, %v723, %v724
      %v726 = vrot.slane %v401, 1
      %v727 = vrot.slane %v598, 1
      %v728 = vsel %vm704, %v726, %v727
      %s729 = scalar_lea.vmem %s2, 8
      %v730 = vld [vmem:[%s729] sm:$0xf]
      %v732 = vsel %vm403, %v707, 0
      %v735 = vsel %vm403, %v710, 0
      %v738 = vsel %vm403, %v713, 0
      %v741 = vsel %vm403, %v716, 0
      %v744 = vsel %vm403, %v719, 0
      %v747 = vsel %vm403, %v722, 0
      %v750 = vsel %vm403, %v725, 0
      %v753 = vsel %vm403, %v728, 0
      %v756 = vsel %vm428, %v730, 0
      %758 = vmatpush.bf16.msra.mxu0 0
      %759 = vmatpush.bf16.msra.mxu0 0
      %760 = vmatpush.bf16.msra.mxu0 0
      %761 = vmatpush.bf16.msra.mxu0 0
      %762 = vmatpush.bf16.msra.mxu0 0
      %763 = vmatpush.bf16.msra.mxu0 0
      %764 = vmatpush.bf16.msra.mxu0 0
      %765 = vmatpush.bf16.msra.mxu0 %v756
      %766 = vmatmul.bf16.gmra.mxu0 %v732
      %v767 = vpop.f32.mrf.mxu0
      %v768 = vadd.f32 0.0, %v767
      %v769 = vpop.f32.mrf.mxu0
      %v770 = vadd.f32 0.0, %v769
      %771 = vmatmul.bf16.gmra.mxu0 %v735
      %v772 = vpop.f32.mrf.mxu0
      %v773 = vadd.f32 0.0, %v772
      %v774 = vpop.f32.mrf.mxu0
      %v775 = vadd.f32 0.0, %v774
      %776 = vmatmul.bf16.gmra.mxu0 %v738
      %v777 = vpop.f32.mrf.mxu0
      %v778 = vadd.f32 0.0, %v777
      %v779 = vpop.f32.mrf.mxu0
      %v780 = vadd.f32 0.0, %v779
      %781 = vmatmul.bf16.gmra.mxu0 %v741
      %v782 = vpop.f32.mrf.mxu0
      %v783 = vadd.f32 0.0, %v782
      %v784 = vpop.f32.mrf.mxu0
      %v785 = vadd.f32 0.0, %v784
      %786 = vmatmul.bf16.gmra.mxu0 %v744
      %v787 = vpop.f32.mrf.mxu0
      %v788 = vadd.f32 0.0, %v787
      %v789 = vpop.f32.mrf.mxu0
      %v790 = vadd.f32 0.0, %v789
      %791 = vmatmul.bf16.gmra.mxu0 %v747
      %v792 = vpop.f32.mrf.mxu0
      %v793 = vadd.f32 0.0, %v792
      %v794 = vpop.f32.mrf.mxu0
      %v795 = vadd.f32 0.0, %v794
      %796 = vmatmul.bf16.gmra.mxu0 %v750
      %v797 = vpop.f32.mrf.mxu0
      %v798 = vadd.f32 0.0, %v797
      %v799 = vpop.f32.mrf.mxu0
      %v800 = vadd.f32 0.0, %v799
      %801 = vmatmul.bf16.gmra.mxu0 %v753
      %v802 = vpop.f32.mrf.mxu0
      %v803 = vadd.f32 0.0, %v802
      %v804 = vpop.f32.mrf.mxu0
      %v805 = vadd.f32 0.0, %v804
      %806 = vdwg.mxu0
      %v807 = vadd.f32 %v688, %v768
      %v808 = vadd.f32 %v689, %v770
      %v809 = vadd.f32 %v690, %v773
      %v810 = vadd.f32 %v691, %v775
      %v811 = vadd.f32 %v692, %v778
      %v812 = vadd.f32 %v693, %v780
      %v813 = vadd.f32 %v694, %v783
      %v814 = vadd.f32 %v695, %v785
      %v815 = vadd.f32 %v696, %v788
      %v816 = vadd.f32 %v697, %v790
      %v817 = vadd.f32 %v698, %v793
      %v818 = vadd.f32 %v699, %v795
      %v819 = vadd.f32 %v700, %v798
      %v820 = vadd.f32 %v701, %v800
      %v821 = vadd.f32 %v702, %v803
      %v822 = vadd.f32 %v703, %v805
      %v825 = vunpack.c.l.b16 %v350
      %v826 = vunpack.c.l.b16 %v351
      %v827 = vpack.c.b16 %v826, %v825
      %s828 = scalar_lea.vmem %s2, 12
      %v829 = vld [vmem:[%s828] sm:$0xf]
      %v831 = vsel %vm403, %v827, 0
      %v834 = vsel %vm428, %v829, 0
      %836 = vmatpush.bf16.msra.mxu0 0
      %837 = vmatpush.bf16.msra.mxu0 0
      %838 = vmatpush.bf16.msra.mxu0 0
      %839 = vmatpush.bf16.msra.mxu0 0
      %840 = vmatpush.bf16.msra.mxu0 0
      %841 = vmatpush.bf16.msra.mxu0 0
      %842 = vmatpush.bf16.msra.mxu0 0
      %843 = vmatpush.bf16.msra.mxu0 %v834
      %844 = vmatmul.bf16.gmra.mxu0 %v408
      %v845 = vpop.f32.mrf.mxu0
      %v846 = vadd.f32 0.0, %v845
      %v847 = vpop.f32.mrf.mxu0
      %v848 = vadd.f32 0.0, %v847
      %849 = vmatmul.bf16.gmra.mxu0 %v411
      %v850 = vpop.f32.mrf.mxu0
      %v851 = vadd.f32 0.0, %v850
      %v852 = vpop.f32.mrf.mxu0
      %v853 = vadd.f32 0.0, %v852
      %854 = vmatmul.bf16.gmra.mxu0 %v414
      %v855 = vpop.f32.mrf.mxu0
      %v856 = vadd.f32 0.0, %v855
      %v857 = vpop.f32.mrf.mxu0
      %v858 = vadd.f32 0.0, %v857
      %859 = vmatmul.bf16.gmra.mxu0 %v417
      %v860 = vpop.f32.mrf.mxu0
      %v861 = vadd.f32 0.0, %v860
      %v862 = vpop.f32.mrf.mxu0
      %v863 = vadd.f32 0.0, %v862
      %864 = vmatmul.bf16.gmra.mxu0 %v420
      %v865 = vpop.f32.mrf.mxu0
      %v866 = vadd.f32 0.0, %v865
      %v867 = vpop.f32.mrf.mxu0
      %v868 = vadd.f32 0.0, %v867
      %869 = vmatmul.bf16.gmra.mxu0 %v423
      %v870 = vpop.f32.mrf.mxu0
      %v871 = vadd.f32 0.0, %v870
      %v872 = vpop.f32.mrf.mxu0
      %v873 = vadd.f32 0.0, %v872
      %874 = vmatmul.bf16.gmra.mxu0 %v426
      %v875 = vpop.f32.mrf.mxu0
      %v876 = vadd.f32 0.0, %v875
      %v877 = vpop.f32.mrf.mxu0
      %v878 = vadd.f32 0.0, %v877
      %879 = vmatmul.bf16.gmra.mxu0 %v831
      %v880 = vpop.f32.mrf.mxu0
      %v881 = vadd.f32 0.0, %v880
      %v882 = vpop.f32.mrf.mxu0
      %v883 = vadd.f32 0.0, %v882
      %884 = vdwg.mxu0
      %v885 = vadd.f32 %v807, %v846
      %v886 = vadd.f32 %v808, %v848
      %v887 = vadd.f32 %v809, %v851
      %v888 = vadd.f32 %v810, %v853
      %v889 = vadd.f32 %v811, %v856
      %v890 = vadd.f32 %v812, %v858
      %v891 = vadd.f32 %v813, %v861
      %v892 = vadd.f32 %v814, %v863
      %v893 = vadd.f32 %v815, %v866
      %v894 = vadd.f32 %v816, %v868
      %v895 = vadd.f32 %v817, %v871
      %v896 = vadd.f32 %v818, %v873
      %v897 = vadd.f32 %v819, %v876
      %v898 = vadd.f32 %v820, %v878
      %v899 = vadd.f32 %v821, %v881
      %v900 = vadd.f32 %v822, %v883
      %v902 = vunpack.c.l.b16 %v352
      %v903 = vpack.c.b16 %v902, %v902
      %v904 = vshrl.u32 %v827, 16
      %v906 = vshll.u32 %v827, 16
      %v908 = vrot.slane %v906, 1
      %v909 = vor.u32 %v904, %v908
      %v911 = vshll.u32 %v903, 16
      %v913 = vrot.slane %v911, 1
      %v914 = vsel %vm500, %v909, %v913
      %s915 = scalar_lea.vmem %s2, 16
      %v916 = vld [vmem:[%s915] sm:$0xf]
      %v918 = vsel %vm403, %v914, 0
      %v921 = vsel %vm428, %v916, 0
      %923 = vmatpush.bf16.msra.mxu0 0
      %924 = vmatpush.bf16.msra.mxu0 0
      %925 = vmatpush.bf16.msra.mxu0 0
      %926 = vmatpush.bf16.msra.mxu0 0
      %927 = vmatpush.bf16.msra.mxu0 0
      %928 = vmatpush.bf16.msra.mxu0 0
      %929 = vmatpush.bf16.msra.mxu0 0
      %930 = vmatpush.bf16.msra.mxu0 %v921
      %931 = vmatmul.bf16.gmra.mxu0 %v616
      %v932 = vpop.f32.mrf.mxu0
      %v933 = vadd.f32 0.0, %v932
      %v934 = vpop.f32.mrf.mxu0
      %v935 = vadd.f32 0.0, %v934
      %936 = vmatmul.bf16.gmra.mxu0 %v619
      %v937 = vpop.f32.mrf.mxu0
      %v938 = vadd.f32 0.0, %v937
      %v939 = vpop.f32.mrf.mxu0
      %v940 = vadd.f32 0.0, %v939
      %941 = vmatmul.bf16.gmra.mxu0 %v622
      %v942 = vpop.f32.mrf.mxu0
      %v943 = vadd.f32 0.0, %v942
      %v944 = vpop.f32.mrf.mxu0
      %v945 = vadd.f32 0.0, %v944
      %946 = vmatmul.bf16.gmra.mxu0 %v625
      %v947 = vpop.f32.mrf.mxu0
      %v948 = vadd.f32 0.0, %v947
      %v949 = vpop.f32.mrf.mxu0
      %v950 = vadd.f32 0.0, %v949
      %951 = vmatmul.bf16.gmra.mxu0 %v628
      %v952 = vpop.f32.mrf.mxu0
      %v953 = vadd.f32 0.0, %v952
      %v954 = vpop.f32.mrf.mxu0
      %v955 = vadd.f32 0.0, %v954
      %956 = vmatmul.bf16.gmra.mxu0 %v631
      %v957 = vpop.f32.mrf.mxu0
      %v958 = vadd.f32 0.0, %v957
      %v959 = vpop.f32.mrf.mxu0
      %v960 = vadd.f32 0.0, %v959
      %961 = vmatmul.bf16.gmra.mxu0 %v634
      %v962 = vpop.f32.mrf.mxu0
      %v963 = vadd.f32 0.0, %v962
      %v964 = vpop.f32.mrf.mxu0
      %v965 = vadd.f32 0.0, %v964
      %966 = vmatmul.bf16.gmra.mxu0 %v918
      %v967 = vpop.f32.mrf.mxu0
      %v968 = vadd.f32 0.0, %v967
      %v969 = vpop.f32.mrf.mxu0
      %v970 = vadd.f32 0.0, %v969
      %971 = vdwg.mxu0
      %v972 = vadd.f32 %v885, %v933
      %v973 = vadd.f32 %v886, %v935
      %v974 = vadd.f32 %v887, %v938
      %v975 = vadd.f32 %v888, %v940
      %v976 = vadd.f32 %v889, %v943
      %v977 = vadd.f32 %v890, %v945
      %v978 = vadd.f32 %v891, %v948
      %v979 = vadd.f32 %v892, %v950
      %v980 = vadd.f32 %v893, %v953
      %v981 = vadd.f32 %v894, %v955
      %v982 = vadd.f32 %v895, %v958
      %v983 = vadd.f32 %v896, %v960
      %v984 = vadd.f32 %v897, %v963
      %v985 = vadd.f32 %v898, %v965
      %v986 = vadd.f32 %v899, %v968
      %v987 = vadd.f32 %v900, %v970
      %v988 = vrot.slane %v827, 1
      %v989 = vrot.slane %v903, 1
      %v990 = vsel %vm704, %v988, %v989
      %s991 = scalar_lea.vmem %s2, 20
      %v992 = vld [vmem:[%s991] sm:$0xf]
      %v994 = vsel %vm403, %v990, 0
      %v997 = vsel %vm428, %v992, 0
      %999 = vmatpush.bf16.msra.mxu0 0
      %1000 = vmatpush.bf16.msra.mxu0 0
      %1001 = vmatpush.bf16.msra.mxu0 0
      %1002 = vmatpush.bf16.msra.mxu0 0
      %1003 = vmatpush.bf16.msra.mxu0 0
      %1004 = vmatpush.bf16.msra.mxu0 0
      %1005 = vmatpush.bf16.msra.mxu0 0
      %1006 = vmatpush.bf16.msra.mxu0 %v997
      %1007 = vmatmul.bf16.gmra.mxu0 %v735
      %v1008 = vpop.f32.mrf.mxu0
      %v1009 = vadd.f32 0.0, %v1008
      %v1010 = vpop.f32.mrf.mxu0
      %v1011 = vadd.f32 0.0, %v1010
      %1012 = vmatmul.bf16.gmra.mxu0 %v738
      %v1013 = vpop.f32.mrf.mxu0
      %v1014 = vadd.f32 0.0, %v1013
      %v1015 = vpop.f32.mrf.mxu0
      %v1016 = vadd.f32 0.0, %v1015
      %1017 = vmatmul.bf16.gmra.mxu0 %v741
      %v1018 = vpop.f32.mrf.mxu0
      %v1019 = vadd.f32 0.0, %v1018
      %v1020 = vpop.f32.mrf.mxu0
      %v1021 = vadd.f32 0.0, %v1020
      %1022 = vmatmul.bf16.gmra.mxu0 %v744
      %v1023 = vpop.f32.mrf.mxu0
      %v1024 = vadd.f32 0.0, %v1023
      %v1025 = vpop.f32.mrf.mxu0
      %v1026 = vadd.f32 0.0, %v1025
      %1027 = vmatmul.bf16.gmra.mxu0 %v747
      %v1028 = vpop.f32.mrf.mxu0
      %v1029 = vadd.f32 0.0, %v1028
      %v1030 = vpop.f32.mrf.mxu0
      %v1031 = vadd.f32 0.0, %v1030
      %1032 = vmatmul.bf16.gmra.mxu0 %v750
      %v1033 = vpop.f32.mrf.mxu0
      %v1034 = vadd.f32 0.0, %v1033
      %v1035 = vpop.f32.mrf.mxu0
      %v1036 = vadd.f32 0.0, %v1035
      %1037 = vmatmul.bf16.gmra.mxu0 %v753
      %v1038 = vpop.f32.mrf.mxu0
      %v1039 = vadd.f32 0.0, %v1038
      %v1040 = vpop.f32.mrf.mxu0
      %v1041 = vadd.f32 0.0, %v1040
      %1042 = vmatmul.bf16.gmra.mxu0 %v994
      %v1043 = vpop.f32.mrf.mxu0
      %v1044 = vadd.f32 0.0, %v1043
      %v1045 = vpop.f32.mrf.mxu0
      %v1046 = vadd.f32 0.0, %v1045
      %1047 = vdwg.mxu0
      %v1048 = vadd.f32 %v972, %v1009
      %v1049 = vadd.f32 %v973, %v1011
      %v1050 = vadd.f32 %v974, %v1014
      %v1051 = vadd.f32 %v975, %v1016
      %v1052 = vadd.f32 %v976, %v1019
      %v1053 = vadd.f32 %v977, %v1021
      %v1054 = vadd.f32 %v978, %v1024
      %v1055 = vadd.f32 %v979, %v1026
      %v1056 = vadd.f32 %v980, %v1029
      %v1057 = vadd.f32 %v981, %v1031
      %v1058 = vadd.f32 %v982, %v1034
      %v1059 = vadd.f32 %v983, %v1036
      %v1060 = vadd.f32 %v984, %v1039
      %v1061 = vadd.f32 %v985, %v1041
      %v1062 = vadd.f32 %v986, %v1044
      %v1063 = vadd.f32 %v987, %v1046
      %v1066 = vunpack.c.l.b16 %v354
      %v1067 = vunpack.c.l.b16 %v355
      %v1068 = vpack.c.b16 %v1067, %v1066
      %s1069 = scalar_lea.vmem %s2, 24
      %v1070 = vld [vmem:[%s1069] sm:$0xf]
      %v1072 = vsel %vm403, %v1068, 0
      %v1075 = vsel %vm428, %v1070, 0
      %1077 = vmatpush.bf16.msra.mxu0 0
      %1078 = vmatpush.bf16.msra.mxu0 0
      %1079 = vmatpush.bf16.msra.mxu0 0
      %1080 = vmatpush.bf16.msra.mxu0 0
      %1081 = vmatpush.bf16.msra.mxu0 0
      %1082 = vmatpush.bf16.msra.mxu0 0
      %1083 = vmatpush.bf16.msra.mxu0 0
      %1084 = vmatpush.bf16.msra.mxu0 %v1075
      %1085 = vmatmul.bf16.gmra.mxu0 %v411
      %v1086 = vpop.f32.mrf.mxu0
      %v1087 = vadd.f32 0.0, %v1086
      %v1088 = vpop.f32.mrf.mxu0
      %v1089 = vadd.f32 0.0, %v1088
      %1090 = vmatmul.bf16.gmra.mxu0 %v414
      %v1091 = vpop.f32.mrf.mxu0
      %v1092 = vadd.f32 0.0, %v1091
      %v1093 = vpop.f32.mrf.mxu0
      %v1094 = vadd.f32 0.0, %v1093
      %1095 = vmatmul.bf16.gmra.mxu0 %v417
      %v1096 = vpop.f32.mrf.mxu0
      %v1097 = vadd.f32 0.0, %v1096
      %v1098 = vpop.f32.mrf.mxu0
      %v1099 = vadd.f32 0.0, %v1098
      %1100 = vmatmul.bf16.gmra.mxu0 %v420
      %v1101 = vpop.f32.mrf.mxu0
      %v1102 = vadd.f32 0.0, %v1101
      %v1103 = vpop.f32.mrf.mxu0
      %v1104 = vadd.f32 0.0, %v1103
      %1105 = vmatmul.bf16.gmra.mxu0 %v423
      %v1106 = vpop.f32.mrf.mxu0
      %v1107 = vadd.f32 0.0, %v1106
      %v1108 = vpop.f32.mrf.mxu0
      %v1109 = vadd.f32 0.0, %v1108
      %1110 = vmatmul.bf16.gmra.mxu0 %v426
      %v1111 = vpop.f32.mrf.mxu0
      %v1112 = vadd.f32 0.0, %v1111
      %v1113 = vpop.f32.mrf.mxu0
      %v1114 = vadd.f32 0.0, %v1113
      %1115 = vmatmul.bf16.gmra.mxu0 %v831
      %v1116 = vpop.f32.mrf.mxu0
      %v1117 = vadd.f32 0.0, %v1116
      %v1118 = vpop.f32.mrf.mxu0
      %v1119 = vadd.f32 0.0, %v1118
      %1120 = vmatmul.bf16.gmra.mxu0 %v1072
      %v1121 = vpop.f32.mrf.mxu0
      %v1122 = vadd.f32 0.0, %v1121
      %v1123 = vpop.f32.mrf.mxu0
      %v1124 = vadd.f32 0.0, %v1123
      %1125 = vdwg.mxu0
      %v1126 = vadd.f32 %v1048, %v1087
      %v1127 = vadd.f32 %v1049, %v1089
      %v1128 = vadd.f32 %v1050, %v1092
      %v1129 = vadd.f32 %v1051, %v1094
      %v1130 = vadd.f32 %v1052, %v1097
      %v1131 = vadd.f32 %v1053, %v1099
      %v1132 = vadd.f32 %v1054, %v1102
      %v1133 = vadd.f32 %v1055, %v1104
      %v1134 = vadd.f32 %v1056, %v1107
      %v1135 = vadd.f32 %v1057, %v1109
      %v1136 = vadd.f32 %v1058, %v1112
      %v1137 = vadd.f32 %v1059, %v1114
      %v1138 = vadd.f32 %v1060, %v1117
      %v1139 = vadd.f32 %v1061, %v1119
      %v1140 = vadd.f32 %v1062, %v1122
      %v1141 = vadd.f32 %v1063, %v1124
      %v1143 = vunpack.c.l.b16 %v356
      %v1144 = vpack.c.b16 %v1143, %v1143
      %v1145 = vshrl.u32 %v1068, 16
      %v1147 = vshll.u32 %v1068, 16
      %v1149 = vrot.slane %v1147, 1
      %v1150 = vor.u32 %v1145, %v1149
      %v1152 = vshll.u32 %v1144, 16
      %v1154 = vrot.slane %v1152, 1
      %v1155 = vsel %vm500, %v1150, %v1154
      %s1156 = scalar_lea.vmem %s2, 28
      %v1157 = vld [vmem:[%s1156] sm:$0xf]
      %v1159 = vsel %vm403, %v1155, 0
      %v1162 = vsel %vm428, %v1157, 0
      %1164 = vmatpush.bf16.msra.mxu0 0
      %1165 = vmatpush.bf16.msra.mxu0 0
      %1166 = vmatpush.bf16.msra.mxu0 0
      %1167 = vmatpush.bf16.msra.mxu0 0
      %1168 = vmatpush.bf16.msra.mxu0 0
      %1169 = vmatpush.bf16.msra.mxu0 0
      %1170 = vmatpush.bf16.msra.mxu0 0
      %1171 = vmatpush.bf16.msra.mxu0 %v1162
      %1172 = vmatmul.bf16.gmra.mxu0 %v619
      %v1173 = vpop.f32.mrf.mxu0
      %v1174 = vadd.f32 0.0, %v1173
      %v1175 = vpop.f32.mrf.mxu0
      %v1176 = vadd.f32 0.0, %v1175
      %1177 = vmatmul.bf16.gmra.mxu0 %v622
      %v1178 = vpop.f32.mrf.mxu0
      %v1179 = vadd.f32 0.0, %v1178
      %v1180 = vpop.f32.mrf.mxu0
      %v1181 = vadd.f32 0.0, %v1180
      %1182 = vmatmul.bf16.gmra.mxu0 %v625
      %v1183 = vpop.f32.mrf.mxu0
      %v1184 = vadd.f32 0.0, %v1183
      %v1185 = vpop.f32.mrf.mxu0
      %v1186 = vadd.f32 0.0, %v1185
      %1187 = vmatmul.bf16.gmra.mxu0 %v628
      %v1188 = vpop.f32.mrf.mxu0
      %v1189 = vadd.f32 0.0, %v1188
      %v1190 = vpop.f32.mrf.mxu0
      %v1191 = vadd.f32 0.0, %v1190
      %1192 = vmatmul.bf16.gmra.mxu0 %v631
      %v1193 = vpop.f32.mrf.mxu0
      %v1194 = vadd.f32 0.0, %v1193
      %v1195 = vpop.f32.mrf.mxu0
      %v1196 = vadd.f32 0.0, %v1195
      %1197 = vmatmul.bf16.gmra.mxu0 %v634
      %v1198 = vpop.f32.mrf.mxu0
      %v1199 = vadd.f32 0.0, %v1198
      %v1200 = vpop.f32.mrf.mxu0
      %v1201 = vadd.f32 0.0, %v1200
      %1202 = vmatmul.bf16.gmra.mxu0 %v918
      %v1203 = vpop.f32.mrf.mxu0
      %v1204 = vadd.f32 0.0, %v1203
      %v1205 = vpop.f32.mrf.mxu0
      %v1206 = vadd.f32 0.0, %v1205
      %1207 = vmatmul.bf16.gmra.mxu0 %v1159
      %v1208 = vpop.f32.mrf.mxu0
      %v1209 = vadd.f32 0.0, %v1208
      %v1210 = vpop.f32.mrf.mxu0
      %v1211 = vadd.f32 0.0, %v1210
      %1212 = vdwg.mxu0
      %v1213 = vadd.f32 %v1126, %v1174
      %v1214 = vadd.f32 %v1127, %v1176
      %v1215 = vadd.f32 %v1128, %v1179
      %v1216 = vadd.f32 %v1129, %v1181
      %v1217 = vadd.f32 %v1130, %v1184
      %v1218 = vadd.f32 %v1131, %v1186
      %v1219 = vadd.f32 %v1132, %v1189
      %v1220 = vadd.f32 %v1133, %v1191
      %v1221 = vadd.f32 %v1134, %v1194
      %v1222 = vadd.f32 %v1135, %v1196
      %v1223 = vadd.f32 %v1136, %v1199
      %v1224 = vadd.f32 %v1137, %v1201
      %v1225 = vadd.f32 %v1138, %v1204
      %v1226 = vadd.f32 %v1139, %v1206
      %v1227 = vadd.f32 %v1140, %v1209
      %v1228 = vadd.f32 %v1141, %v1211
      %v1229 = vrot.slane %v1068, 1
      %v1230 = vrot.slane %v1144, 1
      %v1231 = vsel %vm704, %v1229, %v1230
      %s1232 = scalar_lea.vmem %s2, 32
      %v1233 = vld [vmem:[%s1232] sm:$0xf]
      %v1235 = vsel %vm403, %v1231, 0
      %v1238 = vsel %vm428, %v1233, 0
      %1240 = vmatpush.bf16.msra.mxu0 0
      %1241 = vmatpush.bf16.msra.mxu0 0
      %1242 = vmatpush.bf16.msra.mxu0 0
      %1243 = vmatpush.bf16.msra.mxu0 0
      %1244 = vmatpush.bf16.msra.mxu0 0
      %1245 = vmatpush.bf16.msra.mxu0 0
      %1246 = vmatpush.bf16.msra.mxu0 0
      %1247 = vmatpush.bf16.msra.mxu0 %v1238
      %1248 = vmatmul.bf16.gmra.mxu0 %v738
      %v1249 = vpop.f32.mrf.mxu0
      %v1250 = vadd.f32 0.0, %v1249
      %v1251 = vpop.f32.mrf.mxu0
      %v1252 = vadd.f32 0.0, %v1251
      %1253 = vmatmul.bf16.gmra.mxu0 %v741
      %v1254 = vpop.f32.mrf.mxu0
      %v1255 = vadd.f32 0.0, %v1254
      %v1256 = vpop.f32.mrf.mxu0
      %v1257 = vadd.f32 0.0, %v1256
      %1258 = vmatmul.bf16.gmra.mxu0 %v744
      %v1259 = vpop.f32.mrf.mxu0
      %v1260 = vadd.f32 0.0, %v1259
      %v1261 = vpop.f32.mrf.mxu0
      %v1262 = vadd.f32 0.0, %v1261
      %1263 = vmatmul.bf16.gmra.mxu0 %v747
      %v1264 = vpop.f32.mrf.mxu0
      %v1265 = vadd.f32 0.0, %v1264
      %v1266 = vpop.f32.mrf.mxu0
      %v1267 = vadd.f32 0.0, %v1266
      %1268 = vmatmul.bf16.gmra.mxu0 %v750
      %v1269 = vpop.f32.mrf.mxu0
      %v1270 = vadd.f32 0.0, %v1269
      %v1271 = vpop.f32.mrf.mxu0
      %v1272 = vadd.f32 0.0, %v1271
      %1273 = vmatmul.bf16.gmra.mxu0 %v753
      %v1274 = vpop.f32.mrf.mxu0
      %v1275 = vadd.f32 0.0, %v1274
      %v1276 = vpop.f32.mrf.mxu0
      %v1277 = vadd.f32 0.0, %v1276
      %1278 = vmatmul.bf16.gmra.mxu0 %v994
      %v1279 = vpop.f32.mrf.mxu0
      %v1280 = vadd.f32 0.0, %v1279
      %v1281 = vpop.f32.mrf.mxu0
      %v1282 = vadd.f32 0.0, %v1281
      %1283 = vmatmul.bf16.gmra.mxu0 %v1235
      %v1284 = vpop.f32.mrf.mxu0
      %v1285 = vadd.f32 0.0, %v1284
      %v1286 = vpop.f32.mrf.mxu0
      %v1287 = vadd.f32 0.0, %v1286
      %1288 = vdwg.mxu0
      %v1289 = vadd.f32 %v1213, %v1250
      %v1290 = vadd.f32 %v1214, %v1252
      %v1291 = vadd.f32 %v1215, %v1255
      %v1292 = vadd.f32 %v1216, %v1257
      %v1293 = vadd.f32 %v1217, %v1260
      %v1294 = vadd.f32 %v1218, %v1262
      %v1295 = vadd.f32 %v1219, %v1265
      %v1296 = vadd.f32 %v1220, %v1267
      %v1297 = vadd.f32 %v1221, %v1270
      %v1298 = vadd.f32 %v1222, %v1272
      %v1299 = vadd.f32 %v1223, %v1275
      %v1300 = vadd.f32 %v1224, %v1277
      %v1301 = vadd.f32 %v1225, %v1280
      %v1302 = vadd.f32 %v1226, %v1282
      %v1303 = vadd.f32 %v1227, %v1285
      %v1304 = vadd.f32 %v1228, %v1287
      %v1305 = vmax.f32 %v1289, 0.0
      %v1306 = vmax.f32 %v1290, 0.0
      %v1307 = vmax.f32 %v1291, 0.0
      %v1308 = vmax.f32 %v1292, 0.0
      %v1309 = vmax.f32 %v1293, 0.0
      %v1310 = vmax.f32 %v1294, 0.0
      %v1311 = vmax.f32 %v1295, 0.0
      %v1312 = vmax.f32 %v1296, 0.0
      %v1313 = vmax.f32 %v1297, 0.0
      %v1314 = vmax.f32 %v1298, 0.0
      %v1315 = vmax.f32 %v1299, 0.0
      %v1316 = vmax.f32 %v1300, 0.0
      %v1317 = vmax.f32 %v1301, 0.0
      %v1318 = vmax.f32 %v1302, 0.0
      %v1319 = vmax.f32 %v1303, 0.0
      %v1320 = vmax.f32 %v1304, 0.0
      %v1321 = vpack.c.bf16 %v1305, %v1305
      %v1322 = vpack.c.bf16 %v1306, %v1306
      %v1323 = vpack.c.bf16 %v1307, %v1307
      %v1324 = vpack.c.bf16 %v1308, %v1308
      %v1325 = vpack.c.bf16 %v1309, %v1309
      %v1326 = vpack.c.bf16 %v1310, %v1310
      %v1327 = vpack.c.bf16 %v1311, %v1311
      %v1328 = vpack.c.bf16 %v1312, %v1312
      %v1329 = vpack.c.bf16 %v1313, %v1313
      %v1330 = vpack.c.bf16 %v1314, %v1314
      %v1331 = vpack.c.bf16 %v1315, %v1315
      %v1332 = vpack.c.bf16 %v1316, %v1316
      %v1333 = vpack.c.bf16 %v1317, %v1317
      %v1334 = vpack.c.bf16 %v1318, %v1318
      %v1335 = vpack.c.bf16 %v1319, %v1319
      %v1336 = vpack.c.bf16 %v1320, %v1320
      %1337 = vst [vmem:[%s314] sm:$0xf] %v1321
      %1338 = vst [vmem:[%s314 + $0x4] sm:$0xf] %v1322
      %1339 = vst [vmem:[%s314 + $0x8] sm:$0xf] %v1323
      %1340 = vst [vmem:[%s314 + $0xc] sm:$0xf] %v1324
      %1341 = vst [vmem:[%s314 + $0x10] sm:$0xf] %v1325
      %1342 = vst [vmem:[%s314 + $0x14] sm:$0xf] %v1326
      %1343 = vst [vmem:[%s314 + $0x18] sm:$0xf] %v1327
      %1344 = vst [vmem:[%s314 + $0x1c] sm:$0xf] %v1328
      %1345 = vst [vmem:[%s314 + $0x20] sm:$0xf] %v1329
      %1346 = vst [vmem:[%s314 + $0x24] sm:$0xf] %v1330
      %1347 = vst [vmem:[%s314 + $0x28] sm:$0xf] %v1331
      %1348 = vst [vmem:[%s314 + $0x2c] sm:$0xf] %v1332
      %1349 = vst [vmem:[%s314 + $0x30] sm:$0xf] %v1333
      %1350 = vst [vmem:[%s314 + $0x34] sm:$0xf] %v1334
      %1351 = vst [vmem:[%s314 + $0x38] sm:$0xf] %v1335
      %1352 = vst [vmem:[%s314 + $0x3c] sm:$0xf] %v1336
      %s1353 = smul.u32 %s19, 2
      %s1354 = sadd.s32 %s1353, %s20
      %s1355 = smul.u32 16, %s1354
      %p1356 = scmp.lt.s32.totalorder %s1355, 63
      %s1357 = scalar_select %p1356, %s1355, 63
      %s1358 = smul.addr %s1357, 4
      %s1359 = scalar_lea.vmem %s4, %s1358
      // Predicated region
      $region37: #{dcn_sep_head_forward.9} parent=35 // pred_check
        %p1360 = pneg %p151
      $region38: #{dcn_sep_head_forward.9} parent=35 // pred_check_branch
        %1362 = sbr.rel (%p1360) target = $region40
      $region39: #{dcn_sep_head_forward.9} parent=35 // pred_region
        %s1363 = smul.u32 %s19, 2
        %s1364 = sadd.s32 %s1363, %s20
        %s1365 = smul.u32 16, %s1364
      $region40: #{dcn_sep_head_forward.9} parent=35 // pred_fallthru
        _
    $region36: #{dcn_sep_head_forward.9} parent=5 // pred_fallthru
      _
    %p1366 = scmp.le.s32.totalorder 2, %s10
    // Predicated region
    $region41: #{dcn_sep_head_forward.9} parent=5 // pred_check
      %p1367 = pneg %p1366
    $region42: #{dcn_sep_head_forward.9} parent=5 // pred_check_branch
      %1369 = sbr.rel (%p1367) target = $region44
    $region43: #{dcn_sep_head_forward.9} parent=5 // pred_region
      %s1370 = ssub.s32 %s10, 2
      // Predicated region
      $region45: #{dcn_sep_head_forward.9} parent=43 // pred_check
        %p1371 = pneg %p157
      $region46: #{dcn_sep_head_forward.9} parent=43 // pred_check_branch
        %1373 = sbr.rel (%p1371) target = $region48
      $region47: #{dcn_sep_head_forward.9} parent=43 // pred_region
        %s1374 = smul.u32 %s21, 2
        %s1375 = sadd.s32 %s1374, %s22
        %s1376 = smul.u32 16, %s1375
        %p1377 = scmp.lt.s32.totalorder %s1376, 63
        %s1378 = scalar_select %p1377, %s1376, 63
        %s1379 = smul.addr %s1378, 4
        %s1380 = scalar_lea.vmem %s4, %s1379
      $region48: #{dcn_sep_head_forward.9} parent=43 // pred_fallthru
        _
    $region44: #{dcn_sep_head_forward.9} parent=5 // pred_fallthru
      _
  $region6: #{dcn_sep_head_forward.9} parent=0 // loop_footer
    %s14 = sadd.s32 1, %s10
  $region7: #{dcn_sep_head_forward.9} parent=0 // loop_footer_branch
    %9 = sbr.rel target = $region3
  $region8: #{dcn_sep_head_forward.9} parent=0 // loop_exit
    _

// kernel: dcn_sep_head_forward.10
$region0: #{dcn_sep_head_forward.10}
  #allocation0 [shape = 'u32[]', space=smem, size = 0x4, offset = 0x4, fixed_abs, tag = 'smem constant byte address 0x4 - core index']
  #allocation1 [shape = 'u32[72,128]{1,0:T(1,128)}', space=vmem, size = 0x9000, scoped, tag = 'internal scratch']
  %s0 = inlined_call_operand.vmem [shape: bf16[2,18,18,128], index: 0, kind: input, shape index: {}, may-alias: {0,1}]
  %s1 = inlined_call_operand.vmem [shape: bf16[2,18,18,128], index: 1, kind: input, shape index: {}, may-alias: {0,1}]
  %s2 = inlined_call_operand.vmem [shape: bf16[9,128,128], index: 2, kind: input, shape index: {}]
  %s3 = inlined_call_operand.vmem [shape: f32[1,128], index: 3, kind: input, shape index: {}]
  %s4 = inlined_call_operand.vmem [shape: f32[512,128], index: 4, kind: output, shape index: {}]
  %s5 = sld [smem:[#allocation0]]
  $region49: #{dcn_sep_head_forward.10} parent=0
    _
  %s7 = ssub.s32 1, %s5
  %s8 = scalar_select 0, %s7, %s5
  loop: start=0, step=1, limit=6
  $region2: #{dcn_sep_head_forward.10} parent=0 // loop_pre_header
    _
  $region3: #{dcn_sep_head_forward.10} parent=0 // loop_header
    %s10 = sphi 0, %s14
    %p11 = scmp.ge.s32.totalorder %s10, 6
    %s17 = sphi 0, %s29
    %s18 = sphi 0, %s25
    %s19 = sphi 0, %s17
    %s20 = sphi 0, %s18
    %s21 = sphi 0, %s19
    %s22 = sphi 0, %s20
    %s34 = sphi 0, %s36
    %s37 = sphi 0, %s34
    %s38 = sphi 0, %s37
    %s54 = sphi 0, %s38
    %s66 = sphi 0, %s68
    %s69 = sphi 0, %s66
    %s70 = sphi 0, %s69
    %s86 = sphi 0, %s70
    %s90 = sphi 0, %s90
    %s92 = sphi 0, %s90
    %s93 = sphi 0, %s92
    %s107 = sphi 0, %s93
    %s111 = sphi 0, %s111
    %s113 = sphi 0, %s111
    %s114 = sphi 0, %s113
    %s128 = sphi 0, %s114
    %s138 = sphi 0, %s140
    %s141 = sphi 0, %s138
    %s142 = sphi 0, %s141
    %s158 = sphi 0, %s142
  $region4: #{dcn_sep_head_forward.10} parent=0 // loop_header_branch
    %13 = sbr.rel (%p11) target = $region8
  $region5: #{dcn_sep_head_forward.10} parent=0 // loop_body
    %s15 = ssub.s32 %s10, 1
    %s16 = ssub.s32 %s10, 2
    %s23 = sadd.s32 1, %s18
    %p24 = scmp.ge.s32.totalorder %s23, 2
    %s25 = scalar_select %p24, 0, %s23
    %s26 = sadd.s32 1, %s17
    %s27 = scalar_select %p24, %s26, %s17
    %p28 = scmp.ge.s32.totalorder %s27, 2
    %s29 = scalar_select %p28, 0, %s27
    %s30 = ssub.s32 %s17, %s29
    %s31 = ssub.s32 %s18, %s25
    %s32 = sor.u32 %s30, %s31
    %p33 = scmp.eq.s32.totalorder %s32, 0
    %s35 = sadd.s32 %s34, 1
    %s36 = scalar_select %p33, %s34, %s35
    %p39 = pneg %p33
    %p40 = scmp.eq.s32.totalorder %s10, 3
    %p41 = por %p39, %p40
    %p42 = scmp.ne.s32.totalorder %s34, %s37
    %p43 = scmp.eq.s32.totalorder %s10, 0
    %p44 = por %p42, %p43
    %p45 = scmp.ne.s32.totalorder %s34, %s37
    %p46 = scmp.eq.s32.totalorder %s15, 3
    %p47 = por %p45, %p46
    %p48 = scmp.ne.s32.totalorder %s37, %s38
    %p49 = scmp.eq.s32.totalorder %s15, 0
    %p50 = por %p48, %p49
    %p51 = scmp.ne.s32.totalorder %s37, %s38
    %p52 = scmp.eq.s32.totalorder %s16, 3
    %p53 = por %p51, %p52
    %p55 = scmp.ne.s32.totalorder %s38, %s54
    %p56 = scmp.eq.s32.totalorder %s16, 0
    %p57 = por %p55, %p56
    %s58 = smul.u32 %s18, 4
    %s59 = sadd.s32 %s58, 4
    %s60 = smul.u32 %s25, 4
    %s61 = sadd.s32 %s60, 4
    %s62 = ssub.s32 %s17, %s29
    %s63 = ssub.s32 %s59, %s61
    %s64 = sor.u32 %s62, %s63
    %p65 = scmp.eq.s32.totalorder %s64, 0
    %s67 = sadd.s32 %s66, 1
    %s68 = scalar_select %p65, %s66, %s67
    %p71 = pneg %p65
    %p72 = scmp.eq.s32.totalorder %s10, 3
    %p73 = por %p71, %p72
    %p74 = scmp.ne.s32.totalorder %s66, %s69
    %p75 = scmp.eq.s32.totalorder %s10, 0
    %p76 = por %p74, %p75
    %p77 = scmp.ne.s32.totalorder %s66, %s69
    %p78 = scmp.eq.s32.totalorder %s15, 3
    %p79 = por %p77, %p78
    %p80 = scmp.ne.s32.totalorder %s69, %s70
    %p81 = scmp.eq.s32.totalorder %s15, 0
    %p82 = por %p80, %p81
    %p83 = scmp.ne.s32.totalorder %s69, %s70
    %p84 = scmp.eq.s32.totalorder %s16, 3
    %p85 = por %p83, %p84
    %p87 = scmp.ne.s32.totalorder %s70, %s86
    %p88 = scmp.eq.s32.totalorder %s16, 0
    %p89 = por %p87, %p88
    %s91 = sadd.s32 %s90, 1
    %p94 = scmp.eq.s32.totalorder %s10, 3
    %p95 = scmp.ne.s32.totalorder %s90, %s92
    %p96 = scmp.eq.s32.totalorder %s10, 0
    %p97 = por %p95, %p96
    %p98 = scmp.ne.s32.totalorder %s90, %s92
    %p99 = scmp.eq.s32.totalorder %s15, 3
    %p100 = por %p98, %p99
    %p101 = scmp.ne.s32.totalorder %s92, %s93
    %p102 = scmp.eq.s32.totalorder %s15, 0
    %p103 = por %p101, %p102
    %p104 = scmp.ne.s32.totalorder %s92, %s93
    %p105 = scmp.eq.s32.totalorder %s16, 3
    %p106 = por %p104, %p105
    %p108 = scmp.ne.s32.totalorder %s93, %s107
    %p109 = scmp.eq.s32.totalorder %s16, 0
    %p110 = por %p108, %p109
    %s112 = sadd.s32 %s111, 1
    %p115 = scmp.eq.s32.totalorder %s10, 3
    %p116 = scmp.ne.s32.totalorder %s111, %s113
    %p117 = scmp.eq.s32.totalorder %s10, 0
    %p118 = por %p116, %p117
    %p119 = scmp.ne.s32.totalorder %s111, %s113
    %p120 = scmp.eq.s32.totalorder %s15, 3
    %p121 = por %p119, %p120
    %p122 = scmp.ne.s32.totalorder %s113, %s114
    %p123 = scmp.eq.s32.totalorder %s15, 0
    %p124 = por %p122, %p123
    %p125 = scmp.ne.s32.totalorder %s113, %s114
    %p126 = scmp.eq.s32.totalorder %s16, 3
    %p127 = por %p125, %p126
    %p129 = scmp.ne.s32.totalorder %s114, %s128
    %p130 = scmp.eq.s32.totalorder %s16, 0
    %p131 = por %p129, %p130
    %s132 = smul.u32 %s17, 2
    %s133 = sadd.s32 %s132, %s18
    %s134 = smul.u32 %s29, 2
    %s135 = sadd.s32 %s134, %s25
    %s136 = ssub.s32 %s133, %s135
    %p137 = scmp.eq.s32.totalorder %s136, 0
    %s139 = sadd.s32 %s138, 1
    %s140 = scalar_select %p137, %s138, %s139
    %p143 = pneg %p137
    %p144 = scmp.eq.s32.totalorder %s10, 3
    %p145 = por %p143, %p144
    %p146 = scmp.ne.s32.totalorder %s138, %s141
    %p147 = scmp.eq.s32.totalorder %s10, 0
    %p148 = por %p146, %p147
    %p149 = scmp.ne.s32.totalorder %s138, %s141
    %p150 = scmp.eq.s32.totalorder %s15, 3
    %p151 = por %p149, %p150
    %p152 = scmp.ne.s32.totalorder %s141, %s142
    %p153 = scmp.eq.s32.totalorder %s15, 0
    %p154 = por %p152, %p153
    %p155 = scmp.ne.s32.totalorder %s141, %s142
    %p156 = scmp.eq.s32.totalorder %s16, 3
    %p157 = por %p155, %p156
    %p159 = scmp.ne.s32.totalorder %s142, %s158
    %p160 = scmp.eq.s32.totalorder %s16, 0
    %p161 = por %p159, %p160
    %p162 = scmp.le.s32.totalorder 1, %s10
    %p163 = scmp.lt.s32.totalorder %s10, 5
    %p164 = pnand %p162, %p163
    %p165 = pneg %p164
    // Predicated region
    $region9: #{dcn_sep_head_forward.10} parent=5 // pred_check
      _
    $region10: #{dcn_sep_head_forward.10} parent=5 // pred_check_branch
      %167 = sbr.rel (%p164) target = $region12
    $region11: #{dcn_sep_head_forward.10} parent=5 // pred_region
      %s168 = ssub.s32 %s10, 1
      // Predicated region
      $region13: #{dcn_sep_head_forward.10} parent=11 // pred_check
        %p169 = pneg %p103
      $region14: #{dcn_sep_head_forward.10} parent=11 // pred_check_branch
        %171 = sbr.rel (%p169) target = $region16
      $region15: #{dcn_sep_head_forward.10} parent=11 // pred_region
        _
      $region16: #{dcn_sep_head_forward.10} parent=11 // pred_fallthru
        _
      // Predicated region
      $region17: #{dcn_sep_head_forward.10} parent=11 // pred_check
        %p172 = pneg %p124
      $region18: #{dcn_sep_head_forward.10} parent=11 // pred_check_branch
        %174 = sbr.rel (%p172) target = $region20
      $region19: #{dcn_sep_head_forward.10} parent=11 // pred_region
        _
      $region20: #{dcn_sep_head_forward.10} parent=11 // pred_fallthru
        _
    $region12: #{dcn_sep_head_forward.10} parent=5 // pred_fallthru
      _
    %p175 = scmp.lt.s32.totalorder %s10, 4
    // Predicated region
    $region21: #{dcn_sep_head_forward.10} parent=5 // pred_check
      %p176 = pneg %p175
    $region22: #{dcn_sep_head_forward.10} parent=5 // pred_check_branch
      %178 = sbr.rel (%p176) target = $region24
    $region23: #{dcn_sep_head_forward.10} parent=5 // pred_region
      // Predicated region
      $region25: #{dcn_sep_head_forward.10} parent=23 // pred_check
        %p179 = pneg %p44
      $region26: #{dcn_sep_head_forward.10} parent=23 // pred_check_branch
        %181 = sbr.rel (%p179) target = $region28
      $region27: #{dcn_sep_head_forward.10} parent=23 // pred_region
        %s182 = smul.u32 8, %s18
        %s183 = ssub.s32 18, %s182
        %p184 = scmp.lt.s32.totalorder %s183, 8
        %s185 = scalar_select %p184, %s183, 8
        %s186 = smul.u32 4, %s185
        %s187 = smul.u32 %s186, 3
        %p188 = scmp.lt.s32.totalorder %s17, 1
        %s189 = scalar_select %p188, %s17, 1
        %p190 = scmp.lt.s32.totalorder %s182, 17
        %s191 = scalar_select %p190, %s182, 17
        %s192 = smul.addr %s191, 3
        %s193 = smul.addr %s189, 54
        %s194 = sadd.s32 %s192, %s193
        %s195 = smul.addr %s194, 4
        %s196 = scalar_lea.vmem %s0, %s195
        %s197 = smul.u32 8, %s18
        %s198 = ssub.s32 18, %s197
        %p199 = scmp.lt.s32.totalorder %s198, 8
        %s200 = scalar_select %p199, %s198, 8
        %s201 = smul.u32 4, %s200
        %s202 = smul.u32 %s201, 3
      $region28: #{dcn_sep_head_forward.10} parent=23 // pred_fallthru
        _
      // Predicated region
      $region29: #{dcn_sep_head_forward.10} parent=23 // pred_check
        %p203 = pneg %p76
      $region30: #{dcn_sep_head_forward.10} parent=23 // pred_check_branch
        %205 = sbr.rel (%p203) target = $region32
      $region31: #{dcn_sep_head_forward.10} parent=23 // pred_region
        %s206 = smul.u32 %s18, 4
        %s207 = sadd.s32 %s206, 4
        %s208 = smul.u32 2, %s207
        %p209 = scmp.lt.s32.totalorder %s17, 1
        %s210 = scalar_select %p209, %s17, 1
        %p211 = scmp.lt.s32.totalorder %s208, 17
        %s212 = scalar_select %p211, %s208, 17
        %s213 = smul.addr %s212, 3
        %s214 = smul.addr %s210, 54
        %s215 = sadd.s32 %s213, %s214
        %s216 = smul.addr %s215, 4
        %s217 = scalar_lea.vmem %s1, %s216
        %s218 = smul.u32 %s18, 4
        %s219 = sadd.s32 %s218, 4
        %s220 = smul.u32 2, %s219
      $region32: #{dcn_sep_head_forward.10} parent=23 // pred_fallthru
        _
    $region24: #{dcn_sep_head_forward.10} parent=5 // pred_fallthru
      _
    %p221 = scmp.le.s32.totalorder 1, %s10
    %p222 = scmp.lt.s32.totalorder %s10, 5
    %p223 = pnand %p221, %p222
    %p224 = pneg %p223
    // Predicated region
    $region33: #{dcn_sep_head_forward.10} parent=5 // pred_check
      _
    $region34: #{dcn_sep_head_forward.10} parent=5 // pred_check_branch
      %226 = sbr.rel (%p223) target = $region36
    $region35: #{dcn_sep_head_forward.10} parent=5 // pred_region
      %s227 = ssub.s32 %s10, 1
      %s228 = smul.u32 8, %s20
      %s229 = ssub.s32 18, %s228
      %p230 = scmp.lt.s32.totalorder %s229, 8
      %s231 = scalar_select %p230, %s229, 8
      %s232 = smul.u32 4, %s231
      %s233 = smul.u32 %s232, 3
      %p234 = scmp.lt.s32.totalorder %s19, 1
      %s235 = scalar_select %p234, %s19, 1
      %p236 = scmp.lt.s32.totalorder %s228, 17
      %s237 = scalar_select %p236, %s228, 17
      %s238 = smul.addr %s237, 3
      %s239 = smul.addr %s235, 54
      %s240 = sadd.s32 %s238, %s239
      %s241 = smul.addr %s240, 4
      %s242 = scalar_lea.vmem %s0, %s241
      %p243 = pneg %p50
      %p244 = pneg %p47
      %s245 = smul.u32 %s20, 4
      %s246 = sadd.s32 %s245, 4
      %s247 = smul.u32 2, %s246
      %p248 = scmp.lt.s32.totalorder %s19, 1
      %s249 = scalar_select %p248, %s19, 1
      %p250 = scmp.lt.s32.totalorder %s247, 17
      %s251 = scalar_select %p250, %s247, 17
      %s252 = smul.addr %s251, 3
      %s253 = smul.addr %s249, 54
      %s254 = sadd.s32 %s252, %s253
      %s255 = smul.addr %s254, 4
      %s256 = scalar_lea.vmem %s1, %s255
      %p257 = pneg %p82
      %p258 = pneg %p79
      %p259 = pneg %p103
      %p260 = pneg %p100
      %p261 = pneg %p124
      %p262 = pneg %p121
      %p263 = pneg %p154
      %p264 = pneg %p151
      %s265 = smul.u32 %s19, 2
      %s266 = sadd.s32 %s265, %s20
      %s267 = smul.u32 16, %s266
      %p268 = scmp.lt.s32.totalorder %s267, 63
      %s269 = scalar_select %p268, %s267, 63
      %s270 = smul.addr %s269, 8
      %s271 = scalar_lea.vmem %s4, %s270
      %s272 = smul.u32 8, %s20
      %s273 = ssub.s32 18, %s272
      %p274 = scmp.lt.s32.totalorder %s273, 8
      %s275 = scalar_select %p274, %s273, 8
      %s276 = smul.u32 4, %s275
      %s277 = smul.u32 %s276, 3
      %p278 = scmp.lt.s32.totalorder %s19, 1
      %s279 = scalar_select %p278, %s19, 1
      %p280 = scmp.lt.s32.totalorder %s272, 17
      %s281 = scalar_select %p280, %s272, 17
      %s282 = smul.addr %s281, 3
      %s283 = smul.addr %s279, 54
      %s284 = sadd.s32 %s282, %s283
      %s285 = smul.addr %s284, 4
      %s286 = scalar_lea.vmem %s0, %s285
      %s287 = smul.u32 8, %s20
      %s288 = ssub.s32 18, %s287
      %p289 = scmp.lt.s32.totalorder %s288, 8
      %s290 = scalar_select %p289, %s288, 8
      %s291 = smul.u32 4, %s290
      %s292 = smul.u32 %s291, 3
      %s293 = smul.u32 %s20, 4
      %s294 = sadd.s32 %s293, 4
      %s295 = smul.u32 2, %s294
      %p296 = scmp.lt.s32.totalorder %s19, 1
      %s297 = scalar_select %p296, %s19, 1
      %p298 = scmp.lt.s32.totalorder %s295, 17
      %s299 = scalar_select %p298, %s295, 17
      %s300 = smul.addr %s299, 3
      %s301 = smul.addr %s297, 54
      %s302 = sadd.s32 %s300, %s301
      %s303 = smul.addr %s302, 4
      %s304 = scalar_lea.vmem %s1, %s303
      %s305 = smul.u32 %s20, 4
      %s306 = sadd.s32 %s305, 4
      %s307 = smul.u32 2, %s306
      %s308 = smul.u32 %s19, 2
      %s309 = sadd.s32 %s308, %s20
      %s310 = smul.u32 16, %s309
      %p311 = scmp.lt.s32.totalorder %s310, 63
      %s312 = scalar_select %p311, %s310, 63
      %s313 = smul.addr %s312, 8
      %s314 = scalar_lea.vmem %s4, %s313
      %s315 = smul.u32 %s19, 2
      %s316 = sadd.s32 %s315, %s20
      %s317 = smul.u32 16, %s316
      %v318 = vld [vmem:[%s286] sm:$0xf]
      %v319 = vld [vmem:[%s286 + $0x4] sm:$0xf]
      %v320 = vld [vmem:[%s286 + $0x8] sm:$0x1]
      %s321 = scalar_lea.vmem %s286, 12
      %v322 = vld [vmem:[%s321] sm:$0xf]
      %v323 = vld [vmem:[%s321 + $0x4] sm:$0xf]
      %v324 = vld [vmem:[%s321 + $0x8] sm:$0x1]
      %s325 = scalar_lea.vmem %s286, 24
      %v326 = vld [vmem:[%s325] sm:$0xf]
      %v327 = vld [vmem:[%s325 + $0x4] sm:$0xf]
      %v328 = vld [vmem:[%s325 + $0x8] sm:$0x1]
      %s329 = scalar_lea.vmem %s286, 36
      %v330 = vld [vmem:[%s329] sm:$0xf]
      %v331 = vld [vmem:[%s329 + $0x4] sm:$0xf]
      %v332 = vld [vmem:[%s329 + $0x8] sm:$0x1]
      %s333 = scalar_lea.vmem %s286, 48
      %v334 = vld [vmem:[%s333] sm:$0xf]
      %v335 = vld [vmem:[%s333 + $0x4] sm:$0xf]
      %v336 = vld [vmem:[%s333 + $0x8] sm:$0x1]
      %s337 = scalar_lea.vmem %s286, 60
      %v338 = vld [vmem:[%s337] sm:$0xf]
      %v339 = vld [vmem:[%s337 + $0x4] sm:$0xf]
      %v340 = vld [vmem:[%s337 + $0x8] sm:$0x1]
      %s341 = scalar_lea.vmem %s286, 72
      %v342 = vld [vmem:[%s341] sm:$0xf]
      %v343 = vld [vmem:[%s341 + $0x4] sm:$0xf]
      %v344 = vld [vmem:[%s341 + $0x8] sm:$0x1]
      %s345 = scalar_lea.vmem %s286, 84
      %v346 = vld [vmem:[%s345] sm:$0xf]
      %v347 = vld [vmem:[%s345 + $0x4] sm:$0xf]
      %v348 = vld [vmem:[%s345 + $0x8] sm:$0x1]
      %v349 = vld [vmem:[%s304] sm:$0xf]
      %v350 = vld [vmem:[%s304 + $0x4] sm:$0xf]
      %v351 = vld [vmem:[%s304 + $0x8] sm:$0x1]
      %s352 = scalar_lea.vmem %s304, 12
      %v353 = vld [vmem:[%s352] sm:$0xf]
      %v354 = vld [vmem:[%s352 + $0x4] sm:$0xf]
      %v355 = vld [vmem:[%s352 + $0x8] sm:$0x1]
      %v356 = vld [vmem:[%s3] sm:$0x1]
      %v358 = vperm.slane %v356, 0
      %v360 = vadd.f32 %v358, 0.0
      %v363 = vunpack.c.l.b16 %v318
      %v364 = vunpack.c.l.b16 %v319
      %v365 = vpack.c.b16 %v364, %v363
      %v369 = vunpack.c.l.b16 %v322
      %v370 = vunpack.c.l.b16 %v323
      %v371 = vpack.c.b16 %v370, %v369
      %v375 = vunpack.c.l.b16 %v326
      %v376 = vunpack.c.l.b16 %v327
      %v377 = vpack.c.b16 %v376, %v375
      %v381 = vunpack.c.l.b16 %v330
      %v382 = vunpack.c.l.b16 %v331
      %v383 = vpack.c.b16 %v382, %v381
      %v387 = vunpack.c.l.b16 %v334
      %v388 = vunpack.c.l.b16 %v335
      %v389 = vpack.c.b16 %v388, %v387
      %v393 = vunpack.c.l.b16 %v338
      %v394 = vunpack.c.l.b16 %v339
      %v395 = vpack.c.b16 %v394, %v393
      %v399 = vunpack.c.l.b16 %v342
      %v400 = vunpack.c.l.b16 %v343
      %v401 = vpack.c.b16 %v400, %v399
      %v405 = vunpack.c.l.b16 %v346
      %v406 = vunpack.c.l.b16 %v347
      %v407 = vpack.c.b16 %v406, %v405
      %v409 = vld [vmem:[%s2] sm:$0xf]
      %v410 = vld [vmem:[%s2 + $0x4] sm:$0xf]
      %v411 = vld [vmem:[%s2 + $0x8] sm:$0xf]
      %v412 = vld [vmem:[%s2 + $0xc] sm:$0xf]
      %v413 = vld [vmem:[%s2 + $0x10] sm:$0xf]
      %v414 = vld [vmem:[%s2 + $0x14] sm:$0xf]
      %v415 = vld [vmem:[%s2 + $0x18] sm:$0xf]
      %v416 = vld [vmem:[%s2 + $0x1c] sm:$0xf]
      %v417 = vld [vmem:[%s2 + $0x20] sm:$0xf]
      %v418 = vld [vmem:[%s2 + $0x24] sm:$0xf]
      %v419 = vld [vmem:[%s2 + $0x28] sm:$0xf]
      %v420 = vld [vmem:[%s2 + $0x2c] sm:$0xf]
      %v421 = vld [vmem:[%s2 + $0x30] sm:$0xf]
      %v422 = vld [vmem:[%s2 + $0x34] sm:$0xf]
      %v423 = vld [vmem:[%s2 + $0x38] sm:$0xf]
      %v424 = vld [vmem:[%s2 + $0x3c] sm:$0xf]
      %v441 = vunpack.c.l.b16 %v409
      %v442 = vunpack.c.l.b16 %v410
      %v443 = vunpack.c.l.b16 %v411
      %v444 = vunpack.c.l.b16 %v412
      %v445 = vunpack.c.l.b16 %v413
      %v446 = vunpack.c.l.b16 %v414
      %v447 = vunpack.c.l.b16 %v415
      %v448 = vunpack.c.l.b16 %v416
      %v449 = vunpack.c.l.b16 %v417
      %v450 = vunpack.c.l.b16 %v418
      %v451 = vunpack.c.l.b16 %v419
      %v452 = vunpack.c.l.b16 %v420
      %v453 = vunpack.c.l.b16 %v421
      %v454 = vunpack.c.l.b16 %v422
      %v455 = vunpack.c.l.b16 %v423
      %v456 = vunpack.c.l.b16 %v424
      %v457 = vpack.c.b16 %v442, %v441
      %v458 = vpack.c.b16 %v444, %v443
      %v459 = vpack.c.b16 %v446, %v445
      %v460 = vpack.c.b16 %v448, %v447
      %v461 = vpack.c.b16 %v450, %v449
      %v462 = vpack.c.b16 %v452, %v451
      %v463 = vpack.c.b16 %v454, %v453
      %v464 = vpack.c.b16 %v456, %v455
      %473 = vmatpush.bf16.msra.mxu0 %v464
      %474 = vmatpush.bf16.msra.mxu0 %v463
      %475 = vmatpush.bf16.msra.mxu0 %v462
      %476 = vmatpush.bf16.msra.mxu0 %v461
      %477 = vmatpush.bf16.msra.mxu0 %v460
      %478 = vmatpush.bf16.msra.mxu0 %v459
      %479 = vmatpush.bf16.msra.mxu0 %v458
      %480 = vmatpush.bf16.msra.mxu0 %v457
      %481 = vmatmul.bf16.gmra.mxu0 %v365
      %v482 = vpop.f32.mrf.mxu0
      %v483 = vadd.f32 0.0, %v482
      %v484 = vpop.f32.mrf.mxu0
      %v485 = vadd.f32 0.0, %v484
      %486 = vmatmul.bf16.gmra.mxu0 %v371
      %v487 = vpop.f32.mrf.mxu0
      %v488 = vadd.f32 0.0, %v487
      %v489 = vpop.f32.mrf.mxu0
      %v490 = vadd.f32 0.0, %v489
      %491 = vmatmul.bf16.gmra.mxu0 %v377
      %v492 = vpop.f32.mrf.mxu0
      %v493 = vadd.f32 0.0, %v492
      %v494 = vpop.f32.mrf.mxu0
      %v495 = vadd.f32 0.0, %v494
      %496 = vmatmul.bf16.gmra.mxu0 %v383
      %v497 = vpop.f32.mrf.mxu0
      %v498 = vadd.f32 0.0, %v497
      %v499 = vpop.f32.mrf.mxu0
      %v500 = vadd.f32 0.0, %v499
      %501 = vmatmul.bf16.gmra.mxu0 %v389
      %v502 = vpop.f32.mrf.mxu0
      %v503 = vadd.f32 0.0, %v502
      %v504 = vpop.f32.mrf.mxu0
      %v505 = vadd.f32 0.0, %v504
      %506 = vmatmul.bf16.gmra.mxu0 %v395
      %v507 = vpop.f32.mrf.mxu0
      %v508 = vadd.f32 0.0, %v507
      %v509 = vpop.f32.mrf.mxu0
      %v510 = vadd.f32 0.0, %v509
      %511 = vmatmul.bf16.gmra.mxu0 %v401
      %v512 = vpop.f32.mrf.mxu0
      %v513 = vadd.f32 0.0, %v512
      %v514 = vpop.f32.mrf.mxu0
      %v515 = vadd.f32 0.0, %v514
      %516 = vmatmul.bf16.gmra.mxu0 %v407
      %v517 = vpop.f32.mrf.mxu0
      %v518 = vadd.f32 0.0, %v517
      %v519 = vpop.f32.mrf.mxu0
      %v520 = vadd.f32 0.0, %v519
      %521 = vdwg.mxu0
      %v522 = vadd.f32 %v360, %v483
      %v523 = vadd.f32 %v360, %v485
      %v524 = vadd.f32 %v360, %v488
      %v525 = vadd.f32 %v360, %v490
      %v526 = vadd.f32 %v360, %v493
      %v527 = vadd.f32 %v360, %v495
      %v528 = vadd.f32 %v360, %v498
      %v529 = vadd.f32 %v360, %v500
      %v530 = vadd.f32 %v360, %v503
      %v531 = vadd.f32 %v360, %v505
      %v532 = vadd.f32 %v360, %v508
      %v533 = vadd.f32 %v360, %v510
      %v534 = vadd.f32 %v360, %v513
      %v535 = vadd.f32 %v360, %v515
      %v536 = vadd.f32 %v360, %v518
      %v537 = vadd.f32 %v360, %v520
      %v539 = vunpack.c.l.b16 %v320
      %v540 = vpack.c.b16 %v539, %v539
      %vm541 = vsmask.f32 7424
      %v543 = vshrl.u32 %v365, 16
      %v545 = vshll.u32 %v365, 16
      %v547 = vrot.slane %v545, 1
      %v548 = vor.u32 %v543, %v547
      %v550 = vshll.u32 %v540, 16
      %v552 = vrot.slane %v550, 1
      %v553 = vsel %vm541, %v548, %v552
      %v556 = vunpack.c.l.b16 %v324
      %v557 = vpack.c.b16 %v556, %v556
      %v559 = vshrl.u32 %v371, 16
      %v561 = vshll.u32 %v371, 16
      %v563 = vrot.slane %v561, 1
      %v564 = vor.u32 %v559, %v563
      %v566 = vshll.u32 %v557, 16
      %v568 = vrot.slane %v566, 1
      %v569 = vsel %vm541, %v564, %v568
      %v572 = vunpack.c.l.b16 %v328
      %v573 = vpack.c.b16 %v572, %v572
      %v575 = vshrl.u32 %v377, 16
      %v577 = vshll.u32 %v377, 16
      %v579 = vrot.slane %v577, 1
      %v580 = vor.u32 %v575, %v579
      %v582 = vshll.u32 %v573, 16
      %v584 = vrot.slane %v582, 1
      %v585 = vsel %vm541, %v580, %v584
      %v588 = vunpack.c.l.b16 %v332
      %v589 = vpack.c.b16 %v588, %v588
      %v591 = vshrl.u32 %v383, 16
      %v593 = vshll.u32 %v383, 16
      %v595 = vrot.slane %v593, 1
      %v596 = vor.u32 %v591, %v595
      %v598 = vshll.u32 %v589, 16
      %v600 = vrot.slane %v598, 1
      %v601 = vsel %vm541, %v596, %v600
      %v604 = vunpack.c.l.b16 %v336
      %v605 = vpack.c.b16 %v604, %v604
      %v607 = vshrl.u32 %v389, 16
      %v609 = vshll.u32 %v389, 16
      %v611 = vrot.slane %v609, 1
      %v612 = vor.u32 %v607, %v611
      %v614 = vshll.u32 %v605, 16
      %v616 = vrot.slane %v614, 1
      %v617 = vsel %vm541, %v612, %v616
      %v620 = vunpack.c.l.b16 %v340
      %v621 = vpack.c.b16 %v620, %v620
      %v623 = vshrl.u32 %v395, 16
      %v625 = vshll.u32 %v395, 16
      %v627 = vrot.slane %v625, 1
      %v628 = vor.u32 %v623, %v627
      %v630 = vshll.u32 %v621, 16
      %v632 = vrot.slane %v630, 1
      %v633 = vsel %vm541, %v628, %v632
      %v636 = vunpack.c.l.b16 %v344
      %v637 = vpack.c.b16 %v636, %v636
      %v639 = vshrl.u32 %v401, 16
      %v641 = vshll.u32 %v401, 16
      %v643 = vrot.slane %v641, 1
      %v644 = vor.u32 %v639, %v643
      %v646 = vshll.u32 %v637, 16
      %v648 = vrot.slane %v646, 1
      %v649 = vsel %vm541, %v644, %v648
      %v652 = vunpack.c.l.b16 %v348
      %v653 = vpack.c.b16 %v652, %v652
      %v655 = vshrl.u32 %v407, 16
      %v657 = vshll.u32 %v407, 16
      %v659 = vrot.slane %v657, 1
      %v660 = vor.u32 %v655, %v659
      %v662 = vshll.u32 %v653, 16
      %v664 = vrot.slane %v662, 1
      %v665 = vsel %vm541, %v660, %v664
      %s667 = scalar_lea.vmem %s2, 64
      %v668 = vld [vmem:[%s667] sm:$0xf]
      %v669 = vld [vmem:[%s667 + $0x4] sm:$0xf]
      %v670 = vld [vmem:[%s667 + $0x8] sm:$0xf]
      %v671 = vld [vmem:[%s667 + $0xc] sm:$0xf]
      %v672 = vld [vmem:[%s667 + $0x10] sm:$0xf]
      %v673 = vld [vmem:[%s667 + $0x14] sm:$0xf]
      %v674 = vld [vmem:[%s667 + $0x18] sm:$0xf]
      %v675 = vld [vmem:[%s667 + $0x1c] sm:$0xf]
      %v676 = vld [vmem:[%s667 + $0x20] sm:$0xf]
      %v677 = vld [vmem:[%s667 + $0x24] sm:$0xf]
      %v678 = vld [vmem:[%s667 + $0x28] sm:$0xf]
      %v679 = vld [vmem:[%s667 + $0x2c] sm:$0xf]
      %v680 = vld [vmem:[%s667 + $0x30] sm:$0xf]
      %v681 = vld [vmem:[%s667 + $0x34] sm:$0xf]
      %v682 = vld [vmem:[%s667 + $0x38] sm:$0xf]
      %v683 = vld [vmem:[%s667 + $0x3c] sm:$0xf]
      %v700 = vunpack.c.l.b16 %v668
      %v701 = vunpack.c.l.b16 %v669
      %v702 = vunpack.c.l.b16 %v670
      %v703 = vunpack.c.l.b16 %v671
      %v704 = vunpack.c.l.b16 %v672
      %v705 = vunpack.c.l.b16 %v673
      %v706 = vunpack.c.l.b16 %v674
      %v707 = vunpack.c.l.b16 %v675
      %v708 = vunpack.c.l.b16 %v676
      %v709 = vunpack.c.l.b16 %v677
      %v710 = vunpack.c.l.b16 %v678
      %v711 = vunpack.c.l.b16 %v679
      %v712 = vunpack.c.l.b16 %v680
      %v713 = vunpack.c.l.b16 %v681
      %v714 = vunpack.c.l.b16 %v682
      %v715 = vunpack.c.l.b16 %v683
      %v716 = vpack.c.b16 %v701, %v700
      %v717 = vpack.c.b16 %v703, %v702
      %v718 = vpack.c.b16 %v705, %v704
      %v719 = vpack.c.b16 %v707, %v706
      %v720 = vpack.c.b16 %v709, %v708
      %v721 = vpack.c.b16 %v711, %v710
      %v722 = vpack.c.b16 %v713, %v712
      %v723 = vpack.c.b16 %v715, %v714
      %732 = vmatpush.bf16.msra.mxu0 %v723
      %733 = vmatpush.bf16.msra.mxu0 %v722
      %734 = vmatpush.bf16.msra.mxu0 %v721
      %735 = vmatpush.bf16.msra.mxu0 %v720
      %736 = vmatpush.bf16.msra.mxu0 %v719
      %737 = vmatpush.bf16.msra.mxu0 %v718
      %738 = vmatpush.bf16.msra.mxu0 %v717
      %739 = vmatpush.bf16.msra.mxu0 %v716
      %740 = vmatmul.bf16.gmra.mxu0 %v553
      %v741 = vpop.f32.mrf.mxu0
      %v742 = vadd.f32 0.0, %v741
      %v743 = vpop.f32.mrf.mxu0
      %v744 = vadd.f32 0.0, %v743
      %745 = vmatmul.bf16.gmra.mxu0 %v569
      %v746 = vpop.f32.mrf.mxu0
      %v747 = vadd.f32 0.0, %v746
      %v748 = vpop.f32.mrf.mxu0
      %v749 = vadd.f32 0.0, %v748
      %750 = vmatmul.bf16.gmra.mxu0 %v585
      %v751 = vpop.f32.mrf.mxu0
      %v752 = vadd.f32 0.0, %v751
      %v753 = vpop.f32.mrf.mxu0
      %v754 = vadd.f32 0.0, %v753
      %755 = vmatmul.bf16.gmra.mxu0 %v601
      %v756 = vpop.f32.mrf.mxu0
      %v757 = vadd.f32 0.0, %v756
      %v758 = vpop.f32.mrf.mxu0
      %v759 = vadd.f32 0.0, %v758
      %760 = vmatmul.bf16.gmra.mxu0 %v617
      %v761 = vpop.f32.mrf.mxu0
      %v762 = vadd.f32 0.0, %v761
      %v763 = vpop.f32.mrf.mxu0
      %v764 = vadd.f32 0.0, %v763
      %765 = vmatmul.bf16.gmra.mxu0 %v633
      %v766 = vpop.f32.mrf.mxu0
      %v767 = vadd.f32 0.0, %v766
      %v768 = vpop.f32.mrf.mxu0
      %v769 = vadd.f32 0.0, %v768
      %770 = vmatmul.bf16.gmra.mxu0 %v649
      %v771 = vpop.f32.mrf.mxu0
      %v772 = vadd.f32 0.0, %v771
      %v773 = vpop.f32.mrf.mxu0
      %v774 = vadd.f32 0.0, %v773
      %775 = vmatmul.bf16.gmra.mxu0 %v665
      %v776 = vpop.f32.mrf.mxu0
      %v777 = vadd.f32 0.0, %v776
      %v778 = vpop.f32.mrf.mxu0
      %v779 = vadd.f32 0.0, %v778
      %780 = vdwg.mxu0
      %v781 = vadd.f32 %v522, %v742
      %v782 = vadd.f32 %v523, %v744
      %v783 = vadd.f32 %v524, %v747
      %v784 = vadd.f32 %v525, %v749
      %v785 = vadd.f32 %v526, %v752
      %v786 = vadd.f32 %v527, %v754
      %v787 = vadd.f32 %v528, %v757
      %v788 = vadd.f32 %v529, %v759
      %v789 = vadd.f32 %v530, %v762
      %v790 = vadd.f32 %v531, %v764
      %v791 = vadd.f32 %v532, %v767
      %v792 = vadd.f32 %v533, %v769
      %v793 = vadd.f32 %v534, %v772
      %v794 = vadd.f32 %v535, %v774
      %v795 = vadd.f32 %v536, %v777
      %v796 = vadd.f32 %v537, %v779
      %vm797 = vcmask 1046528
      %v798 = vrot.slane %v365, 1
      %v799 = vrot.slane %v540, 1
      %v800 = vsel %vm797, %v798, %v799
      %v802 = vrot.slane %v371, 1
      %v803 = vrot.slane %v557, 1
      %v804 = vsel %vm797, %v802, %v803
      %v806 = vrot.slane %v377, 1
      %v807 = vrot.slane %v573, 1
      %v808 = vsel %vm797, %v806, %v807
      %v810 = vrot.slane %v383, 1
      %v811 = vrot.slane %v589, 1
      %v812 = vsel %vm797, %v810, %v811
      %v814 = vrot.slane %v389, 1
      %v815 = vrot.slane %v605, 1
      %v816 = vsel %vm797, %v814, %v815
      %v818 = vrot.slane %v395, 1
      %v819 = vrot.slane %v621, 1
      %v820 = vsel %vm797, %v818, %v819
      %v822 = vrot.slane %v401, 1
      %v823 = vrot.slane %v637, 1
      %v824 = vsel %vm797, %v822, %v823
      %v826 = vrot.slane %v407, 1
      %v827 = vrot.slane %v653, 1
      %v828 = vsel %vm797, %v826, %v827
      %s830 = scalar_lea.vmem %s2, 128
      %v831 = vld [vmem:[%s830] sm:$0xf]
      %v832 = vld [vmem:[%s830 + $0x4] sm:$0xf]
      %v833 = vld [vmem:[%s830 + $0x8] sm:$0xf]
      %v834 = vld [vmem:[%s830 + $0xc] sm:$0xf]
      %v835 = vld [vmem:[%s830 + $0x10] sm:$0xf]
      %v836 = vld [vmem:[%s830 + $0x14] sm:$0xf]
      %v837 = vld [vmem:[%s830 + $0x18] sm:$0xf]
      %v838 = vld [vmem:[%s830 + $0x1c] sm:$0xf]
      %v839 = vld [vmem:[%s830 + $0x20] sm:$0xf]
      %v840 = vld [vmem:[%s830 + $0x24] sm:$0xf]
      %v841 = vld [vmem:[%s830 + $0x28] sm:$0xf]
      %v842 = vld [vmem:[%s830 + $0x2c] sm:$0xf]
      %v843 = vld [vmem:[%s830 + $0x30] sm:$0xf]
      %v844 = vld [vmem:[%s830 + $0x34] sm:$0xf]
      %v845 = vld [vmem:[%s830 + $0x38] sm:$0xf]
      %v846 = vld [vmem:[%s830 + $0x3c] sm:$0xf]
      %v863 = vunpack.c.l.b16 %v831
      %v864 = vunpack.c.l.b16 %v832
      %v865 = vunpack.c.l.b16 %v833
      %v866 = vunpack.c.l.b16 %v834
      %v867 = vunpack.c.l.b16 %v835
      %v868 = vunpack.c.l.b16 %v836
      %v869 = vunpack.c.l.b16 %v837
      %v870 = vunpack.c.l.b16 %v838
      %v871 = vunpack.c.l.b16 %v839
      %v872 = vunpack.c.l.b16 %v840
      %v873 = vunpack.c.l.b16 %v841
      %v874 = vunpack.c.l.b16 %v842
      %v875 = vunpack.c.l.b16 %v843
      %v876 = vunpack.c.l.b16 %v844
      %v877 = vunpack.c.l.b16 %v845
      %v878 = vunpack.c.l.b16 %v846
      %v879 = vpack.c.b16 %v864, %v863
      %v880 = vpack.c.b16 %v866, %v865
      %v881 = vpack.c.b16 %v868, %v867
      %v882 = vpack.c.b16 %v870, %v869
      %v883 = vpack.c.b16 %v872, %v871
      %v884 = vpack.c.b16 %v874, %v873
      %v885 = vpack.c.b16 %v876, %v875
      %v886 = vpack.c.b16 %v878, %v877
      %895 = vmatpush.bf16.msra.mxu0 %v886
      %896 = vmatpush.bf16.msra.mxu0 %v885
      %897 = vmatpush.bf16.msra.mxu0 %v884
      %898 = vmatpush.bf16.msra.mxu0 %v883
      %899 = vmatpush.bf16.msra.mxu0 %v882
      %900 = vmatpush.bf16.msra.mxu0 %v881
      %901 = vmatpush.bf16.msra.mxu0 %v880
      %902 = vmatpush.bf16.msra.mxu0 %v879
      %903 = vmatmul.bf16.gmra.mxu0 %v800
      %v904 = vpop.f32.mrf.mxu0
      %v905 = vadd.f32 0.0, %v904
      %v906 = vpop.f32.mrf.mxu0
      %v907 = vadd.f32 0.0, %v906
      %908 = vmatmul.bf16.gmra.mxu0 %v804
      %v909 = vpop.f32.mrf.mxu0
      %v910 = vadd.f32 0.0, %v909
      %v911 = vpop.f32.mrf.mxu0
      %v912 = vadd.f32 0.0, %v911
      %913 = vmatmul.bf16.gmra.mxu0 %v808
      %v914 = vpop.f32.mrf.mxu0
      %v915 = vadd.f32 0.0, %v914
      %v916 = vpop.f32.mrf.mxu0
      %v917 = vadd.f32 0.0, %v916
      %918 = vmatmul.bf16.gmra.mxu0 %v812
      %v919 = vpop.f32.mrf.mxu0
      %v920 = vadd.f32 0.0, %v919
      %v921 = vpop.f32.mrf.mxu0
      %v922 = vadd.f32 0.0, %v921
      %923 = vmatmul.bf16.gmra.mxu0 %v816
      %v924 = vpop.f32.mrf.mxu0
      %v925 = vadd.f32 0.0, %v924
      %v926 = vpop.f32.mrf.mxu0
      %v927 = vadd.f32 0.0, %v926
      %928 = vmatmul.bf16.gmra.mxu0 %v820
      %v929 = vpop.f32.mrf.mxu0
      %v930 = vadd.f32 0.0, %v929
      %v931 = vpop.f32.mrf.mxu0
      %v932 = vadd.f32 0.0, %v931
      %933 = vmatmul.bf16.gmra.mxu0 %v824
      %v934 = vpop.f32.mrf.mxu0
      %v935 = vadd.f32 0.0, %v934
      %v936 = vpop.f32.mrf.mxu0
      %v937 = vadd.f32 0.0, %v936
      %938 = vmatmul.bf16.gmra.mxu0 %v828
      %v939 = vpop.f32.mrf.mxu0
      %v940 = vadd.f32 0.0, %v939
      %v941 = vpop.f32.mrf.mxu0
      %v942 = vadd.f32 0.0, %v941
      %943 = vdwg.mxu0
      %v944 = vadd.f32 %v781, %v905
      %v945 = vadd.f32 %v782, %v907
      %v946 = vadd.f32 %v783, %v910
      %v947 = vadd.f32 %v784, %v912
      %v948 = vadd.f32 %v785, %v915
      %v949 = vadd.f32 %v786, %v917
      %v950 = vadd.f32 %v787, %v920
      %v951 = vadd.f32 %v788, %v922
      %v952 = vadd.f32 %v789, %v925
      %v953 = vadd.f32 %v790, %v927
      %v954 = vadd.f32 %v791, %v930
      %v955 = vadd.f32 %v792, %v932
      %v956 = vadd.f32 %v793, %v935
      %v957 = vadd.f32 %v794, %v937
      %v958 = vadd.f32 %v795, %v940
      %v959 = vadd.f32 %v796, %v942
      %v962 = vunpack.c.l.b16 %v349
      %v963 = vunpack.c.l.b16 %v350
      %v964 = vpack.c.b16 %v963, %v962
      %s966 = scalar_lea.vmem %s2, 192
      %v967 = vld [vmem:[%s966] sm:$0xf]
      %v968 = vld [vmem:[%s966 + $0x4] sm:$0xf]
      %v969 = vld [vmem:[%s966 + $0x8] sm:$0xf]
      %v970 = vld [vmem:[%s966 + $0xc] sm:$0xf]
      %v971 = vld [vmem:[%s966 + $0x10] sm:$0xf]
      %v972 = vld [vmem:[%s966 + $0x14] sm:$0xf]
      %v973 = vld [vmem:[%s966 + $0x18] sm:$0xf]
      %v974 = vld [vmem:[%s966 + $0x1c] sm:$0xf]
      %v975 = vld [vmem:[%s966 + $0x20] sm:$0xf]
      %v976 = vld [vmem:[%s966 + $0x24] sm:$0xf]
      %v977 = vld [vmem:[%s966 + $0x28] sm:$0xf]
      %v978 = vld [vmem:[%s966 + $0x2c] sm:$0xf]
      %v979 = vld [vmem:[%s966 + $0x30] sm:$0xf]
      %v980 = vld [vmem:[%s966 + $0x34] sm:$0xf]
      %v981 = vld [vmem:[%s966 + $0x38] sm:$0xf]
      %v982 = vld [vmem:[%s966 + $0x3c] sm:$0xf]
      %v999 = vunpack.c.l.b16 %v967
      %v1000 = vunpack.c.l.b16 %v968
      %v1001 = vunpack.c.l.b16 %v969
      %v1002 = vunpack.c.l.b16 %v970
      %v1003 = vunpack.c.l.b16 %v971
      %v1004 = vunpack.c.l.b16 %v972
      %v1005 = vunpack.c.l.b16 %v973
      %v1006 = vunpack.c.l.b16 %v974
      %v1007 = vunpack.c.l.b16 %v975
      %v1008 = vunpack.c.l.b16 %v976
      %v1009 = vunpack.c.l.b16 %v977
      %v1010 = vunpack.c.l.b16 %v978
      %v1011 = vunpack.c.l.b16 %v979
      %v1012 = vunpack.c.l.b16 %v980
      %v1013 = vunpack.c.l.b16 %v981
      %v1014 = vunpack.c.l.b16 %v982
      %v1015 = vpack.c.b16 %v1000, %v999
      %v1016 = vpack.c.b16 %v1002, %v1001
      %v1017 = vpack.c.b16 %v1004, %v1003
      %v1018 = vpack.c.b16 %v1006, %v1005
      %v1019 = vpack.c.b16 %v1008, %v1007
      %v1020 = vpack.c.b16 %v1010, %v1009
      %v1021 = vpack.c.b16 %v1012, %v1011
      %v1022 = vpack.c.b16 %v1014, %v1013
      %1031 = vmatpush.bf16.msra.mxu0 %v1022
      %1032 = vmatpush.bf16.msra.mxu0 %v1021
      %1033 = vmatpush.bf16.msra.mxu0 %v1020
      %1034 = vmatpush.bf16.msra.mxu0 %v1019
      %1035 = vmatpush.bf16.msra.mxu0 %v1018
      %1036 = vmatpush.bf16.msra.mxu0 %v1017
      %1037 = vmatpush.bf16.msra.mxu0 %v1016
      %1038 = vmatpush.bf16.msra.mxu0 %v1015
      %1039 = vmatmul.bf16.gmra.mxu0 %v371
      %v1040 = vpop.f32.mrf.mxu0
      %v1041 = vadd.f32 0.0, %v1040
      %v1042 = vpop.f32.mrf.mxu0
      %v1043 = vadd.f32 0.0, %v1042
      %1044 = vmatmul.bf16.gmra.mxu0 %v377
      %v1045 = vpop.f32.mrf.mxu0
      %v1046 = vadd.f32 0.0, %v1045
      %v1047 = vpop.f32.mrf.mxu0
      %v1048 = vadd.f32 0.0, %v1047
      %1049 = vmatmul.bf16.gmra.mxu0 %v383
      %v1050 = vpop.f32.mrf.mxu0
      %v1051 = vadd.f32 0.0, %v1050
      %v1052 = vpop.f32.mrf.mxu0
      %v1053 = vadd.f32 0.0, %v1052
      %1054 = vmatmul.bf16.gmra.mxu0 %v389
      %v1055 = vpop.f32.mrf.mxu0
      %v1056 = vadd.f32 0.0, %v1055
      %v1057 = vpop.f32.mrf.mxu0
      %v1058 = vadd.f32 0.0, %v1057
      %1059 = vmatmul.bf16.gmra.mxu0 %v395
      %v1060 = vpop.f32.mrf.mxu0
      %v1061 = vadd.f32 0.0, %v1060
      %v1062 = vpop.f32.mrf.mxu0
      %v1063 = vadd.f32 0.0, %v1062
      %1064 = vmatmul.bf16.gmra.mxu0 %v401
      %v1065 = vpop.f32.mrf.mxu0
      %v1066 = vadd.f32 0.0, %v1065
      %v1067 = vpop.f32.mrf.mxu0
      %v1068 = vadd.f32 0.0, %v1067
      %1069 = vmatmul.bf16.gmra.mxu0 %v407
      %v1070 = vpop.f32.mrf.mxu0
      %v1071 = vadd.f32 0.0, %v1070
      %v1072 = vpop.f32.mrf.mxu0
      %v1073 = vadd.f32 0.0, %v1072
      %1074 = vmatmul.bf16.gmra.mxu0 %v964
      %v1075 = vpop.f32.mrf.mxu0
      %v1076 = vadd.f32 0.0, %v1075
      %v1077 = vpop.f32.mrf.mxu0
      %v1078 = vadd.f32 0.0, %v1077
      %1079 = vdwg.mxu0
      %v1080 = vadd.f32 %v944, %v1041
      %v1081 = vadd.f32 %v945, %v1043
      %v1082 = vadd.f32 %v946, %v1046
      %v1083 = vadd.f32 %v947, %v1048
      %v1084 = vadd.f32 %v948, %v1051
      %v1085 = vadd.f32 %v949, %v1053
      %v1086 = vadd.f32 %v950, %v1056
      %v1087 = vadd.f32 %v951, %v1058
      %v1088 = vadd.f32 %v952, %v1061
      %v1089 = vadd.f32 %v953, %v1063
      %v1090 = vadd.f32 %v954, %v1066
      %v1091 = vadd.f32 %v955, %v1068
      %v1092 = vadd.f32 %v956, %v1071
      %v1093 = vadd.f32 %v957, %v1073
      %v1094 = vadd.f32 %v958, %v1076
      %v1095 = vadd.f32 %v959, %v1078
      %v1097 = vunpack.c.l.b16 %v351
      %v1098 = vpack.c.b16 %v1097, %v1097
      %v1100 = vshrl.u32 %v964, 16
      %v1102 = vshll.u32 %v964, 16
      %v1104 = vrot.slane %v1102, 1
      %v1105 = vor.u32 %v1100, %v1104
      %v1107 = vshll.u32 %v1098, 16
      %v1109 = vrot.slane %v1107, 1
      %v1110 = vsel %vm541, %v1105, %v1109
      %s1112 = scalar_lea.vmem %s2, 256
      %v1113 = vld [vmem:[%s1112] sm:$0xf]
      %v1114 = vld [vmem:[%s1112 + $0x4] sm:$0xf]
      %v1115 = vld [vmem:[%s1112 + $0x8] sm:$0xf]
      %v1116 = vld [vmem:[%s1112 + $0xc] sm:$0xf]
      %v1117 = vld [vmem:[%s1112 + $0x10] sm:$0xf]
      %v1118 = vld [vmem:[%s1112 + $0x14] sm:$0xf]
      %v1119 = vld [vmem:[%s1112 + $0x18] sm:$0xf]
      %v1120 = vld [vmem:[%s1112 + $0x1c] sm:$0xf]
      %v1121 = vld [vmem:[%s1112 + $0x20] sm:$0xf]
      %v1122 = vld [vmem:[%s1112 + $0x24] sm:$0xf]
      %v1123 = vld [vmem:[%s1112 + $0x28] sm:$0xf]
      %v1124 = vld [vmem:[%s1112 + $0x2c] sm:$0xf]
      %v1125 = vld [vmem:[%s1112 + $0x30] sm:$0xf]
      %v1126 = vld [vmem:[%s1112 + $0x34] sm:$0xf]
      %v1127 = vld [vmem:[%s1112 + $0x38] sm:$0xf]
      %v1128 = vld [vmem:[%s1112 + $0x3c] sm:$0xf]
      %v1145 = vunpack.c.l.b16 %v1113
      %v1146 = vunpack.c.l.b16 %v1114
      %v1147 = vunpack.c.l.b16 %v1115
      %v1148 = vunpack.c.l.b16 %v1116
      %v1149 = vunpack.c.l.b16 %v1117
      %v1150 = vunpack.c.l.b16 %v1118
      %v1151 = vunpack.c.l.b16 %v1119
      %v1152 = vunpack.c.l.b16 %v1120
      %v1153 = vunpack.c.l.b16 %v1121
      %v1154 = vunpack.c.l.b16 %v1122
      %v1155 = vunpack.c.l.b16 %v1123
      %v1156 = vunpack.c.l.b16 %v1124
      %v1157 = vunpack.c.l.b16 %v1125
      %v1158 = vunpack.c.l.b16 %v1126
      %v1159 = vunpack.c.l.b16 %v1127
      %v1160 = vunpack.c.l.b16 %v1128
      %v1161 = vpack.c.b16 %v1146, %v1145
      %v1162 = vpack.c.b16 %v1148, %v1147
      %v1163 = vpack.c.b16 %v1150, %v1149
      %v1164 = vpack.c.b16 %v1152, %v1151
      %v1165 = vpack.c.b16 %v1154, %v1153
      %v1166 = vpack.c.b16 %v1156, %v1155
      %v1167 = vpack.c.b16 %v1158, %v1157
      %v1168 = vpack.c.b16 %v1160, %v1159
      %1177 = vmatpush.bf16.msra.mxu0 %v1168
      %1178 = vmatpush.bf16.msra.mxu0 %v1167
      %1179 = vmatpush.bf16.msra.mxu0 %v1166
      %1180 = vmatpush.bf16.msra.mxu0 %v1165
      %1181 = vmatpush.bf16.msra.mxu0 %v1164
      %1182 = vmatpush.bf16.msra.mxu0 %v1163
      %1183 = vmatpush.bf16.msra.mxu0 %v1162
      %1184 = vmatpush.bf16.msra.mxu0 %v1161
      %1185 = vmatmul.bf16.gmra.mxu0 %v569
      %v1186 = vpop.f32.mrf.mxu0
      %v1187 = vadd.f32 0.0, %v1186
      %v1188 = vpop.f32.mrf.mxu0
      %v1189 = vadd.f32 0.0, %v1188
      %1190 = vmatmul.bf16.gmra.mxu0 %v585
      %v1191 = vpop.f32.mrf.mxu0
      %v1192 = vadd.f32 0.0, %v1191
      %v1193 = vpop.f32.mrf.mxu0
      %v1194 = vadd.f32 0.0, %v1193
      %1195 = vmatmul.bf16.gmra.mxu0 %v601
      %v1196 = vpop.f32.mrf.mxu0
      %v1197 = vadd.f32 0.0, %v1196
      %v1198 = vpop.f32.mrf.mxu0
      %v1199 = vadd.f32 0.0, %v1198
      %1200 = vmatmul.bf16.gmra.mxu0 %v617
      %v1201 = vpop.f32.mrf.mxu0
      %v1202 = vadd.f32 0.0, %v1201
      %v1203 = vpop.f32.mrf.mxu0
      %v1204 = vadd.f32 0.0, %v1203
      %1205 = vmatmul.bf16.gmra.mxu0 %v633
      %v1206 = vpop.f32.mrf.mxu0
      %v1207 = vadd.f32 0.0, %v1206
      %v1208 = vpop.f32.mrf.mxu0
      %v1209 = vadd.f32 0.0, %v1208
      %1210 = vmatmul.bf16.gmra.mxu0 %v649
      %v1211 = vpop.f32.mrf.mxu0
      %v1212 = vadd.f32 0.0, %v1211
      %v1213 = vpop.f32.mrf.mxu0
      %v1214 = vadd.f32 0.0, %v1213
      %1215 = vmatmul.bf16.gmra.mxu0 %v665
      %v1216 = vpop.f32.mrf.mxu0
      %v1217 = vadd.f32 0.0, %v1216
      %v1218 = vpop.f32.mrf.mxu0
      %v1219 = vadd.f32 0.0, %v1218
      %1220 = vmatmul.bf16.gmra.mxu0 %v1110
      %v1221 = vpop.f32.mrf.mxu0
      %v1222 = vadd.f32 0.0, %v1221
      %v1223 = vpop.f32.mrf.mxu0
      %v1224 = vadd.f32 0.0, %v1223
      %1225 = vdwg.mxu0
      %v1226 = vadd.f32 %v1080, %v1187
      %v1227 = vadd.f32 %v1081, %v1189
      %v1228 = vadd.f32 %v1082, %v1192
      %v1229 = vadd.f32 %v1083, %v1194
      %v1230 = vadd.f32 %v1084, %v1197
      %v1231 = vadd.f32 %v1085, %v1199
      %v1232 = vadd.f32 %v1086, %v1202
      %v1233 = vadd.f32 %v1087, %v1204
      %v1234 = vadd.f32 %v1088, %v1207
      %v1235 = vadd.f32 %v1089, %v1209
      %v1236 = vadd.f32 %v1090, %v1212
      %v1237 = vadd.f32 %v1091, %v1214
      %v1238 = vadd.f32 %v1092, %v1217
      %v1239 = vadd.f32 %v1093, %v1219
      %v1240 = vadd.f32 %v1094, %v1222
      %v1241 = vadd.f32 %v1095, %v1224
      %v1242 = vrot.slane %v964, 1
      %v1243 = vrot.slane %v1098, 1
      %v1244 = vsel %vm797, %v1242, %v1243
      %s1246 = scalar_lea.vmem %s2, 320
      %v1247 = vld [vmem:[%s1246] sm:$0xf]
      %v1248 = vld [vmem:[%s1246 + $0x4] sm:$0xf]
      %v1249 = vld [vmem:[%s1246 + $0x8] sm:$0xf]
      %v1250 = vld [vmem:[%s1246 + $0xc] sm:$0xf]
      %v1251 = vld [vmem:[%s1246 + $0x10] sm:$0xf]
      %v1252 = vld [vmem:[%s1246 + $0x14] sm:$0xf]
      %v1253 = vld [vmem:[%s1246 + $0x18] sm:$0xf]
      %v1254 = vld [vmem:[%s1246 + $0x1c] sm:$0xf]
      %v1255 = vld [vmem:[%s1246 + $0x20] sm:$0xf]
      %v1256 = vld [vmem:[%s1246 + $0x24] sm:$0xf]
      %v1257 = vld [vmem:[%s1246 + $0x28] sm:$0xf]
      %v1258 = vld [vmem:[%s1246 + $0x2c] sm:$0xf]
      %v1259 = vld [vmem:[%s1246 + $0x30] sm:$0xf]
      %v1260 = vld [vmem:[%s1246 + $0x34] sm:$0xf]
      %v1261 = vld [vmem:[%s1246 + $0x38] sm:$0xf]
      %v1262 = vld [vmem:[%s1246 + $0x3c] sm:$0xf]
      %v1279 = vunpack.c.l.b16 %v1247
      %v1280 = vunpack.c.l.b16 %v1248
      %v1281 = vunpack.c.l.b16 %v1249
      %v1282 = vunpack.c.l.b16 %v1250
      %v1283 = vunpack.c.l.b16 %v1251
      %v1284 = vunpack.c.l.b16 %v1252
      %v1285 = vunpack.c.l.b16 %v1253
      %v1286 = vunpack.c.l.b16 %v1254
      %v1287 = vunpack.c.l.b16 %v1255
      %v1288 = vunpack.c.l.b16 %v1256
      %v1289 = vunpack.c.l.b16 %v1257
      %v1290 = vunpack.c.l.b16 %v1258
      %v1291 = vunpack.c.l.b16 %v1259
      %v1292 = vunpack.c.l.b16 %v1260
      %v1293 = vunpack.c.l.b16 %v1261
      %v1294 = vunpack.c.l.b16 %v1262
      %v1295 = vpack.c.b16 %v1280, %v1279
      %v1296 = vpack.c.b16 %v1282, %v1281
      %v1297 = vpack.c.b16 %v1284, %v1283
      %v1298 = vpack.c.b16 %v1286, %v1285
      %v1299 = vpack.c.b16 %v1288, %v1287
      %v1300 = vpack.c.b16 %v1290, %v1289
      %v1301 = vpack.c.b16 %v1292, %v1291
      %v1302 = vpack.c.b16 %v1294, %v1293
      %1311 = vmatpush.bf16.msra.mxu0 %v1302
      %1312 = vmatpush.bf16.msra.mxu0 %v1301
      %1313 = vmatpush.bf16.msra.mxu0 %v1300
      %1314 = vmatpush.bf16.msra.mxu0 %v1299
      %1315 = vmatpush.bf16.msra.mxu0 %v1298
      %1316 = vmatpush.bf16.msra.mxu0 %v1297
      %1317 = vmatpush.bf16.msra.mxu0 %v1296
      %1318 = vmatpush.bf16.msra.mxu0 %v1295
      %1319 = vmatmul.bf16.gmra.mxu0 %v804
      %v1320 = vpop.f32.mrf.mxu0
      %v1321 = vadd.f32 0.0, %v1320
      %v1322 = vpop.f32.mrf.mxu0
      %v1323 = vadd.f32 0.0, %v1322
      %1324 = vmatmul.bf16.gmra.mxu0 %v808
      %v1325 = vpop.f32.mrf.mxu0
      %v1326 = vadd.f32 0.0, %v1325
      %v1327 = vpop.f32.mrf.mxu0
      %v1328 = vadd.f32 0.0, %v1327
      %1329 = vmatmul.bf16.gmra.mxu0 %v812
      %v1330 = vpop.f32.mrf.mxu0
      %v1331 = vadd.f32 0.0, %v1330
      %v1332 = vpop.f32.mrf.mxu0
      %v1333 = vadd.f32 0.0, %v1332
      %1334 = vmatmul.bf16.gmra.mxu0 %v816
      %v1335 = vpop.f32.mrf.mxu0
      %v1336 = vadd.f32 0.0, %v1335
      %v1337 = vpop.f32.mrf.mxu0
      %v1338 = vadd.f32 0.0, %v1337
      %1339 = vmatmul.bf16.gmra.mxu0 %v820
      %v1340 = vpop.f32.mrf.mxu0
      %v1341 = vadd.f32 0.0, %v1340
      %v1342 = vpop.f32.mrf.mxu0
      %v1343 = vadd.f32 0.0, %v1342
      %1344 = vmatmul.bf16.gmra.mxu0 %v824
      %v1345 = vpop.f32.mrf.mxu0
      %v1346 = vadd.f32 0.0, %v1345
      %v1347 = vpop.f32.mrf.mxu0
      %v1348 = vadd.f32 0.0, %v1347
      %1349 = vmatmul.bf16.gmra.mxu0 %v828
      %v1350 = vpop.f32.mrf.mxu0
      %v1351 = vadd.f32 0.0, %v1350
      %v1352 = vpop.f32.mrf.mxu0
      %v1353 = vadd.f32 0.0, %v1352
      %1354 = vmatmul.bf16.gmra.mxu0 %v1244
      %v1355 = vpop.f32.mrf.mxu0
      %v1356 = vadd.f32 0.0, %v1355
      %v1357 = vpop.f32.mrf.mxu0
      %v1358 = vadd.f32 0.0, %v1357
      %1359 = vdwg.mxu0
      %v1360 = vadd.f32 %v1226, %v1321
      %v1361 = vadd.f32 %v1227, %v1323
      %v1362 = vadd.f32 %v1228, %v1326
      %v1363 = vadd.f32 %v1229, %v1328
      %v1364 = vadd.f32 %v1230, %v1331
      %v1365 = vadd.f32 %v1231, %v1333
      %v1366 = vadd.f32 %v1232, %v1336
      %v1367 = vadd.f32 %v1233, %v1338
      %v1368 = vadd.f32 %v1234, %v1341
      %v1369 = vadd.f32 %v1235, %v1343
      %v1370 = vadd.f32 %v1236, %v1346
      %v1371 = vadd.f32 %v1237, %v1348
      %v1372 = vadd.f32 %v1238, %v1351
      %v1373 = vadd.f32 %v1239, %v1353
      %v1374 = vadd.f32 %v1240, %v1356
      %v1375 = vadd.f32 %v1241, %v1358
      %v1378 = vunpack.c.l.b16 %v353
      %v1379 = vunpack.c.l.b16 %v354
      %v1380 = vpack.c.b16 %v1379, %v1378
      %s1382 = scalar_lea.vmem %s2, 384
      %v1383 = vld [vmem:[%s1382] sm:$0xf]
      %v1384 = vld [vmem:[%s1382 + $0x4] sm:$0xf]
      %v1385 = vld [vmem:[%s1382 + $0x8] sm:$0xf]
      %v1386 = vld [vmem:[%s1382 + $0xc] sm:$0xf]
      %v1387 = vld [vmem:[%s1382 + $0x10] sm:$0xf]
      %v1388 = vld [vmem:[%s1382 + $0x14] sm:$0xf]
      %v1389 = vld [vmem:[%s1382 + $0x18] sm:$0xf]
      %v1390 = vld [vmem:[%s1382 + $0x1c] sm:$0xf]
      %v1391 = vld [vmem:[%s1382 + $0x20] sm:$0xf]
      %v1392 = vld [vmem:[%s1382 + $0x24] sm:$0xf]
      %v1393 = vld [vmem:[%s1382 + $0x28] sm:$0xf]
      %v1394 = vld [vmem:[%s1382 + $0x2c] sm:$0xf]
      %v1395 = vld [vmem:[%s1382 + $0x30] sm:$0xf]
      %v1396 = vld [vmem:[%s1382 + $0x34] sm:$0xf]
      %v1397 = vld [vmem:[%s1382 + $0x38] sm:$0xf]
      %v1398 = vld [vmem:[%s1382 + $0x3c] sm:$0xf]
      %v1415 = vunpack.c.l.b16 %v1383
      %v1416 = vunpack.c.l.b16 %v1384
      %v1417 = vunpack.c.l.b16 %v1385
      %v1418 = vunpack.c.l.b16 %v1386
      %v1419 = vunpack.c.l.b16 %v1387
      %v1420 = vunpack.c.l.b16 %v1388
      %v1421 = vunpack.c.l.b16 %v1389
      %v1422 = vunpack.c.l.b16 %v1390
      %v1423 = vunpack.c.l.b16 %v1391
      %v1424 = vunpack.c.l.b16 %v1392
      %v1425 = vunpack.c.l.b16 %v1393
      %v1426 = vunpack.c.l.b16 %v1394
      %v1427 = vunpack.c.l.b16 %v1395
      %v1428 = vunpack.c.l.b16 %v1396
      %v1429 = vunpack.c.l.b16 %v1397
      %v1430 = vunpack.c.l.b16 %v1398
      %v1431 = vpack.c.b16 %v1416, %v1415
      %v1432 = vpack.c.b16 %v1418, %v1417
      %v1433 = vpack.c.b16 %v1420, %v1419
      %v1434 = vpack.c.b16 %v1422, %v1421
      %v1435 = vpack.c.b16 %v1424, %v1423
      %v1436 = vpack.c.b16 %v1426, %v1425
      %v1437 = vpack.c.b16 %v1428, %v1427
      %v1438 = vpack.c.b16 %v1430, %v1429
      %1447 = vmatpush.bf16.msra.mxu0 %v1438
      %1448 = vmatpush.bf16.msra.mxu0 %v1437
      %1449 = vmatpush.bf16.msra.mxu0 %v1436
      %1450 = vmatpush.bf16.msra.mxu0 %v1435
      %1451 = vmatpush.bf16.msra.mxu0 %v1434
      %1452 = vmatpush.bf16.msra.mxu0 %v1433
      %1453 = vmatpush.bf16.msra.mxu0 %v1432
      %1454 = vmatpush.bf16.msra.mxu0 %v1431
      %1455 = vmatmul.bf16.gmra.mxu0 %v377
      %v1456 = vpop.f32.mrf.mxu0
      %v1457 = vadd.f32 0.0, %v1456
      %v1458 = vpop.f32.mrf.mxu0
      %v1459 = vadd.f32 0.0, %v1458
      %1460 = vmatmul.bf16.gmra.mxu0 %v383
      %v1461 = vpop.f32.mrf.mxu0
      %v1462 = vadd.f32 0.0, %v1461
      %v1463 = vpop.f32.mrf.mxu0
      %v1464 = vadd.f32 0.0, %v1463
      %1465 = vmatmul.bf16.gmra.mxu0 %v389
      %v1466 = vpop.f32.mrf.mxu0
      %v1467 = vadd.f32 0.0, %v1466
      %v1468 = vpop.f32.mrf.mxu0
      %v1469 = vadd.f32 0.0, %v1468
      %1470 = vmatmul.bf16.gmra.mxu0 %v395
      %v1471 = vpop.f32.mrf.mxu0
      %v1472 = vadd.f32 0.0, %v1471
      %v1473 = vpop.f32.mrf.mxu0
      %v1474 = vadd.f32 0.0, %v1473
      %1475 = vmatmul.bf16.gmra.mxu0 %v401
      %v1476 = vpop.f32.mrf.mxu0
      %v1477 = vadd.f32 0.0, %v1476
      %v1478 = vpop.f32.mrf.mxu0
      %v1479 = vadd.f32 0.0, %v1478
      %1480 = vmatmul.bf16.gmra.mxu0 %v407
      %v1481 = vpop.f32.mrf.mxu0
      %v1482 = vadd.f32 0.0, %v1481
      %v1483 = vpop.f32.mrf.mxu0
      %v1484 = vadd.f32 0.0, %v1483
      %1485 = vmatmul.bf16.gmra.mxu0 %v964
      %v1486 = vpop.f32.mrf.mxu0
      %v1487 = vadd.f32 0.0, %v1486
      %v1488 = vpop.f32.mrf.mxu0
      %v1489 = vadd.f32 0.0, %v1488
      %1490 = vmatmul.bf16.gmra.mxu0 %v1380
      %v1491 = vpop.f32.mrf.mxu0
      %v1492 = vadd.f32 0.0, %v1491
      %v1493 = vpop.f32.mrf.mxu0
      %v1494 = vadd.f32 0.0, %v1493
      %1495 = vdwg.mxu0
      %v1496 = vadd.f32 %v1360, %v1457
      %v1497 = vadd.f32 %v1361, %v1459
      %v1498 = vadd.f32 %v1362, %v1462
      %v1499 = vadd.f32 %v1363, %v1464
      %v1500 = vadd.f32 %v1364, %v1467
      %v1501 = vadd.f32 %v1365, %v1469
      %v1502 = vadd.f32 %v1366, %v1472
      %v1503 = vadd.f32 %v1367, %v1474
      %v1504 = vadd.f32 %v1368, %v1477
      %v1505 = vadd.f32 %v1369, %v1479
      %v1506 = vadd.f32 %v1370, %v1482
      %v1507 = vadd.f32 %v1371, %v1484
      %v1508 = vadd.f32 %v1372, %v1487
      %v1509 = vadd.f32 %v1373, %v1489
      %v1510 = vadd.f32 %v1374, %v1492
      %v1511 = vadd.f32 %v1375, %v1494
      %v1513 = vunpack.c.l.b16 %v355
      %v1514 = vpack.c.b16 %v1513, %v1513
      %v1516 = vshrl.u32 %v1380, 16
      %v1518 = vshll.u32 %v1380, 16
      %v1520 = vrot.slane %v1518, 1
      %v1521 = vor.u32 %v1516, %v1520
      %v1523 = vshll.u32 %v1514, 16
      %v1525 = vrot.slane %v1523, 1
      %v1526 = vsel %vm541, %v1521, %v1525
      %s1528 = scalar_lea.vmem %s2, 448
      %v1529 = vld [vmem:[%s1528] sm:$0xf]
      %v1530 = vld [vmem:[%s1528 + $0x4] sm:$0xf]
      %v1531 = vld [vmem:[%s1528 + $0x8] sm:$0xf]
      %v1532 = vld [vmem:[%s1528 + $0xc] sm:$0xf]
      %v1533 = vld [vmem:[%s1528 + $0x10] sm:$0xf]
      %v1534 = vld [vmem:[%s1528 + $0x14] sm:$0xf]
      %v1535 = vld [vmem:[%s1528 + $0x18] sm:$0xf]
      %v1536 = vld [vmem:[%s1528 + $0x1c] sm:$0xf]
      %v1537 = vld [vmem:[%s1528 + $0x20] sm:$0xf]
      %v1538 = vld [vmem:[%s1528 + $0x24] sm:$0xf]
      %v1539 = vld [vmem:[%s1528 + $0x28] sm:$0xf]
      %v1540 = vld [vmem:[%s1528 + $0x2c] sm:$0xf]
      %v1541 = vld [vmem:[%s1528 + $0x30] sm:$0xf]
      %v1542 = vld [vmem:[%s1528 + $0x34] sm:$0xf]
      %v1543 = vld [vmem:[%s1528 + $0x38] sm:$0xf]
      %v1544 = vld [vmem:[%s1528 + $0x3c] sm:$0xf]
      %v1561 = vunpack.c.l.b16 %v1529
      %v1562 = vunpack.c.l.b16 %v1530
      %v1563 = vunpack.c.l.b16 %v1531
      %v1564 = vunpack.c.l.b16 %v1532
      %v1565 = vunpack.c.l.b16 %v1533
      %v1566 = vunpack.c.l.b16 %v1534
      %v1567 = vunpack.c.l.b16 %v1535
      %v1568 = vunpack.c.l.b16 %v1536
      %v1569 = vunpack.c.l.b16 %v1537
      %v1570 = vunpack.c.l.b16 %v1538
      %v1571 = vunpack.c.l.b16 %v1539
      %v1572 = vunpack.c.l.b16 %v1540
      %v1573 = vunpack.c.l.b16 %v1541
      %v1574 = vunpack.c.l.b16 %v1542
      %v1575 = vunpack.c.l.b16 %v1543
      %v1576 = vunpack.c.l.b16 %v1544
      %v1577 = vpack.c.b16 %v1562, %v1561
      %v1578 = vpack.c.b16 %v1564, %v1563
      %v1579 = vpack.c.b16 %v1566, %v1565
      %v1580 = vpack.c.b16 %v1568, %v1567
      %v1581 = vpack.c.b16 %v1570, %v1569
      %v1582 = vpack.c.b16 %v1572, %v1571
      %v1583 = vpack.c.b16 %v1574, %v1573
      %v1584 = vpack.c.b16 %v1576, %v1575
      %1593 = vmatpush.bf16.msra.mxu0 %v1584
      %1594 = vmatpush.bf16.msra.mxu0 %v1583
      %1595 = vmatpush.bf16.msra.mxu0 %v1582
      %1596 = vmatpush.bf16.msra.mxu0 %v1581
      %1597 = vmatpush.bf16.msra.mxu0 %v1580
      %1598 = vmatpush.bf16.msra.mxu0 %v1579
      %1599 = vmatpush.bf16.msra.mxu0 %v1578
      %1600 = vmatpush.bf16.msra.mxu0 %v1577
      %1601 = vmatmul.bf16.gmra.mxu0 %v585
      %v1602 = vpop.f32.mrf.mxu0
      %v1603 = vadd.f32 0.0, %v1602
      %v1604 = vpop.f32.mrf.mxu0
      %v1605 = vadd.f32 0.0, %v1604
      %1606 = vmatmul.bf16.gmra.mxu0 %v601
      %v1607 = vpop.f32.mrf.mxu0
      %v1608 = vadd.f32 0.0, %v1607
      %v1609 = vpop.f32.mrf.mxu0
      %v1610 = vadd.f32 0.0, %v1609
      %1611 = vmatmul.bf16.gmra.mxu0 %v617
      %v1612 = vpop.f32.mrf.mxu0
      %v1613 = vadd.f32 0.0, %v1612
      %v1614 = vpop.f32.mrf.mxu0
      %v1615 = vadd.f32 0.0, %v1614
      %1616 = vmatmul.bf16.gmra.mxu0 %v633
      %v1617 = vpop.f32.mrf.mxu0
      %v1618 = vadd.f32 0.0, %v1617
      %v1619 = vpop.f32.mrf.mxu0
      %v1620 = vadd.f32 0.0, %v1619
      %1621 = vmatmul.bf16.gmra.mxu0 %v649
      %v1622 = vpop.f32.mrf.mxu0
      %v1623 = vadd.f32 0.0, %v1622
      %v1624 = vpop.f32.mrf.mxu0
      %v1625 = vadd.f32 0.0, %v1624
      %1626 = vmatmul.bf16.gmra.mxu0 %v665
      %v1627 = vpop.f32.mrf.mxu0
      %v1628 = vadd.f32 0.0, %v1627
      %v1629 = vpop.f32.mrf.mxu0
      %v1630 = vadd.f32 0.0, %v1629
      %1631 = vmatmul.bf16.gmra.mxu0 %v1110
      %v1632 = vpop.f32.mrf.mxu0
      %v1633 = vadd.f32 0.0, %v1632
      %v1634 = vpop.f32.mrf.mxu0
      %v1635 = vadd.f32 0.0, %v1634
      %1636 = vmatmul.bf16.gmra.mxu0 %v1526
      %v1637 = vpop.f32.mrf.mxu0
      %v1638 = vadd.f32 0.0, %v1637
      %v1639 = vpop.f32.mrf.mxu0
      %v1640 = vadd.f32 0.0, %v1639
      %1641 = vdwg.mxu0
      %v1642 = vadd.f32 %v1496, %v1603
      %v1643 = vadd.f32 %v1497, %v1605
      %v1644 = vadd.f32 %v1498, %v1608
      %v1645 = vadd.f32 %v1499, %v1610
      %v1646 = vadd.f32 %v1500, %v1613
      %v1647 = vadd.f32 %v1501, %v1615
      %v1648 = vadd.f32 %v1502, %v1618
      %v1649 = vadd.f32 %v1503, %v1620
      %v1650 = vadd.f32 %v1504, %v1623
      %v1651 = vadd.f32 %v1505, %v1625
      %v1652 = vadd.f32 %v1506, %v1628
      %v1653 = vadd.f32 %v1507, %v1630
      %v1654 = vadd.f32 %v1508, %v1633
      %v1655 = vadd.f32 %v1509, %v1635
      %v1656 = vadd.f32 %v1510, %v1638
      %v1657 = vadd.f32 %v1511, %v1640
      %v1658 = vrot.slane %v1380, 1
      %v1659 = vrot.slane %v1514, 1
      %v1660 = vsel %vm797, %v1658, %v1659
      %s1662 = scalar_lea.vmem %s2, 512
      %v1663 = vld [vmem:[%s1662] sm:$0xf]
      %v1664 = vld [vmem:[%s1662 + $0x4] sm:$0xf]
      %v1665 = vld [vmem:[%s1662 + $0x8] sm:$0xf]
      %v1666 = vld [vmem:[%s1662 + $0xc] sm:$0xf]
      %v1667 = vld [vmem:[%s1662 + $0x10] sm:$0xf]
      %v1668 = vld [vmem:[%s1662 + $0x14] sm:$0xf]
      %v1669 = vld [vmem:[%s1662 + $0x18] sm:$0xf]
      %v1670 = vld [vmem:[%s1662 + $0x1c] sm:$0xf]
      %v1671 = vld [vmem:[%s1662 + $0x20] sm:$0xf]
      %v1672 = vld [vmem:[%s1662 + $0x24] sm:$0xf]
      %v1673 = vld [vmem:[%s1662 + $0x28] sm:$0xf]
      %v1674 = vld [vmem:[%s1662 + $0x2c] sm:$0xf]
      %v1675 = vld [vmem:[%s1662 + $0x30] sm:$0xf]
      %v1676 = vld [vmem:[%s1662 + $0x34] sm:$0xf]
      %v1677 = vld [vmem:[%s1662 + $0x38] sm:$0xf]
      %v1678 = vld [vmem:[%s1662 + $0x3c] sm:$0xf]
      %v1695 = vunpack.c.l.b16 %v1663
      %v1696 = vunpack.c.l.b16 %v1664
      %v1697 = vunpack.c.l.b16 %v1665
      %v1698 = vunpack.c.l.b16 %v1666
      %v1699 = vunpack.c.l.b16 %v1667
      %v1700 = vunpack.c.l.b16 %v1668
      %v1701 = vunpack.c.l.b16 %v1669
      %v1702 = vunpack.c.l.b16 %v1670
      %v1703 = vunpack.c.l.b16 %v1671
      %v1704 = vunpack.c.l.b16 %v1672
      %v1705 = vunpack.c.l.b16 %v1673
      %v1706 = vunpack.c.l.b16 %v1674
      %v1707 = vunpack.c.l.b16 %v1675
      %v1708 = vunpack.c.l.b16 %v1676
      %v1709 = vunpack.c.l.b16 %v1677
      %v1710 = vunpack.c.l.b16 %v1678
      %v1711 = vpack.c.b16 %v1696, %v1695
      %v1712 = vpack.c.b16 %v1698, %v1697
      %v1713 = vpack.c.b16 %v1700, %v1699
      %v1714 = vpack.c.b16 %v1702, %v1701
      %v1715 = vpack.c.b16 %v1704, %v1703
      %v1716 = vpack.c.b16 %v1706, %v1705
      %v1717 = vpack.c.b16 %v1708, %v1707
      %v1718 = vpack.c.b16 %v1710, %v1709
      %1727 = vmatpush.bf16.msra.mxu0 %v1718
      %1728 = vmatpush.bf16.msra.mxu0 %v1717
      %1729 = vmatpush.bf16.msra.mxu0 %v1716
      %1730 = vmatpush.bf16.msra.mxu0 %v1715
      %1731 = vmatpush.bf16.msra.mxu0 %v1714
      %1732 = vmatpush.bf16.msra.mxu0 %v1713
      %1733 = vmatpush.bf16.msra.mxu0 %v1712
      %1734 = vmatpush.bf16.msra.mxu0 %v1711
      %1735 = vmatmul.bf16.gmra.mxu0 %v808
      %v1736 = vpop.f32.mrf.mxu0
      %v1737 = vadd.f32 0.0, %v1736
      %v1738 = vpop.f32.mrf.mxu0
      %v1739 = vadd.f32 0.0, %v1738
      %1740 = vmatmul.bf16.gmra.mxu0 %v812
      %v1741 = vpop.f32.mrf.mxu0
      %v1742 = vadd.f32 0.0, %v1741
      %v1743 = vpop.f32.mrf.mxu0
      %v1744 = vadd.f32 0.0, %v1743
      %1745 = vmatmul.bf16.gmra.mxu0 %v816
      %v1746 = vpop.f32.mrf.mxu0
      %v1747 = vadd.f32 0.0, %v1746
      %v1748 = vpop.f32.mrf.mxu0
      %v1749 = vadd.f32 0.0, %v1748
      %1750 = vmatmul.bf16.gmra.mxu0 %v820
      %v1751 = vpop.f32.mrf.mxu0
      %v1752 = vadd.f32 0.0, %v1751
      %v1753 = vpop.f32.mrf.mxu0
      %v1754 = vadd.f32 0.0, %v1753
      %1755 = vmatmul.bf16.gmra.mxu0 %v824
      %v1756 = vpop.f32.mrf.mxu0
      %v1757 = vadd.f32 0.0, %v1756
      %v1758 = vpop.f32.mrf.mxu0
      %v1759 = vadd.f32 0.0, %v1758
      %1760 = vmatmul.bf16.gmra.mxu0 %v828
      %v1761 = vpop.f32.mrf.mxu0
      %v1762 = vadd.f32 0.0, %v1761
      %v1763 = vpop.f32.mrf.mxu0
      %v1764 = vadd.f32 0.0, %v1763
      %1765 = vmatmul.bf16.gmra.mxu0 %v1244
      %v1766 = vpop.f32.mrf.mxu0
      %v1767 = vadd.f32 0.0, %v1766
      %v1768 = vpop.f32.mrf.mxu0
      %v1769 = vadd.f32 0.0, %v1768
      %1770 = vmatmul.bf16.gmra.mxu0 %v1660
      %v1771 = vpop.f32.mrf.mxu0
      %v1772 = vadd.f32 0.0, %v1771
      %v1773 = vpop.f32.mrf.mxu0
      %v1774 = vadd.f32 0.0, %v1773
      %1775 = vdwg.mxu0
      %v1776 = vadd.f32 %v1642, %v1737
      %v1777 = vadd.f32 %v1643, %v1739
      %v1778 = vadd.f32 %v1644, %v1742
      %v1779 = vadd.f32 %v1645, %v1744
      %v1780 = vadd.f32 %v1646, %v1747
      %v1781 = vadd.f32 %v1647, %v1749
      %v1782 = vadd.f32 %v1648, %v1752
      %v1783 = vadd.f32 %v1649, %v1754
      %v1784 = vadd.f32 %v1650, %v1757
      %v1785 = vadd.f32 %v1651, %v1759
      %v1786 = vadd.f32 %v1652, %v1762
      %v1787 = vadd.f32 %v1653, %v1764
      %v1788 = vadd.f32 %v1654, %v1767
      %v1789 = vadd.f32 %v1655, %v1769
      %v1790 = vadd.f32 %v1656, %v1772
      %v1791 = vadd.f32 %v1657, %v1774
      %1792 = vst [vmem:[%s314] sm:$0xff] %v1776
      %1793 = vst [vmem:[%s314 + $0x8] sm:$0xff] %v1777
      %1794 = vst [vmem:[%s314 + $0x10] sm:$0xff] %v1778
      %1795 = vst [vmem:[%s314 + $0x18] sm:$0xff] %v1779
      %1796 = vst [vmem:[%s314 + $0x20] sm:$0xff] %v1780
      %1797 = vst [vmem:[%s314 + $0x28] sm:$0xff] %v1781
      %1798 = vst [vmem:[%s314 + $0x30] sm:$0xff] %v1782
      %1799 = vst [vmem:[%s314 + $0x38] sm:$0xff] %v1783
      %1800 = vst [vmem:[%s314 + $0x40] sm:$0xff] %v1784
      %1801 = vst [vmem:[%s314 + $0x48] sm:$0xff] %v1785
      %1802 = vst [vmem:[%s314 + $0x50] sm:$0xff] %v1786
      %1803 = vst [vmem:[%s314 + $0x58] sm:$0xff] %v1787
      %1804 = vst [vmem:[%s314 + $0x60] sm:$0xff] %v1788
      %1805 = vst [vmem:[%s314 + $0x68] sm:$0xff] %v1789
      %1806 = vst [vmem:[%s314 + $0x70] sm:$0xff] %v1790
      %1807 = vst [vmem:[%s314 + $0x78] sm:$0xff] %v1791
      %s1808 = smul.u32 %s19, 2
      %s1809 = sadd.s32 %s1808, %s20
      %s1810 = smul.u32 16, %s1809
      %p1811 = scmp.lt.s32.totalorder %s1810, 63
      %s1812 = scalar_select %p1811, %s1810, 63
      %s1813 = smul.addr %s1812, 8
      %s1814 = scalar_lea.vmem %s4, %s1813
      // Predicated region
      $region37: #{dcn_sep_head_forward.10} parent=35 // pred_check
        %p1815 = pneg %p151
      $region38: #{dcn_sep_head_forward.10} parent=35 // pred_check_branch
        %1817 = sbr.rel (%p1815) target = $region40
      $region39: #{dcn_sep_head_forward.10} parent=35 // pred_region
        %s1818 = smul.u32 %s19, 2
        %s1819 = sadd.s32 %s1818, %s20
        %s1820 = smul.u32 16, %s1819
      $region40: #{dcn_sep_head_forward.10} parent=35 // pred_fallthru
        _
    $region36: #{dcn_sep_head_forward.10} parent=5 // pred_fallthru
      _
    %p1821 = scmp.le.s32.totalorder 2, %s10
    // Predicated region
    $region41: #{dcn_sep_head_forward.10} parent=5 // pred_check
      %p1822 = pneg %p1821
    $region42: #{dcn_sep_head_forward.10} parent=5 // pred_check_branch
      %1824 = sbr.rel (%p1822) target = $region44
    $region43: #{dcn_sep_head_forward.10} parent=5 // pred_region
      %s1825 = ssub.s32 %s10, 2
      // Predicated region
      $region45: #{dcn_sep_head_forward.10} parent=43 // pred_check
        %p1826 = pneg %p157
      $region46: #{dcn_sep_head_forward.10} parent=43 // pred_check_branch
        %1828 = sbr.rel (%p1826) target = $region48
      $region47: #{dcn_sep_head_forward.10} parent=43 // pred_region
        %s1829 = smul.u32 %s21, 2
        %s1830 = sadd.s32 %s1829, %s22
        %s1831 = smul.u32 16, %s1830
        %p1832 = scmp.lt.s32.totalorder %s1831, 63
        %s1833 = scalar_select %p1832, %s1831, 63
        %s1834 = smul.addr %s1833, 8
        %s1835 = scalar_lea.vmem %s4, %s1834
      $region48: #{dcn_sep_head_forward.10} parent=43 // pred_fallthru
        _
    $region44: #{dcn_sep_head_forward.10} parent=5 // pred_fallthru
      _
  $region6: #{dcn_sep_head_forward.10} parent=0 // loop_footer
    %s14 = sadd.s32 1, %s10
  $region7: #{dcn_sep_head_forward.10} parent=0 // loop_footer_branch
    %9 = sbr.rel target = $region3
  $region8: #{dcn_sep_head_forward.10} parent=0 // loop_exit
    _

// kernel: dcn_sep_head_forward.11
$region0: #{dcn_sep_head_forward.11}
  #allocation0 [shape = 'u32[]', space=smem, size = 0x4, offset = 0x4, fixed_abs, tag = 'smem constant byte address 0x4 - core index']
  #allocation1 [shape = 'u32[72,128]{1,0:T(1,128)}', space=vmem, size = 0x9000, scoped, tag = 'internal scratch']
  %s0 = inlined_call_operand.vmem [shape: bf16[512,8], index: 0, kind: input, shape index: {}]
  %s1 = inlined_call_operand.vmem [shape: bf16[8,256], index: 1, kind: input, shape index: {}]
  %s2 = inlined_call_operand.vmem [shape: f32[1,256], index: 2, kind: input, shape index: {}]
  %s3 = inlined_call_operand.vmem [shape: bf16[256,128], index: 3, kind: input, shape index: {}]
  %s4 = inlined_call_operand.vmem [shape: f32[1,128], index: 4, kind: input, shape index: {}]
  %s5 = inlined_call_operand.vmem [shape: f32[512,128], index: 5, kind: output, shape index: {}]
  %s6 = sld [smem:[#allocation0]]
  $region53: #{dcn_sep_head_forward.11} parent=0
    _
  %s8 = ssub.s32 1, %s6
  %s9 = scalar_select 0, %s8, %s6
  loop: start=0, step=1, limit=4
  $region2: #{dcn_sep_head_forward.11} parent=0 // loop_pre_header
    _
  $region3: #{dcn_sep_head_forward.11} parent=0 // loop_header
    %s11 = sphi 0, %s15
    %p12 = scmp.ge.s32.totalorder %s11, 4
    %s21 = sphi 0, %s23
    %s24 = sphi 0, %s21
    %s25 = sphi 0, %s24
    %s41 = sphi 0, %s25
    %s45 = sphi 0, %s45
    %s47 = sphi 0, %s45
    %s48 = sphi 0, %s47
    %s62 = sphi 0, %s48
    %s66 = sphi 0, %s66
    %s68 = sphi 0, %s66
    %s69 = sphi 0, %s68
    %s83 = sphi 0, %s69
    %s87 = sphi 0, %s87
    %s89 = sphi 0, %s87
    %s90 = sphi 0, %s89
    %s104 = sphi 0, %s90
    %s108 = sphi 0, %s108
    %s110 = sphi 0, %s108
    %s111 = sphi 0, %s110
    %s125 = sphi 0, %s111
    %s131 = sphi 0, %s133
    %s134 = sphi 0, %s131
    %s135 = sphi 0, %s134
    %s151 = sphi 0, %s135
  $region4: #{dcn_sep_head_forward.11} parent=0 // loop_header_branch
    %14 = sbr.rel (%p12) target = $region8
  $region5: #{dcn_sep_head_forward.11} parent=0 // loop_body
    %s16 = ssub.s32 %s11, 1
    %s17 = ssub.s32 %s11, 2
    %s18 = sadd.s32 %s11, 1
    %s19 = ssub.s32 %s11, %s18
    %p20 = scmp.eq.s32.totalorder %s19, 0
    %s22 = sadd.s32 %s21, 1
    %s23 = scalar_select %p20, %s21, %s22
    %p26 = pneg %p20
    %p27 = scmp.eq.s32.totalorder %s11, 1
    %p28 = por %p26, %p27
    %p29 = scmp.ne.s32.totalorder %s21, %s24
    %p30 = scmp.eq.s32.totalorder %s11, 0
    %p31 = por %p29, %p30
    %p32 = scmp.ne.s32.totalorder %s21, %s24
    %p33 = scmp.eq.s32.totalorder %s16, 1
    %p34 = por %p32, %p33
    %p35 = scmp.ne.s32.totalorder %s24, %s25
    %p36 = scmp.eq.s32.totalorder %s16, 0
    %p37 = por %p35, %p36
    %p38 = scmp.ne.s32.totalorder %s24, %s25
    %p39 = scmp.eq.s32.totalorder %s17, 1
    %p40 = por %p38, %p39
    %p42 = scmp.ne.s32.totalorder %s25, %s41
    %p43 = scmp.eq.s32.totalorder %s17, 0
    %p44 = por %p42, %p43
    %s46 = sadd.s32 %s45, 1
    %p49 = scmp.eq.s32.totalorder %s11, 1
    %p50 = scmp.ne.s32.totalorder %s45, %s47
    %p51 = scmp.eq.s32.totalorder %s11, 0
    %p52 = por %p50, %p51
    %p53 = scmp.ne.s32.totalorder %s45, %s47
    %p54 = scmp.eq.s32.totalorder %s16, 1
    %p55 = por %p53, %p54
    %p56 = scmp.ne.s32.totalorder %s47, %s48
    %p57 = scmp.eq.s32.totalorder %s16, 0
    %p58 = por %p56, %p57
    %p59 = scmp.ne.s32.totalorder %s47, %s48
    %p60 = scmp.eq.s32.totalorder %s17, 1
    %p61 = por %p59, %p60
    %p63 = scmp.ne.s32.totalorder %s48, %s62
    %p64 = scmp.eq.s32.totalorder %s17, 0
    %p65 = por %p63, %p64
    %s67 = sadd.s32 %s66, 1
    %p70 = scmp.eq.s32.totalorder %s11, 1
    %p71 = scmp.ne.s32.totalorder %s66, %s68
    %p72 = scmp.eq.s32.totalorder %s11, 0
    %p73 = por %p71, %p72
    %p74 = scmp.ne.s32.totalorder %s66, %s68
    %p75 = scmp.eq.s32.totalorder %s16, 1
    %p76 = por %p74, %p75
    %p77 = scmp.ne.s32.totalorder %s68, %s69
    %p78 = scmp.eq.s32.totalorder %s16, 0
    %p79 = por %p77, %p78
    %p80 = scmp.ne.s32.totalorder %s68, %s69
    %p81 = scmp.eq.s32.totalorder %s17, 1
    %p82 = por %p80, %p81
    %p84 = scmp.ne.s32.totalorder %s69, %s83
    %p85 = scmp.eq.s32.totalorder %s17, 0
    %p86 = por %p84, %p85
    %s88 = sadd.s32 %s87, 1
    %p91 = scmp.eq.s32.totalorder %s11, 1
    %p92 = scmp.ne.s32.totalorder %s87, %s89
    %p93 = scmp.eq.s32.totalorder %s11, 0
    %p94 = por %p92, %p93
    %p95 = scmp.ne.s32.totalorder %s87, %s89
    %p96 = scmp.eq.s32.totalorder %s16, 1
    %p97 = por %p95, %p96
    %p98 = scmp.ne.s32.totalorder %s89, %s90
    %p99 = scmp.eq.s32.totalorder %s16, 0
    %p100 = por %p98, %p99
    %p101 = scmp.ne.s32.totalorder %s89, %s90
    %p102 = scmp.eq.s32.totalorder %s17, 1
    %p103 = por %p101, %p102
    %p105 = scmp.ne.s32.totalorder %s90, %s104
    %p106 = scmp.eq.s32.totalorder %s17, 0
    %p107 = por %p105, %p106
    %s109 = sadd.s32 %s108, 1
    %p112 = scmp.eq.s32.totalorder %s11, 1
    %p113 = scmp.ne.s32.totalorder %s108, %s110
    %p114 = scmp.eq.s32.totalorder %s11, 0
    %p115 = por %p113, %p114
    %p116 = scmp.ne.s32.totalorder %s108, %s110
    %p117 = scmp.eq.s32.totalorder %s16, 1
    %p118 = por %p116, %p117
    %p119 = scmp.ne.s32.totalorder %s110, %s111
    %p120 = scmp.eq.s32.totalorder %s16, 0
    %p121 = por %p119, %p120
    %p122 = scmp.ne.s32.totalorder %s110, %s111
    %p123 = scmp.eq.s32.totalorder %s17, 1
    %p124 = por %p122, %p123
    %p126 = scmp.ne.s32.totalorder %s111, %s125
    %p127 = scmp.eq.s32.totalorder %s17, 0
    %p128 = por %p126, %p127
    %s129 = ssub.s32 %s11, %s18
    %p130 = scmp.eq.s32.totalorder %s129, 0
    %s132 = sadd.s32 %s131, 1
    %s133 = scalar_select %p130, %s131, %s132
    %p136 = pneg %p130
    %p137 = scmp.eq.s32.totalorder %s11, 1
    %p138 = por %p136, %p137
    %p139 = scmp.ne.s32.totalorder %s131, %s134
    %p140 = scmp.eq.s32.totalorder %s11, 0
    %p141 = por %p139, %p140
    %p142 = scmp.ne.s32.totalorder %s131, %s134
    %p143 = scmp.eq.s32.totalorder %s16, 1
    %p144 = por %p142, %p143
    %p145 = scmp.ne.s32.totalorder %s134, %s135
    %p146 = scmp.eq.s32.totalorder %s16, 0
    %p147 = por %p145, %p146
    %p148 = scmp.ne.s32.totalorder %s134, %s135
    %p149 = scmp.eq.s32.totalorder %s17, 1
    %p150 = por %p148, %p149
    %p152 = scmp.ne.s32.totalorder %s135, %s151
    %p153 = scmp.eq.s32.totalorder %s17, 0
    %p154 = por %p152, %p153
    %p155 = scmp.le.s32.totalorder 1, %s11
    %p156 = scmp.lt.s32.totalorder %s11, 3
    %p157 = pnand %p155, %p156
    %p158 = pneg %p157
    // Predicated region
    $region9: #{dcn_sep_head_forward.11} parent=5 // pred_check
      _
    $region10: #{dcn_sep_head_forward.11} parent=5 // pred_check_branch
      %160 = sbr.rel (%p157) target = $region12
    $region11: #{dcn_sep_head_forward.11} parent=5 // pred_region
      %s161 = ssub.s32 %s11, 1
      // Predicated region
      $region13: #{dcn_sep_head_forward.11} parent=11 // pred_check
        %p162 = pneg %p58
      $region14: #{dcn_sep_head_forward.11} parent=11 // pred_check_branch
        %164 = sbr.rel (%p162) target = $region16
      $region15: #{dcn_sep_head_forward.11} parent=11 // pred_region
        _
      $region16: #{dcn_sep_head_forward.11} parent=11 // pred_fallthru
        _
      // Predicated region
      $region17: #{dcn_sep_head_forward.11} parent=11 // pred_check
        %p165 = pneg %p79
      $region18: #{dcn_sep_head_forward.11} parent=11 // pred_check_branch
        %167 = sbr.rel (%p165) target = $region20
      $region19: #{dcn_sep_head_forward.11} parent=11 // pred_region
        _
      $region20: #{dcn_sep_head_forward.11} parent=11 // pred_fallthru
        _
      // Predicated region
      $region21: #{dcn_sep_head_forward.11} parent=11 // pred_check
        %p168 = pneg %p100
      $region22: #{dcn_sep_head_forward.11} parent=11 // pred_check_branch
        %170 = sbr.rel (%p168) target = $region24
      $region23: #{dcn_sep_head_forward.11} parent=11 // pred_region
        _
      $region24: #{dcn_sep_head_forward.11} parent=11 // pred_fallthru
        _
      // Predicated region
      $region25: #{dcn_sep_head_forward.11} parent=11 // pred_check
        %p171 = pneg %p121
      $region26: #{dcn_sep_head_forward.11} parent=11 // pred_check_branch
        %173 = sbr.rel (%p171) target = $region28
      $region27: #{dcn_sep_head_forward.11} parent=11 // pred_region
        _
      $region28: #{dcn_sep_head_forward.11} parent=11 // pred_fallthru
        _
    $region12: #{dcn_sep_head_forward.11} parent=5 // pred_fallthru
      _
    %p174 = scmp.lt.s32.totalorder %s11, 2
    // Predicated region
    $region29: #{dcn_sep_head_forward.11} parent=5 // pred_check
      %p175 = pneg %p174
    $region30: #{dcn_sep_head_forward.11} parent=5 // pred_check_branch
      %177 = sbr.rel (%p175) target = $region32
    $region31: #{dcn_sep_head_forward.11} parent=5 // pred_region
      // Predicated region
      $region33: #{dcn_sep_head_forward.11} parent=31 // pred_check
        %p178 = pneg %p31
      $region34: #{dcn_sep_head_forward.11} parent=31 // pred_check_branch
        %180 = sbr.rel (%p178) target = $region36
      $region35: #{dcn_sep_head_forward.11} parent=31 // pred_region
        %s181 = smul.u32 32, %s11
        %p182 = scmp.lt.s32.totalorder %s181, 63
        %s183 = scalar_select %p182, %s181, 63
        %s184 = smul.addr %s183, 4
        %s185 = scalar_lea.vmem %s0, %s184
        %s186 = smul.u32 32, %s11
      $region36: #{dcn_sep_head_forward.11} parent=31 // pred_fallthru
        _
    $region32: #{dcn_sep_head_forward.11} parent=5 // pred_fallthru
      _
    %p187 = scmp.le.s32.totalorder 1, %s11
    %p188 = scmp.lt.s32.totalorder %s11, 3
    %p189 = pnand %p187, %p188
    %p190 = pneg %p189
    // Predicated region
    $region37: #{dcn_sep_head_forward.11} parent=5 // pred_check
      _
    $region38: #{dcn_sep_head_forward.11} parent=5 // pred_check_branch
      %192 = sbr.rel (%p189) target = $region40
    $region39: #{dcn_sep_head_forward.11} parent=5 // pred_region
      %s193 = ssub.s32 %s11, 1
      %s194 = smul.u32 32, %s16
      %p195 = scmp.lt.s32.totalorder %s194, 63
      %s196 = scalar_select %p195, %s194, 63
      %s197 = smul.addr %s196, 4
      %s198 = scalar_lea.vmem %s0, %s197
      %p199 = pneg %p37
      %p200 = pneg %p34
      %p201 = pneg %p58
      %p202 = pneg %p55
      %p203 = pneg %p79
      %p204 = pneg %p76
      %p205 = pneg %p100
      %p206 = pneg %p97
      %p207 = pneg %p121
      %p208 = pneg %p118
      %p209 = pneg %p147
      %p210 = pneg %p144
      %s211 = smul.u32 32, %s16
      %p212 = scmp.lt.s32.totalorder %s211, 63
      %s213 = scalar_select %p212, %s211, 63
      %s214 = smul.addr %s213, 8
      %s215 = scalar_lea.vmem %s5, %s214
      %s216 = smul.u32 32, %s16
      %p217 = scmp.lt.s32.totalorder %s216, 63
      %s218 = scalar_select %p217, %s216, 63
      %s219 = smul.addr %s218, 4
      %s220 = scalar_lea.vmem %s0, %s219
      %s221 = smul.u32 32, %s16
      %s222 = smul.u32 32, %s16
      %p223 = scmp.lt.s32.totalorder %s222, 63
      %s224 = scalar_select %p223, %s222, 63
      %s225 = smul.addr %s224, 8
      %s226 = scalar_lea.vmem %s5, %s225
      %s227 = smul.u32 32, %s16
      %v229 = vld [vmem:[%s220] sm:$0xf]
      %v230 = vld [vmem:[%s220 + $0x4] sm:$0xf]
      %v231 = vld [vmem:[%s220 + $0x8] sm:$0xf]
      %v232 = vld [vmem:[%s220 + $0xc] sm:$0xf]
      %v233 = vld [vmem:[%s220 + $0x10] sm:$0xf]
      %v234 = vld [vmem:[%s220 + $0x14] sm:$0xf]
      %v235 = vld [vmem:[%s220 + $0x18] sm:$0xf]
      %v236 = vld [vmem:[%s220 + $0x1c] sm:$0xf]
      %v237 = vld [vmem:[%s220 + $0x20] sm:$0xf]
      %v238 = vld [vmem:[%s220 + $0x24] sm:$0xf]
      %v239 = vld [vmem:[%s220 + $0x28] sm:$0xf]
      %v240 = vld [vmem:[%s220 + $0x2c] sm:$0xf]
      %v241 = vld [vmem:[%s220 + $0x30] sm:$0xf]
      %v242 = vld [vmem:[%s220 + $0x34] sm:$0xf]
      %v243 = vld [vmem:[%s220 + $0x38] sm:$0xf]
      %v244 = vld [vmem:[%s220 + $0x3c] sm:$0xf]
      %v245 = vld [vmem:[%s220 + $0x40] sm:$0xf]
      %v246 = vld [vmem:[%s220 + $0x44] sm:$0xf]
      %v247 = vld [vmem:[%s220 + $0x48] sm:$0xf]
      %v248 = vld [vmem:[%s220 + $0x4c] sm:$0xf]
      %v249 = vld [vmem:[%s220 + $0x50] sm:$0xf]
      %v250 = vld [vmem:[%s220 + $0x54] sm:$0xf]
      %v251 = vld [vmem:[%s220 + $0x58] sm:$0xf]
      %v252 = vld [vmem:[%s220 + $0x5c] sm:$0xf]
      %v253 = vld [vmem:[%s220 + $0x60] sm:$0xf]
      %v254 = vld [vmem:[%s220 + $0x64] sm:$0xf]
      %v255 = vld [vmem:[%s220 + $0x68] sm:$0xf]
      %v256 = vld [vmem:[%s220 + $0x6c] sm:$0xf]
      %v257 = vld [vmem:[%s220 + $0x70] sm:$0xf]
      %v258 = vld [vmem:[%s220 + $0x74] sm:$0xf]
      %v259 = vld [vmem:[%s220 + $0x78] sm:$0xf]
      %v260 = vld [vmem:[%s220 + $0x7c] sm:$0xf]
      %v261 = vld [vmem:[%s1] sm:$0xff]
      %v262 = vld [vmem:[%s2] sm:$0x3]
      %v264 = vperm.slane %v262, 0
      %v265 = vperm.slane %v262, 1
      %v300 = vunpack.c.l.b16 %v229
      %v301 = vunpack.c.l.b16 %v230
      %v302 = vunpack.c.l.b16 %v231
      %v303 = vunpack.c.l.b16 %v232
      %v304 = vunpack.c.l.b16 %v233
      %v305 = vunpack.c.l.b16 %v234
      %v306 = vunpack.c.l.b16 %v235
      %v307 = vunpack.c.l.b16 %v236
      %v308 = vunpack.c.l.b16 %v237
      %v309 = vunpack.c.l.b16 %v238
      %v310 = vunpack.c.l.b16 %v239
      %v311 = vunpack.c.l.b16 %v240
      %v312 = vunpack.c.l.b16 %v241
      %v313 = vunpack.c.l.b16 %v242
      %v314 = vunpack.c.l.b16 %v243
      %v315 = vunpack.c.l.b16 %v244
      %v316 = vunpack.c.l.b16 %v245
      %v317 = vunpack.c.l.b16 %v246
      %v318 = vunpack.c.l.b16 %v247
      %v319 = vunpack.c.l.b16 %v248
      %v320 = vunpack.c.l.b16 %v249
      %v321 = vunpack.c.l.b16 %v250
      %v322 = vunpack.c.l.b16 %v251
      %v323 = vunpack.c.l.b16 %v252
      %v324 = vunpack.c.l.b16 %v253
      %v325 = vunpack.c.l.b16 %v254
      %v326 = vunpack.c.l.b16 %v255
      %v327 = vunpack.c.l.b16 %v256
      %v328 = vunpack.c.l.b16 %v257
      %v329 = vunpack.c.l.b16 %v258
      %v330 = vunpack.c.l.b16 %v259
      %v331 = vunpack.c.l.b16 %v260
      %v332 = vpack.c.b16 %v301, %v300
      %v333 = vpack.c.b16 %v303, %v302
      %v334 = vpack.c.b16 %v305, %v304
      %v335 = vpack.c.b16 %v307, %v306
      %v336 = vpack.c.b16 %v309, %v308
      %v337 = vpack.c.b16 %v311, %v310
      %v338 = vpack.c.b16 %v313, %v312
      %v339 = vpack.c.b16 %v315, %v314
      %v340 = vpack.c.b16 %v317, %v316
      %v341 = vpack.c.b16 %v319, %v318
      %v342 = vpack.c.b16 %v321, %v320
      %v343 = vpack.c.b16 %v323, %v322
      %v344 = vpack.c.b16 %v325, %v324
      %v345 = vpack.c.b16 %v327, %v326
      %v346 = vpack.c.b16 %v329, %v328
      %v347 = vpack.c.b16 %v331, %v330
      %v349 = vunpack.c.l.b16 %v261
      %v350 = vunpack.c.h.b16 %v261
      %v351 = vpack.c.b16 %v349, %v349
      %v352 = vpack.c.b16 %v350, %v350
      %vm353 = vcmask 64512
      %v355 = vsel %vm353, %v332, 0
      %v358 = vsel %vm353, %v333, 0
      %v361 = vsel %vm353, %v334, 0
      %v364 = vsel %vm353, %v335, 0
      %v367 = vsel %vm353, %v336, 0
      %v370 = vsel %vm353, %v337, 0
      %v373 = vsel %vm353, %v338, 0
      %v376 = vsel %vm353, %v339, 0
      %v379 = vsel %vm353, %v340, 0
      %v382 = vsel %vm353, %v341, 0
      %v385 = vsel %vm353, %v342, 0
      %v388 = vsel %vm353, %v343, 0
      %v391 = vsel %vm353, %v344, 0
      %v394 = vsel %vm353, %v345, 0
      %v397 = vsel %vm353, %v346, 0
      %v400 = vsel %vm353, %v347, 0
      %vm402 = vcmask 1043456
      %v404 = vsel %vm402, %v351, 0
      %v407 = vsel %vm402, %v352, 0
      %409 = vmatpush.bf16.msra.mxu0 0
      %410 = vmatpush.bf16.msra.mxu0 0
      %411 = vmatpush.bf16.msra.mxu0 0
      %412 = vmatpush.bf16.msra.mxu0 0
      %413 = vmatpush.bf16.msra.mxu0 0
      %414 = vmatpush.bf16.msra.mxu0 0
      %415 = vmatpush.bf16.msra.mxu0 0
      %416 = vmatpush.bf16.msra.mxu0 %v404
      %417 = vmatmul.bf16.gmra.mxu0 %v355
      %v418 = vpop.f32.mrf.mxu0
      %v419 = vadd.f32 %v264, %v418
      %v420 = vpop.f32.mrf.mxu0
      %v421 = vadd.f32 %v264, %v420
      %422 = vmatmul.bf16.gmra.mxu0 %v358
      %v423 = vpop.f32.mrf.mxu0
      %v424 = vadd.f32 %v264, %v423
      %v425 = vpop.f32.mrf.mxu0
      %v426 = vadd.f32 %v264, %v425
      %427 = vmatmul.bf16.gmra.mxu0 %v361
      %v428 = vpop.f32.mrf.mxu0
      %v429 = vadd.f32 %v264, %v428
      %v430 = vpop.f32.mrf.mxu0
      %v431 = vadd.f32 %v264, %v430
      %432 = vmatmul.bf16.gmra.mxu0 %v364
      %v433 = vpop.f32.mrf.mxu0
      %v434 = vadd.f32 %v264, %v433
      %v435 = vpop.f32.mrf.mxu0
      %v436 = vadd.f32 %v264, %v435
      %437 = vmatmul.bf16.gmra.mxu0 %v367
      %v438 = vpop.f32.mrf.mxu0
      %v439 = vadd.f32 %v264, %v438
      %v440 = vpop.f32.mrf.mxu0
      %v441 = vadd.f32 %v264, %v440
      %442 = vmatmul.bf16.gmra.mxu0 %v370
      %v443 = vpop.f32.mrf.mxu0
      %v444 = vadd.f32 %v264, %v443
      %v445 = vpop.f32.mrf.mxu0
      %v446 = vadd.f32 %v264, %v445
      %447 = vmatmul.bf16.gmra.mxu0 %v373
      %v448 = vpop.f32.mrf.mxu0
      %v449 = vadd.f32 %v264, %v448
      %v450 = vpop.f32.mrf.mxu0
      %v451 = vadd.f32 %v264, %v450
      %452 = vmatmul.bf16.gmra.mxu0 %v376
      %v453 = vpop.f32.mrf.mxu0
      %v454 = vadd.f32 %v264, %v453
      %v455 = vpop.f32.mrf.mxu0
      %v456 = vadd.f32 %v264, %v455
      %457 = vmatmul.bf16.gmra.mxu0 %v379
      %v458 = vpop.f32.mrf.mxu0
      %v459 = vadd.f32 %v264, %v458
      %v460 = vpop.f32.mrf.mxu0
      %v461 = vadd.f32 %v264, %v460
      %462 = vmatmul.bf16.gmra.mxu0 %v382
      %v463 = vpop.f32.mrf.mxu0
      %v464 = vadd.f32 %v264, %v463
      %v465 = vpop.f32.mrf.mxu0
      %v466 = vadd.f32 %v264, %v465
      %467 = vmatmul.bf16.gmra.mxu0 %v385
      %v468 = vpop.f32.mrf.mxu0
      %v469 = vadd.f32 %v264, %v468
      %v470 = vpop.f32.mrf.mxu0
      %v471 = vadd.f32 %v264, %v470
      %472 = vmatmul.bf16.gmra.mxu0 %v388
      %v473 = vpop.f32.mrf.mxu0
      %v474 = vadd.f32 %v264, %v473
      %v475 = vpop.f32.mrf.mxu0
      %v476 = vadd.f32 %v264, %v475
      %477 = vmatmul.bf16.gmra.mxu0 %v391
      %v478 = vpop.f32.mrf.mxu0
      %v479 = vadd.f32 %v264, %v478
      %v480 = vpop.f32.mrf.mxu0
      %v481 = vadd.f32 %v264, %v480
      %482 = vmatmul.bf16.gmra.mxu0 %v394
      %v483 = vpop.f32.mrf.mxu0
      %v484 = vadd.f32 %v264, %v483
      %v485 = vpop.f32.mrf.mxu0
      %v486 = vadd.f32 %v264, %v485
      %487 = vmatmul.bf16.gmra.mxu0 %v397
      %v488 = vpop.f32.mrf.mxu0
      %v489 = vadd.f32 %v264, %v488
      %v490 = vpop.f32.mrf.mxu0
      %v491 = vadd.f32 %v264, %v490
      %492 = vmatmul.bf16.gmra.mxu0 %v400
      %v493 = vpop.f32.mrf.mxu0
      %v494 = vadd.f32 %v264, %v493
      %v495 = vpop.f32.mrf.mxu0
      %v496 = vadd.f32 %v264, %v495
      %497 = vdwg.mxu0
      %498 = vmatpush.bf16.msra.mxu0 0
      %499 = vmatpush.bf16.msra.mxu0 0
      %500 = vmatpush.bf16.msra.mxu0 0
      %501 = vmatpush.bf16.msra.mxu0 0
      %502 = vmatpush.bf16.msra.mxu0 0
      %503 = vmatpush.bf16.msra.mxu0 0
      %504 = vmatpush.bf16.msra.mxu0 0
      %505 = vmatpush.bf16.msra.mxu0 %v407
      %506 = vmatmul.bf16.gmra.mxu0 %v355
      %v507 = vpop.f32.mrf.mxu0
      %v508 = vadd.f32 %v265, %v507
      %v509 = vpop.f32.mrf.mxu0
      %v510 = vadd.f32 %v265, %v509
      %511 = vmatmul.bf16.gmra.mxu0 %v358
      %v512 = vpop.f32.mrf.mxu0
      %v513 = vadd.f32 %v265, %v512
      %v514 = vpop.f32.mrf.mxu0
      %v515 = vadd.f32 %v265, %v514
      %516 = vmatmul.bf16.gmra.mxu0 %v361
      %v517 = vpop.f32.mrf.mxu0
      %v518 = vadd.f32 %v265, %v517
      %v519 = vpop.f32.mrf.mxu0
      %v520 = vadd.f32 %v265, %v519
      %521 = vmatmul.bf16.gmra.mxu0 %v364
      %v522 = vpop.f32.mrf.mxu0
      %v523 = vadd.f32 %v265, %v522
      %v524 = vpop.f32.mrf.mxu0
      %v525 = vadd.f32 %v265, %v524
      %526 = vmatmul.bf16.gmra.mxu0 %v367
      %v527 = vpop.f32.mrf.mxu0
      %v528 = vadd.f32 %v265, %v527
      %v529 = vpop.f32.mrf.mxu0
      %v530 = vadd.f32 %v265, %v529
      %531 = vmatmul.bf16.gmra.mxu0 %v370
      %v532 = vpop.f32.mrf.mxu0
      %v533 = vadd.f32 %v265, %v532
      %v534 = vpop.f32.mrf.mxu0
      %v535 = vadd.f32 %v265, %v534
      %536 = vmatmul.bf16.gmra.mxu0 %v373
      %v537 = vpop.f32.mrf.mxu0
      %v538 = vadd.f32 %v265, %v537
      %v539 = vpop.f32.mrf.mxu0
      %v540 = vadd.f32 %v265, %v539
      %541 = vmatmul.bf16.gmra.mxu0 %v376
      %v542 = vpop.f32.mrf.mxu0
      %v543 = vadd.f32 %v265, %v542
      %v544 = vpop.f32.mrf.mxu0
      %v545 = vadd.f32 %v265, %v544
      %546 = vmatmul.bf16.gmra.mxu0 %v379
      %v547 = vpop.f32.mrf.mxu0
      %v548 = vadd.f32 %v265, %v547
      %v549 = vpop.f32.mrf.mxu0
      %v550 = vadd.f32 %v265, %v549
      %551 = vmatmul.bf16.gmra.mxu0 %v382
      %v552 = vpop.f32.mrf.mxu0
      %v553 = vadd.f32 %v265, %v552
      %v554 = vpop.f32.mrf.mxu0
      %v555 = vadd.f32 %v265, %v554
      %556 = vmatmul.bf16.gmra.mxu0 %v385
      %v557 = vpop.f32.mrf.mxu0
      %v558 = vadd.f32 %v265, %v557
      %v559 = vpop.f32.mrf.mxu0
      %v560 = vadd.f32 %v265, %v559
      %561 = vmatmul.bf16.gmra.mxu0 %v388
      %v562 = vpop.f32.mrf.mxu0
      %v563 = vadd.f32 %v265, %v562
      %v564 = vpop.f32.mrf.mxu0
      %v565 = vadd.f32 %v265, %v564
      %566 = vmatmul.bf16.gmra.mxu0 %v391
      %v567 = vpop.f32.mrf.mxu0
      %v568 = vadd.f32 %v265, %v567
      %v569 = vpop.f32.mrf.mxu0
      %v570 = vadd.f32 %v265, %v569
      %571 = vmatmul.bf16.gmra.mxu0 %v394
      %v572 = vpop.f32.mrf.mxu0
      %v573 = vadd.f32 %v265, %v572
      %v574 = vpop.f32.mrf.mxu0
      %v575 = vadd.f32 %v265, %v574
      %576 = vmatmul.bf16.gmra.mxu0 %v397
      %v577 = vpop.f32.mrf.mxu0
      %v578 = vadd.f32 %v265, %v577
      %v579 = vpop.f32.mrf.mxu0
      %v580 = vadd.f32 %v265, %v579
      %581 = vmatmul.bf16.gmra.mxu0 %v400
      %v582 = vpop.f32.mrf.mxu0
      %v583 = vadd.f32 %v265, %v582
      %v584 = vpop.f32.mrf.mxu0
      %v585 = vadd.f32 %v265, %v584
      %586 = vdwg.mxu0
      %v587 = vmax.f32 %v419, 0.0
      %v588 = vmax.f32 %v508, 0.0
      %v589 = vmax.f32 %v421, 0.0
      %v590 = vmax.f32 %v510, 0.0
      %v591 = vmax.f32 %v424, 0.0
      %v592 = vmax.f32 %v513, 0.0
      %v593 = vmax.f32 %v426, 0.0
      %v594 = vmax.f32 %v515, 0.0
      %v595 = vmax.f32 %v429, 0.0
      %v596 = vmax.f32 %v518, 0.0
      %v597 = vmax.f32 %v431, 0.0
      %v598 = vmax.f32 %v520, 0.0
      %v599 = vmax.f32 %v434, 0.0
      %v600 = vmax.f32 %v523, 0.0
      %v601 = vmax.f32 %v436, 0.0
      %v602 = vmax.f32 %v525, 0.0
      %v603 = vmax.f32 %v439, 0.0
      %v604 = vmax.f32 %v528, 0.0
      %v605 = vmax.f32 %v441, 0.0
      %v606 = vmax.f32 %v530, 0.0
      %v607 = vmax.f32 %v444, 0.0
      %v608 = vmax.f32 %v533, 0.0
      %v609 = vmax.f32 %v446, 0.0
      %v610 = vmax.f32 %v535, 0.0
      %v611 = vmax.f32 %v449, 0.0
      %v612 = vmax.f32 %v538, 0.0
      %v613 = vmax.f32 %v451, 0.0
      %v614 = vmax.f32 %v540, 0.0
      %v615 = vmax.f32 %v454, 0.0
      %v616 = vmax.f32 %v543, 0.0
      %v617 = vmax.f32 %v456, 0.0
      %v618 = vmax.f32 %v545, 0.0
      %v619 = vmax.f32 %v459, 0.0
      %v620 = vmax.f32 %v548, 0.0
      %v621 = vmax.f32 %v461, 0.0
      %v622 = vmax.f32 %v550, 0.0
      %v623 = vmax.f32 %v464, 0.0
      %v624 = vmax.f32 %v553, 0.0
      %v625 = vmax.f32 %v466, 0.0
      %v626 = vmax.f32 %v555, 0.0
      %v627 = vmax.f32 %v469, 0.0
      %v628 = vmax.f32 %v558, 0.0
      %v629 = vmax.f32 %v471, 0.0
      %v630 = vmax.f32 %v560, 0.0
      %v631 = vmax.f32 %v474, 0.0
      %v632 = vmax.f32 %v563, 0.0
      %v633 = vmax.f32 %v476, 0.0
      %v634 = vmax.f32 %v565, 0.0
      %v635 = vmax.f32 %v479, 0.0
      %v636 = vmax.f32 %v568, 0.0
      %v637 = vmax.f32 %v481, 0.0
      %v638 = vmax.f32 %v570, 0.0
      %v639 = vmax.f32 %v484, 0.0
      %v640 = vmax.f32 %v573, 0.0
      %v641 = vmax.f32 %v486, 0.0
      %v642 = vmax.f32 %v575, 0.0
      %v643 = vmax.f32 %v489, 0.0
      %v644 = vmax.f32 %v578, 0.0
      %v645 = vmax.f32 %v491, 0.0
      %v646 = vmax.f32 %v580, 0.0
      %v647 = vmax.f32 %v494, 0.0
      %v648 = vmax.f32 %v583, 0.0
      %v649 = vmax.f32 %v496, 0.0
      %v650 = vmax.f32 %v585, 0.0
      %v651 = vpack.c.bf16 %v589, %v587
      %v652 = vpack.c.bf16 %v590, %v588
      %v653 = vpack.c.bf16 %v593, %v591
      %v654 = vpack.c.bf16 %v594, %v592
      %v655 = vpack.c.bf16 %v597, %v595
      %v656 = vpack.c.bf16 %v598, %v596
      %v657 = vpack.c.bf16 %v601, %v599
      %v658 = vpack.c.bf16 %v602, %v600
      %v659 = vpack.c.bf16 %v605, %v603
      %v660 = vpack.c.bf16 %v606, %v604
      %v661 = vpack.c.bf16 %v609, %v607
      %v662 = vpack.c.bf16 %v610, %v608
      %v663 = vpack.c.bf16 %v613, %v611
      %v664 = vpack.c.bf16 %v614, %v612
      %v665 = vpack.c.bf16 %v617, %v615
      %v666 = vpack.c.bf16 %v618, %v616
      %v667 = vpack.c.bf16 %v621, %v619
      %v668 = vpack.c.bf16 %v622, %v620
      %v669 = vpack.c.bf16 %v625, %v623
      %v670 = vpack.c.bf16 %v626, %v624
      %v671 = vpack.c.bf16 %v629, %v627
      %v672 = vpack.c.bf16 %v630, %v628
      %v673 = vpack.c.bf16 %v633, %v631
      %v674 = vpack.c.bf16 %v634, %v632
      %v675 = vpack.c.bf16 %v637, %v635
      %v676 = vpack.c.bf16 %v638, %v636
      %v677 = vpack.c.bf16 %v641, %v639
      %v678 = vpack.c.bf16 %v642, %v640
      %v679 = vpack.c.bf16 %v645, %v643
      %v680 = vpack.c.bf16 %v646, %v644
      %v681 = vpack.c.bf16 %v649, %v647
      %v682 = vpack.c.bf16 %v650, %v648
      %v683 = vld [vmem:[%s3] sm:$0xf]
      %v684 = vld [vmem:[%s3 + $0x4] sm:$0xf]
      %v685 = vld [vmem:[%s3 + $0x8] sm:$0xf]
      %v686 = vld [vmem:[%s3 + $0xc] sm:$0xf]
      %v687 = vld [vmem:[%s3 + $0x10] sm:$0xf]
      %v688 = vld [vmem:[%s3 + $0x14] sm:$0xf]
      %v689 = vld [vmem:[%s3 + $0x18] sm:$0xf]
      %v690 = vld [vmem:[%s3 + $0x1c] sm:$0xf]
      %v691 = vld [vmem:[%s3 + $0x20] sm:$0xf]
      %v692 = vld [vmem:[%s3 + $0x24] sm:$0xf]
      %v693 = vld [vmem:[%s3 + $0x28] sm:$0xf]
      %v694 = vld [vmem:[%s3 + $0x2c] sm:$0xf]
      %v695 = vld [vmem:[%s3 + $0x30] sm:$0xf]
      %v696 = vld [vmem:[%s3 + $0x34] sm:$0xf]
      %v697 = vld [vmem:[%s3 + $0x38] sm:$0xf]
      %v698 = vld [vmem:[%s3 + $0x3c] sm:$0xf]
      %v699 = vld [vmem:[%s3 + $0x40] sm:$0xf]
      %v700 = vld [vmem:[%s3 + $0x44] sm:$0xf]
      %v701 = vld [vmem:[%s3 + $0x48] sm:$0xf]
      %v702 = vld [vmem:[%s3 + $0x4c] sm:$0xf]
      %v703 = vld [vmem:[%s3 + $0x50] sm:$0xf]
      %v704 = vld [vmem:[%s3 + $0x54] sm:$0xf]
      %v705 = vld [vmem:[%s3 + $0x58] sm:$0xf]
      %v706 = vld [vmem:[%s3 + $0x5c] sm:$0xf]
      %v707 = vld [vmem:[%s3 + $0x60] sm:$0xf]
      %v708 = vld [vmem:[%s3 + $0x64] sm:$0xf]
      %v709 = vld [vmem:[%s3 + $0x68] sm:$0xf]
      %v710 = vld [vmem:[%s3 + $0x6c] sm:$0xf]
      %v711 = vld [vmem:[%s3 + $0x70] sm:$0xf]
      %v712 = vld [vmem:[%s3 + $0x74] sm:$0xf]
      %v713 = vld [vmem:[%s3 + $0x78] sm:$0xf]
      %v714 = vld [vmem:[%s3 + $0x7c] sm:$0xf]
      %v715 = vld [vmem:[%s4] sm:$0x1]
      %v717 = vperm.slane %v715, 0
      %v751 = vunpack.c.l.b16 %v683
      %v752 = vunpack.c.l.b16 %v684
      %v753 = vunpack.c.l.b16 %v685
      %v754 = vunpack.c.l.b16 %v686
      %v755 = vunpack.c.l.b16 %v687
      %v756 = vunpack.c.l.b16 %v688
      %v757 = vunpack.c.l.b16 %v689
      %v758 = vunpack.c.l.b16 %v690
      %v759 = vunpack.c.l.b16 %v691
      %v760 = vunpack.c.l.b16 %v692
      %v761 = vunpack.c.l.b16 %v693
      %v762 = vunpack.c.l.b16 %v694
      %v763 = vunpack.c.l.b16 %v695
      %v764 = vunpack.c.l.b16 %v696
      %v765 = vunpack.c.l.b16 %v697
      %v766 = vunpack.c.l.b16 %v698
      %v767 = vunpack.c.l.b16 %v699
      %v768 = vunpack.c.l.b16 %v700
      %v769 = vunpack.c.l.b16 %v701
      %v770 = vunpack.c.l.b16 %v702
      %v771 = vunpack.c.l.b16 %v703
      %v772 = vunpack.c.l.b16 %v704
      %v773 = vunpack.c.l.b16 %v705
      %v774 = vunpack.c.l.b16 %v706
      %v775 = vunpack.c.l.b16 %v707
      %v776 = vunpack.c.l.b16 %v708
      %v777 = vunpack.c.l.b16 %v709
      %v778 = vunpack.c.l.b16 %v710
      %v779 = vunpack.c.l.b16 %v711
      %v780 = vunpack.c.l.b16 %v712
      %v781 = vunpack.c.l.b16 %v713
      %v782 = vunpack.c.l.b16 %v714
      %v783 = vpack.c.b16 %v752, %v751
      %v784 = vpack.c.b16 %v754, %v753
      %v785 = vpack.c.b16 %v756, %v755
      %v786 = vpack.c.b16 %v758, %v757
      %v787 = vpack.c.b16 %v760, %v759
      %v788 = vpack.c.b16 %v762, %v761
      %v789 = vpack.c.b16 %v764, %v763
      %v790 = vpack.c.b16 %v766, %v765
      %v791 = vpack.c.b16 %v768, %v767
      %v792 = vpack.c.b16 %v770, %v769
      %v793 = vpack.c.b16 %v772, %v771
      %v794 = vpack.c.b16 %v774, %v773
      %v795 = vpack.c.b16 %v776, %v775
      %v796 = vpack.c.b16 %v778, %v777
      %v797 = vpack.c.b16 %v780, %v779
      %v798 = vpack.c.b16 %v782, %v781
      %815 = vmatpush.bf16.msra.mxu0 %v790
      %816 = vmatpush.bf16.msra.mxu0 %v789
      %817 = vmatpush.bf16.msra.mxu0 %v788
      %818 = vmatpush.bf16.msra.mxu0 %v787
      %819 = vmatpush.bf16.msra.mxu0 %v786
      %820 = vmatpush.bf16.msra.mxu0 %v785
      %821 = vmatpush.bf16.msra.mxu0 %v784
      %822 = vmatpush.bf16.msra.mxu0 %v783
      %823 = vmatmul.bf16.gmra.mxu0 %v651
      %v824 = vpop.f32.mrf.mxu0
      %v825 = vadd.f32 %v717, %v824
      %v826 = vpop.f32.mrf.mxu0
      %v827 = vadd.f32 %v717, %v826
      %828 = vmatmul.bf16.gmra.mxu0 %v653
      %v829 = vpop.f32.mrf.mxu0
      %v830 = vadd.f32 %v717, %v829
      %v831 = vpop.f32.mrf.mxu0
      %v832 = vadd.f32 %v717, %v831
      %833 = vmatmul.bf16.gmra.mxu0 %v655
      %v834 = vpop.f32.mrf.mxu0
      %v835 = vadd.f32 %v717, %v834
      %v836 = vpop.f32.mrf.mxu0
      %v837 = vadd.f32 %v717, %v836
      %838 = vmatmul.bf16.gmra.mxu0 %v657
      %v839 = vpop.f32.mrf.mxu0
      %v840 = vadd.f32 %v717, %v839
      %v841 = vpop.f32.mrf.mxu0
      %v842 = vadd.f32 %v717, %v841
      %843 = vmatmul.bf16.gmra.mxu0 %v659
      %v844 = vpop.f32.mrf.mxu0
      %v845 = vadd.f32 %v717, %v844
      %v846 = vpop.f32.mrf.mxu0
      %v847 = vadd.f32 %v717, %v846
      %848 = vmatmul.bf16.gmra.mxu0 %v661
      %v849 = vpop.f32.mrf.mxu0
      %v850 = vadd.f32 %v717, %v849
      %v851 = vpop.f32.mrf.mxu0
      %v852 = vadd.f32 %v717, %v851
      %853 = vmatmul.bf16.gmra.mxu0 %v663
      %v854 = vpop.f32.mrf.mxu0
      %v855 = vadd.f32 %v717, %v854
      %v856 = vpop.f32.mrf.mxu0
      %v857 = vadd.f32 %v717, %v856
      %858 = vmatmul.bf16.gmra.mxu0 %v665
      %v859 = vpop.f32.mrf.mxu0
      %v860 = vadd.f32 %v717, %v859
      %v861 = vpop.f32.mrf.mxu0
      %v862 = vadd.f32 %v717, %v861
      %863 = vmatmul.bf16.gmra.mxu0 %v667
      %v864 = vpop.f32.mrf.mxu0
      %v865 = vadd.f32 %v717, %v864
      %v866 = vpop.f32.mrf.mxu0
      %v867 = vadd.f32 %v717, %v866
      %868 = vmatmul.bf16.gmra.mxu0 %v669
      %v869 = vpop.f32.mrf.mxu0
      %v870 = vadd.f32 %v717, %v869
      %v871 = vpop.f32.mrf.mxu0
      %v872 = vadd.f32 %v717, %v871
      %873 = vmatmul.bf16.gmra.mxu0 %v671
      %v874 = vpop.f32.mrf.mxu0
      %v875 = vadd.f32 %v717, %v874
      %v876 = vpop.f32.mrf.mxu0
      %v877 = vadd.f32 %v717, %v876
      %878 = vmatmul.bf16.gmra.mxu0 %v673
      %v879 = vpop.f32.mrf.mxu0
      %v880 = vadd.f32 %v717, %v879
      %v881 = vpop.f32.mrf.mxu0
      %v882 = vadd.f32 %v717, %v881
      %883 = vmatmul.bf16.gmra.mxu0 %v675
      %v884 = vpop.f32.mrf.mxu0
      %v885 = vadd.f32 %v717, %v884
      %v886 = vpop.f32.mrf.mxu0
      %v887 = vadd.f32 %v717, %v886
      %888 = vmatmul.bf16.gmra.mxu0 %v677
      %v889 = vpop.f32.mrf.mxu0
      %v890 = vadd.f32 %v717, %v889
      %v891 = vpop.f32.mrf.mxu0
      %v892 = vadd.f32 %v717, %v891
      %893 = vmatmul.bf16.gmra.mxu0 %v679
      %v894 = vpop.f32.mrf.mxu0
      %v895 = vadd.f32 %v717, %v894
      %v896 = vpop.f32.mrf.mxu0
      %v897 = vadd.f32 %v717, %v896
      %898 = vmatmul.bf16.gmra.mxu0 %v681
      %v899 = vpop.f32.mrf.mxu0
      %v900 = vadd.f32 %v717, %v899
      %v901 = vpop.f32.mrf.mxu0
      %v902 = vadd.f32 %v717, %v901
      %903 = vdwg.mxu0
      %904 = vmatpush.bf16.msra.mxu0 %v798
      %905 = vmatpush.bf16.msra.mxu0 %v797
      %906 = vmatpush.bf16.msra.mxu0 %v796
      %907 = vmatpush.bf16.msra.mxu0 %v795
      %908 = vmatpush.bf16.msra.mxu0 %v794
      %909 = vmatpush.bf16.msra.mxu0 %v793
      %910 = vmatpush.bf16.msra.mxu0 %v792
      %911 = vmatpush.bf16.msra.mxu0 %v791
      %912 = vmatmul.bf16.gmra.mxu0 %v652
      %v913 = vpop.f32.mrf.mxu0
      %v914 = vadd.f32 %v825, %v913
      %v915 = vpop.f32.mrf.mxu0
      %v916 = vadd.f32 %v827, %v915
      %917 = vmatmul.bf16.gmra.mxu0 %v654
      %v918 = vpop.f32.mrf.mxu0
      %v919 = vadd.f32 %v830, %v918
      %v920 = vpop.f32.mrf.mxu0
      %v921 = vadd.f32 %v832, %v920
      %922 = vmatmul.bf16.gmra.mxu0 %v656
      %v923 = vpop.f32.mrf.mxu0
      %v924 = vadd.f32 %v835, %v923
      %v925 = vpop.f32.mrf.mxu0
      %v926 = vadd.f32 %v837, %v925
      %927 = vmatmul.bf16.gmra.mxu0 %v658
      %v928 = vpop.f32.mrf.mxu0
      %v929 = vadd.f32 %v840, %v928
      %v930 = vpop.f32.mrf.mxu0
      %v931 = vadd.f32 %v842, %v930
      %932 = vmatmul.bf16.gmra.mxu0 %v660
      %v933 = vpop.f32.mrf.mxu0
      %v934 = vadd.f32 %v845, %v933
      %v935 = vpop.f32.mrf.mxu0
      %v936 = vadd.f32 %v847, %v935
      %937 = vmatmul.bf16.gmra.mxu0 %v662
      %v938 = vpop.f32.mrf.mxu0
      %v939 = vadd.f32 %v850, %v938
      %v940 = vpop.f32.mrf.mxu0
      %v941 = vadd.f32 %v852, %v940
      %942 = vmatmul.bf16.gmra.mxu0 %v664
      %v943 = vpop.f32.mrf.mxu0
      %v944 = vadd.f32 %v855, %v943
      %v945 = vpop.f32.mrf.mxu0
      %v946 = vadd.f32 %v857, %v945
      %947 = vmatmul.bf16.gmra.mxu0 %v666
      %v948 = vpop.f32.mrf.mxu0
      %v949 = vadd.f32 %v860, %v948
      %v950 = vpop.f32.mrf.mxu0
      %v951 = vadd.f32 %v862, %v950
      %952 = vmatmul.bf16.gmra.mxu0 %v668
      %v953 = vpop.f32.mrf.mxu0
      %v954 = vadd.f32 %v865, %v953
      %v955 = vpop.f32.mrf.mxu0
      %v956 = vadd.f32 %v867, %v955
      %957 = vmatmul.bf16.gmra.mxu0 %v670
      %v958 = vpop.f32.mrf.mxu0
      %v959 = vadd.f32 %v870, %v958
      %v960 = vpop.f32.mrf.mxu0
      %v961 = vadd.f32 %v872, %v960
      %962 = vmatmul.bf16.gmra.mxu0 %v672
      %v963 = vpop.f32.mrf.mxu0
      %v964 = vadd.f32 %v875, %v963
      %v965 = vpop.f32.mrf.mxu0
      %v966 = vadd.f32 %v877, %v965
      %967 = vmatmul.bf16.gmra.mxu0 %v674
      %v968 = vpop.f32.mrf.mxu0
      %v969 = vadd.f32 %v880, %v968
      %v970 = vpop.f32.mrf.mxu0
      %v971 = vadd.f32 %v882, %v970
      %972 = vmatmul.bf16.gmra.mxu0 %v676
      %v973 = vpop.f32.mrf.mxu0
      %v974 = vadd.f32 %v885, %v973
      %v975 = vpop.f32.mrf.mxu0
      %v976 = vadd.f32 %v887, %v975
      %977 = vmatmul.bf16.gmra.mxu0 %v678
      %v978 = vpop.f32.mrf.mxu0
      %v979 = vadd.f32 %v890, %v978
      %v980 = vpop.f32.mrf.mxu0
      %v981 = vadd.f32 %v892, %v980
      %982 = vmatmul.bf16.gmra.mxu0 %v680
      %v983 = vpop.f32.mrf.mxu0
      %v984 = vadd.f32 %v895, %v983
      %v985 = vpop.f32.mrf.mxu0
      %v986 = vadd.f32 %v897, %v985
      %987 = vmatmul.bf16.gmra.mxu0 %v682
      %v988 = vpop.f32.mrf.mxu0
      %v989 = vadd.f32 %v900, %v988
      %v990 = vpop.f32.mrf.mxu0
      %v991 = vadd.f32 %v902, %v990
      %992 = vdwg.mxu0
      %993 = vst [vmem:[%s226] sm:$0xff] %v914
      %994 = vst [vmem:[%s226 + $0x8] sm:$0xff] %v916
      %995 = vst [vmem:[%s226 + $0x10] sm:$0xff] %v919
      %996 = vst [vmem:[%s226 + $0x18] sm:$0xff] %v921
      %997 = vst [vmem:[%s226 + $0x20] sm:$0xff] %v924
      %998 = vst [vmem:[%s226 + $0x28] sm:$0xff] %v926
      %999 = vst [vmem:[%s226 + $0x30] sm:$0xff] %v929
      %1000 = vst [vmem:[%s226 + $0x38] sm:$0xff] %v931
      %1001 = vst [vmem:[%s226 + $0x40] sm:$0xff] %v934
      %1002 = vst [vmem:[%s226 + $0x48] sm:$0xff] %v936
      %1003 = vst [vmem:[%s226 + $0x50] sm:$0xff] %v939
      %1004 = vst [vmem:[%s226 + $0x58] sm:$0xff] %v941
      %1005 = vst [vmem:[%s226 + $0x60] sm:$0xff] %v944
      %1006 = vst [vmem:[%s226 + $0x68] sm:$0xff] %v946
      %1007 = vst [vmem:[%s226 + $0x70] sm:$0xff] %v949
      %1008 = vst [vmem:[%s226 + $0x78] sm:$0xff] %v951
      %1009 = vst [vmem:[%s226 + $0x80] sm:$0xff] %v954
      %1010 = vst [vmem:[%s226 + $0x88] sm:$0xff] %v956
      %1011 = vst [vmem:[%s226 + $0x90] sm:$0xff] %v959
      %1012 = vst [vmem:[%s226 + $0x98] sm:$0xff] %v961
      %1013 = vst [vmem:[%s226 + $0xa0] sm:$0xff] %v964
      %1014 = vst [vmem:[%s226 + $0xa8] sm:$0xff] %v966
      %1015 = vst [vmem:[%s226 + $0xb0] sm:$0xff] %v969
      %1016 = vst [vmem:[%s226 + $0xb8] sm:$0xff] %v971
      %1017 = vst [vmem:[%s226 + $0xc0] sm:$0xff] %v974
      %1018 = vst [vmem:[%s226 + $0xc8] sm:$0xff] %v976
      %1019 = vst [vmem:[%s226 + $0xd0] sm:$0xff] %v979
      %1020 = vst [vmem:[%s226 + $0xd8] sm:$0xff] %v981
      %1021 = vst [vmem:[%s226 + $0xe0] sm:$0xff] %v984
      %1022 = vst [vmem:[%s226 + $0xe8] sm:$0xff] %v986
      %1023 = vst [vmem:[%s226 + $0xf0] sm:$0xff] %v989
      %1024 = vst [vmem:[%s226 + $0xf8] sm:$0xff] %v991
      %s1025 = smul.u32 32, %s16
      %p1026 = scmp.lt.s32.totalorder %s1025, 63
      %s1027 = scalar_select %p1026, %s1025, 63
      %s1028 = smul.addr %s1027, 8
      %s1029 = scalar_lea.vmem %s5, %s1028
      // Predicated region
      $region41: #{dcn_sep_head_forward.11} parent=39 // pred_check
        %p1030 = pneg %p144
      $region42: #{dcn_sep_head_forward.11} parent=39 // pred_check_branch
        %1032 = sbr.rel (%p1030) target = $region44
      $region43: #{dcn_sep_head_forward.11} parent=39 // pred_region
        %s1033 = smul.u32 32, %s16
      $region44: #{dcn_sep_head_forward.11} parent=39 // pred_fallthru
        _
    $region40: #{dcn_sep_head_forward.11} parent=5 // pred_fallthru
      _
    %p1034 = scmp.le.s32.totalorder 2, %s11
    // Predicated region
    $region45: #{dcn_sep_head_forward.11} parent=5 // pred_check
      %p1035 = pneg %p1034
    $region46: #{dcn_sep_head_forward.11} parent=5 // pred_check_branch
      %1037 = sbr.rel (%p1035) target = $region48
    $region47: #{dcn_sep_head_forward.11} parent=5 // pred_region
      %s1038 = ssub.s32 %s11, 2
      // Predicated region
      $region49: #{dcn_sep_head_forward.11} parent=47 // pred_check
        %p1039 = pneg %p150
      $region50: #{dcn_sep_head_forward.11} parent=47 // pred_check_branch
        %1041 = sbr.rel (%p1039) target = $region52
      $region51: #{dcn_sep_head_forward.11} parent=47 // pred_region
        %s1042 = smul.u32 32, %s17
        %p1043 = scmp.lt.s32.totalorder %s1042, 63
        %s1044 = scalar_select %p1043, %s1042, 63
        %s1045 = smul.addr %s1044, 8
        %s1046 = scalar_lea.vmem %s5, %s1045
      $region52: #{dcn_sep_head_forward.11} parent=47 // pred_fallthru
        _
    $region48: #{dcn_sep_head_forward.11} parent=5 // pred_fallthru
      _
  $region6: #{dcn_sep_head_forward.11} parent=0 // loop_footer
    %s15 = sadd.s32 1, %s11
  $region7: #{dcn_sep_head_forward.11} parent=0 // loop_footer_branch
    %10 = sbr.rel target = $region3
  $region8: #{dcn_sep_head_forward.11} parent=0 // loop_exit
    _

</llo_original>
